<compile_context>
chip_gen: v5e
topology: v5e:2x2
jax: 0.10.0
libtpu: 0.0.40
codegen_flags: <defaults>
</compile_context>

<pallas_src>
import jax
import jax.numpy as jnp
from jax.experimental import pallas as pl
from jax.experimental.pallas import tpu as pltpu

D_MODEL = 32
NHEAD = 4
HEAD_DIM = D_MODEL // NHEAD
DIM_FF = 64
NUM_LAYERS = 2
EPS = 1e-5

# per-layer rows in the packed "vecs" array (all width D_MODEL):
(_SA_V_B, _SA_O_B, _CA_Q_B, _CA_K_B, _CA_V_B, _CA_O_B, _L2_B,
 _N1_W, _N1_B, _N2_W, _N2_B, _N3_W, _N3_B) = range(13)
N_VEC_PER_LAYER = 13
# per-layer (D, D) matrices in the packed "w_dd" array:
_SA_V_W, _SA_O_W, _CA_Q_W, _CA_K_W, _CA_V_W, _CA_O_W = range(6)
N_DD_PER_LAYER = 6

PACKED_KEYS = ("sa_qk_w", "sa_qk_b", "w_dd", "vecs", "ffn_w1", "ffn_b1", "ffn_w2")


# ------------------------------ in-kernel math ------------------------------

def _layer_norm(x, g, b):
    # var = E[x^2] - mu^2: the two lane reductions are independent (XLU pipelines).
    mu = jnp.mean(x, axis=-1, keepdims=True)
    ms = jnp.mean(x * x, axis=-1, keepdims=True)
    return (x - mu) * jax.lax.rsqrt(ms - mu * mu + EPS) * g + b


def _softmax(x):
    m = jnp.max(x, axis=-1, keepdims=True)
    e = jnp.exp(x - m)
    # divide -> EUP reciprocal (separate VLIW slot), flash-attention style.
    return e * pl.reciprocal(jnp.sum(e, axis=-1, keepdims=True), approx=True)


# --------------------------------- kernel -----------------------------------

def _make_decoder_kernel(num_layers, bb, t_q, t_k, has_qpos, has_pos,
                         return_all, matmul_dtype):
    """Builds the fused decoder kernel for a static configuration."""
    scale = 1.0 / (HEAD_DIM ** 0.5)

    def dot2(a, w):      # (rows, K) @ (K, N): matmul operands in matmul_dtype,
        return jnp.dot(a.astype(matmul_dtype), w.astype(matmul_dtype),
                       preferred_element_type=jnp.float32)          # f32 accumulation

    def bdot(spec, a, b):  # batched attention einsums (batch = folded B)
        return jnp.einsum(spec, a.astype(matmul_dtype), b.astype(matmul_dtype),
                          preferred_element_type=jnp.float32)

    def heads_attend(q3, k3, v3):
        # q3: (bb, Tq, D), k3/v3: (bb, Tkv, D).  Per-head scores/contexts with the
        # batch folded into one einsum per head; heads are re-concatenated along
        # lanes for the single full-width output projection.
        # TODO(synk): at real DETR sizes (8 heads, Tk ~ 1000) batch the heads too
        #             ('bhqe,bhke->bhqk') or wrap in lax.fori_loop to bound vreg
        #             live ranges; the 4-head unroll is fine at this scale.
        ctx = []
        for h in range(NHEAD):
            sl = slice(h * HEAD_DIM, (h + 1) * HEAD_DIM)
            s = bdot('bqe,bke->bqk', q3[..., sl] * scale, k3[..., sl])
            p = _softmax(s)
            ctx.append(bdot('bqk,bke->bqe', p, v3[..., sl]))
        return jnp.concatenate(ctx, axis=-1)                        # (bb, Tq, D)

    def kernel(*refs):
        it = iter(refs)
        tgt_ref = next(it)                                          # (bb*Tq, D)
        mem_ref = next(it)                                          # (bb*Tk, D)
        qpos_ref = next(it) if has_qpos else None
        pos_ref = next(it) if has_pos else None
        sa_qk_w_ref = next(it)                                      # (L, D, 2D)
        sa_qk_b_ref = next(it)                                      # (L, 2D)
        w_dd_ref = next(it)                                         # (L*6, D, D)
        vecs_ref = next(it)                                         # (L*13+2, D)
        ffn_w1_ref = next(it)                                       # (L, D, FF)
        ffn_b1_ref = next(it)                                       # (L, FF)
        ffn_w2_ref = next(it)                                       # (L, FF, D)
        out_ref = next(it)

        D = D_MODEL
        x = tgt_ref[...].astype(jnp.float32)                        # (bb*Tq, D)
        mem_v = mem_ref[...].astype(jnp.float32)                    # (bb*Tk, D)
        qpos = qpos_ref[...].astype(jnp.float32) if has_qpos else None
        # cross-attention key input (memory + pos): hoisted out of the layer loop
        mem_k = mem_v + pos_ref[...].astype(jnp.float32) if has_pos else mem_v

        def add_qpos(t):
            return t + qpos if has_qpos else t

        def vec(row):                                               # (1, D) row
            return vecs_ref[row:row + 1, :]

        fb = num_layers * N_VEC_PER_LAYER                           # final LN rows
        for l in range(num_layers):
            vb = l * N_VEC_PER_LAYER
            db = l * N_DD_PER_LAYER

            # ---- self attention: q = k = x + query_pos, v = x ----
            qk = dot2(add_qpos(x), sa_qk_w_ref[l]) + sa_qk_b_ref[l:l + 1, :]
            v = dot2(x, w_dd_ref[db + _SA_V_W]) + vec(vb + _SA_V_B)
            qk3 = qk.reshape(bb, t_q, 2 * D)
            ctx = heads_attend(qk3[..., :D], qk3[..., D:], v.reshape(bb, t_q, D))
            sa = dot2(ctx.reshape(bb * t_q, D), w_dd_ref[db + _SA_O_W]) + vec(vb + _SA_O_B)
            x = _layer_norm(x + sa, vec(vb + _N1_W), vec(vb + _N1_B))

            # ---- cross attention: q = x + query_pos, k = memory + pos, v = memory ----
            q = dot2(add_qpos(x), w_dd_ref[db + _CA_Q_W]) + vec(vb + _CA_Q_B)
            k = dot2(mem_k, w_dd_ref[db + _CA_K_W]) + vec(vb + _CA_K_B)
            v = dot2(mem_v, w_dd_ref[db + _CA_V_W]) + vec(vb + _CA_V_B)
            ctx = heads_attend(q.reshape(bb, t_q, D),
                               k.reshape(bb, t_k, D), v.reshape(bb, t_k, D))
            ca = dot2(ctx.reshape(bb * t_q, D), w_dd_ref[db + _CA_O_W]) + vec(vb + _CA_O_B)
            x = _layer_norm(x + ca, vec(vb + _N2_W), vec(vb + _N2_B))

            # ---- FFN: linear1 -> ReLU -> linear2 (dropout = identity, eval) ----
            h = jnp.maximum(dot2(x, ffn_w1_ref[l]) + ffn_b1_ref[l:l + 1, :], 0.0)
            ff = dot2(h, ffn_w2_ref[l]) + vec(vb + _L2_B)
            x = _layer_norm(x + ff, vec(vb + _N3_W), vec(vb + _N3_B))

            if return_all:
                # shared final LayerNorm applied to every intermediate (DETR semantics)
                out_ref[l] = _layer_norm(x, vec(fb), vec(fb + 1)).astype(out_ref.dtype)

        if not return_all:
            # only the last layer's shared LayerNorm is computed / written back
            out_ref[...] = _layer_norm(x, vec(fb), vec(fb + 1)).astype(out_ref.dtype)

    return kernel


# --------------------------------- wrapper -----------------------------------

def _rows(a):
    """(T, B, D) seq-first -> (B*T, D) rows (outside-the-kernel layout plumbing)."""
    t, b, d = a.shape
    return jnp.transpose(a, (1, 0, 2)).reshape(b * t, d)


def transformer_decoder(tgt, memory, packed, pos=None, query_pos=None,
                        return_intermediate=False, batch_block=None):
    """tgt: (Tq, B, D), memory: (Tk, B, D) — PyTorch seq-first layout.

    batch_block: batch chunk per grid step.  Default = B (whole batch in one
    grid step: best on single-TensorCore v5e/v6e).  Set B//2 on v7x so each of
    its two TensorCores gets half the batch.
    # TODO(synk): for B == 1 on v7x, split Tq across cores instead (needs a
    #             per-layer cross-core exchange of x for the self-attn keys).
    """
    Tq, B, D = tgt.shape
    Tk = memory.shape[0]
    L = packed["ffn_w1"].shape[0]
    bb = B if batch_block is None else batch_block
    assert B % bb == 0
    has_qpos = query_pos is not None
    has_pos = pos is not None

    acts = [_rows(tgt), _rows(memory)]
    act_specs = [pl.BlockSpec((bb * Tq, D), lambda i: (i, 0)),
                 pl.BlockSpec((bb * Tk, D), lambda i: (i, 0))]
    if has_qpos:
        acts.append(_rows(query_pos))
        act_specs.append(pl.BlockSpec((bb * Tq, D), lambda i: (i, 0)))
    if has_pos:
        acts.append(_rows(pos))
        act_specs.append(pl.BlockSpec((bb * Tk, D), lambda i: (i, 0)))

    # Constant index maps: weights are DMA'd once and stay VMEM-resident.
    weights = [packed[k] for k in PACKED_KEYS]
    w_specs = [pl.BlockSpec(w.shape, lambda i, n=w.ndim: (0,) * n) for w in weights]

    if return_intermediate:
        out_shape = jax.ShapeDtypeStruct((L, B * Tq, D), tgt.dtype)
        out_spec = pl.BlockSpec((L, bb * Tq, D), lambda i: (0, i, 0))
    else:
        out_shape = jax.ShapeDtypeStruct((B * Tq, D), tgt.dtype)
        out_spec = pl.BlockSpec((bb * Tq, D), lambda i: (i, 0))

    kernel = _make_decoder_kernel(L, bb, Tq, Tk, has_qpos, has_pos,
                                  return_intermediate, packed["sa_qk_w"].dtype)

    out = pl.pallas_call(
        kernel,
        out_shape=out_shape,
        grid_spec=pltpu.PrefetchScalarGridSpec(
            num_scalar_prefetch=0,
            grid=(B // bb,),
            in_specs=act_specs + w_specs,
            out_specs=out_spec,
        ),
        compiler_params=pltpu.CompilerParams(dimension_semantics=("parallel",)),
    )(*acts, *weights)

    if return_intermediate:
        out = out.reshape(L, B, Tq, D)
        return jnp.transpose(out, (0, 2, 1, 3))                 # (L, Tq, B, D)
    out = out.reshape(B, Tq, D)
    return jnp.transpose(out, (1, 0, 2))[None]                  # output.unsqueeze(0)


# ------------------------------ param handling -------------------------------

def init_layer_params(key):
    """PyTorch-native layouts (MultiheadAttention packed in_proj, Linear, LayerNorm)."""
    ks = jax.random.split(key, 18)

    def r(k, shape, s=0.02):
        return (s * jax.random.normal(k, shape)).astype(jnp.float32)

    return {
        "sa_in_w": r(ks[0], (3 * D_MODEL, D_MODEL)), "sa_in_b": r(ks[1], (3 * D_MODEL,)),
        "sa_out_w": r(ks[2], (D_MODEL, D_MODEL)), "sa_out_b": r(ks[3], (D_MODEL,)),
        "ca_in_w": r(ks[4], (3 * D_MODEL, D_MODEL)), "ca_in_b": r(ks[5], (3 * D_MODEL,)),
        "ca_out_w": r(ks[6], (D_MODEL, D_MODEL)), "ca_out_b": r(ks[7], (D_MODEL,)),
        "l1_w": r(ks[8], (DIM_FF, D_MODEL)), "l1_b": r(ks[9], (DIM_FF,)),
        "l2_w": r(ks[10], (D_MODEL, DIM_FF)), "l2_b": r(ks[11], (D_MODEL,)),
        "n1_w": 1.0 + r(ks[12], (D_MODEL,)), "n1_b": r(ks[13], (D_MODEL,)),
        "n2_w": 1.0 + r(ks[14], (D_MODEL,)), "n2_b": r(ks[15], (D_MODEL,)),
        "n3_w": 1.0 + r(ks[16], (D_MODEL,)), "n3_b": r(ks[17], (D_MODEL,)),
    }


def pack_params(params, matmul_dtype=jnp.float32):
    """Host-side one-time pre-transpose / fuse / stack into 7 kernel arrays.

    matmul_dtype=jnp.bfloat16 packs the matmul weights in bf16 (halves weight
    DMA bytes + VMEM residency, feeds the MXU at its bf16 rate on v6e/v7x);
    biases and LayerNorm parameters stay f32 (VPU/EUP path, esp. on v5e).
    """
    layers = params["layers"]
    sa_qk_w, sa_qk_b, w_dd, vecs = [], [], [], []
    ffn_w1, ffn_b1, ffn_w2 = [], [], []
    for lp in layers:
        wq_s, wk_s, wv_s = jnp.split(lp["sa_in_w"], 3, axis=0)
        bq_s, bk_s, bv_s = jnp.split(lp["sa_in_b"], 3)
        wq_c, wk_c, wv_c = jnp.split(lp["ca_in_w"], 3, axis=0)
        bq_c, bk_c, bv_c = jnp.split(lp["ca_in_b"], 3)
        # self-attn Q and K read the same activation -> fuse into one (D, 2D) matmul
        sa_qk_w.append(jnp.concatenate([wq_s.T, wk_s.T], axis=1))
        sa_qk_b.append(jnp.concatenate([bq_s, bk_s]))
        w_dd += [wv_s.T, lp["sa_out_w"].T, wq_c.T, wk_c.T, wv_c.T, lp["ca_out_w"].T]
        vecs += [bv_s, lp["sa_out_b"], bq_c, bk_c, bv_c, lp["ca_out_b"], lp["l2_b"],
                 lp["n1_w"], lp["n1_b"], lp["n2_w"], lp["n2_b"], lp["n3_w"], lp["n3_b"]]
        ffn_w1.append(lp["l1_w"].T)          # (D, FF)  pre-transposed
        ffn_b1.append(lp["l1_b"])            # (FF,)
        ffn_w2.append(lp["l2_w"].T)          # (FF, D)  pre-transposed
    vecs += [params["norm_w"], params["norm_b"]]
    md = matmul_dtype
    return {
        "sa_qk_w": jnp.stack(sa_qk_w).astype(md),   # (L, D, 2D)
        "sa_qk_b": jnp.stack(sa_qk_b),              # (L, 2D)      f32
        "w_dd": jnp.stack(w_dd).astype(md),         # (L*6, D, D)
        "vecs": jnp.stack(vecs),                    # (L*13+2, D)  f32
        "ffn_w1": jnp.stack(ffn_w1).astype(md),     # (L, D, FF)
        "ffn_b1": jnp.stack(ffn_b1),                # (L, FF)      f32
        "ffn_w2": jnp.stack(ffn_w2).astype(md),     # (L, FF, D)
    }


# --------------------------- pure-JAX reference ------------------------------

def _ref_mha(q_in, k_in, v_in, in_w, in_b, out_w, out_b):
    D = q_in.shape[-1]
    q = q_in @ in_w[:D].T + in_b[:D]
    k = k_in @ in_w[D:2 * D].T + in_b[D:2 * D]
    v = v_in @ in_w[2 * D:].T + in_b[2 * D:]
    scale = 1.0 / (HEAD_DIM ** 0.5)
    heads = []
    for h in range(NHEAD):
        sl = slice(h * HEAD_DIM, (h + 1) * HEAD_DIM)
        s = (q[..., sl] * scale) @ jnp.swapaxes(k[..., sl], -1, -2)
        heads.append(jax.nn.softmax(s, axis=-1) @ v[..., sl])
    return jnp.concatenate(heads, -1) @ out_w.T + out_b


def _ref_layer_norm(x, g, b):
    mu = jnp.mean(x, axis=-1, keepdims=True)
    var = jnp.mean(jnp.square(x - mu), axis=-1, keepdims=True)
    return (x - mu) / jnp.sqrt(var + EPS) * g + b


def reference_decoder(tgt, memory, params, pos, query_pos, return_intermediate=False):
    x = jnp.transpose(tgt, (1, 0, 2))
    mem = jnp.transpose(memory, (1, 0, 2))
    qp = jnp.transpose(query_pos, (1, 0, 2))
    p = jnp.transpose(pos, (1, 0, 2))
    inter = []
    for lp in params["layers"]:
        q = x + qp
        x = _ref_layer_norm(
            x + _ref_mha(q, q, x, lp["sa_in_w"], lp["sa_in_b"], lp["sa_out_w"], lp["sa_out_b"]),
            lp["n1_w"], lp["n1_b"])
        x = _ref_layer_norm(
            x + _ref_mha(x + qp, mem + p, mem,
                         lp["ca_in_w"], lp["ca_in_b"], lp["ca_out_w"], lp["ca_out_b"]),
            lp["n2_w"], lp["n2_b"])
        h = jax.nn.relu(x @ lp["l1_w"].T + lp["l1_b"])
        x = _ref_layer_norm(x + (h @ lp["l2_w"].T + lp["l2_b"]), lp["n3_w"], lp["n3_b"])
        inter.append(_ref_layer_norm(x, params["norm_w"], params["norm_b"]))
    if return_intermediate:
        return jnp.stack([jnp.transpose(t, (1, 0, 2)) for t in inter])
    return jnp.transpose(inter[-1], (1, 0, 2))[None]


# ----------------------------------- main ------------------------------------

if __name__ == "__main__":
    key = jax.random.PRNGKey(0)
    k_tgt, k_mem, k_pos, k_qpos, k_params, k_norm = jax.random.split(key, 6)
    B, Tq, Tk = 2, 8, 16

    tgt = jax.random.normal(k_tgt, (Tq, B, D_MODEL), jnp.float32)
    memory = jax.random.normal(k_mem, (Tk, B, D_MODEL), jnp.float32)
    pos = jax.random.normal(k_pos, (Tk, B, D_MODEL), jnp.float32)
    query_pos = jax.random.normal(k_qpos, (Tq, B, D_MODEL), jnp.float32)

    # Note: PyTorch's _get_clones deep-copies one layer (identical init weights);
    # distinct per-layer weights here are the superset case.
    layer_keys = jax.random.split(k_params, NUM_LAYERS)
    kn1, kn2 = jax.random.split(k_norm)
    params = {
        "layers": [init_layer_params(k) for k in layer_keys],
        "norm_w": 1.0 + 0.02 * jax.random.normal(kn1, (D_MODEL,), jnp.float32),
        "norm_b": 0.02 * jax.random.normal(kn2, (D_MODEL,), jnp.float32),
    }
    packed = pack_params(params)                         # f32 matmul operands
    packed_bf16 = pack_params(params, jnp.bfloat16)      # bf16 matmul operands (v6e/v7x)

    fwd = jax.jit(lambda t, m, w, p, q: transformer_decoder(t, m, w, pos=p, query_pos=q))
    out = jax.block_until_ready(fwd(tgt, memory, packed, pos, query_pos))
    assert out.shape == (1, Tq, B, D_MODEL), out.shape
    assert bool(jnp.all(jnp.isfinite(out)))

    # correctness vs. a pure-JAX transcription of the PyTorch module
    ref = reference_decoder(tgt, memory, params, pos, query_pos)
    err = float(jnp.max(jnp.abs(out - ref)))
    assert err < 2e-3, f"f32 path max abs err {err}"

    # bf16 matmul-operand path (looser tolerance vs. the f32 reference)
    out_bf16 = jax.block_until_ready(fwd(tgt, memory, packed_bf16, pos, query_pos))
    err_bf16 = float(jnp.max(jnp.abs(out_bf16 - ref)))
    assert err_bf16 < 5e-2, f"bf16 path max abs err {err_bf16}"

    # return_intermediate path (torch.stack(intermediate) shape & values)
    inter = jax.block_until_ready(
        transformer_decoder(tgt, memory, packed, pos=pos, query_pos=query_pos,
                            return_intermediate=True))
    assert inter.shape == (NUM_LAYERS, Tq, B, D_MODEL), inter.shape
    ref_inter = reference_decoder(tgt, memory, params, pos, query_pos,
                                  return_intermediate=True)
    assert float(jnp.max(jnp.abs(inter - ref_inter))) < 2e-3

    # pos / query_pos = None path (no zero-tensor DMAs; adds elided in-kernel)
    out_nopos = jax.block_until_ready(transformer_decoder(tgt, memory, packed))
    ref_nopos = reference_decoder(tgt, memory, params,
                                  jnp.zeros_like(pos), jnp.zeros_like(query_pos))
    assert float(jnp.max(jnp.abs(out_nopos - ref_nopos))) < 2e-3

    print("KERNEL_OK")
</pallas_src>

<mosaic_0001>
module attributes {stable_mosaic.version = 11 : i64} {
  func.func @kernel(%arg0: i32, %arg1: memref<16x32xf32, #tpu.memory_space<vmem>>, %arg2: memref<32x32xf32, #tpu.memory_space<vmem>>, %arg3: memref<16x32xf32, #tpu.memory_space<vmem>>, %arg4: memref<32x32xf32, #tpu.memory_space<vmem>>, %arg5: memref<2x32x64xf32, #tpu.memory_space<vmem>>, %arg6: memref<2x64xf32, #tpu.memory_space<vmem>>, %arg7: memref<12x32x32xf32, #tpu.memory_space<vmem>>, %arg8: memref<28x32xf32, #tpu.memory_space<vmem>>, %arg9: memref<2x32x64xf32, #tpu.memory_space<vmem>>, %arg10: memref<2x64xf32, #tpu.memory_space<vmem>>, %arg11: memref<2x64x32xf32, #tpu.memory_space<vmem>>, %arg12: memref<16x32xf32, #tpu.memory_space<vmem>>) attributes {dimension_semantics = [#tpu.dimension_semantics<parallel>], iteration_bounds = array<i64: 1>, scalar_prefetch = 0 : i64, scratch_operands = 0 : i64, tpu.core_type = #tpu.core_type<tc>, window_params = [{transform_indices = @transform_0, window_bounds = array<i64: 16, 32>}, {transform_indices = @transform_1, window_bounds = array<i64: 32, 32>}, {transform_indices = @transform_2, window_bounds = array<i64: 16, 32>}, {transform_indices = @transform_3, window_bounds = array<i64: 32, 32>}, {pipeline_mode = #tpu.pipeline_mode<synchronous>, transform_indices = @transform_4, window_bounds = array<i64: 2, 32, 64>}, {pipeline_mode = #tpu.pipeline_mode<synchronous>, transform_indices = @transform_5, window_bounds = array<i64: 2, 64>}, {pipeline_mode = #tpu.pipeline_mode<synchronous>, transform_indices = @transform_6, window_bounds = array<i64: 12, 32, 32>}, {pipeline_mode = #tpu.pipeline_mode<synchronous>, transform_indices = @transform_7, window_bounds = array<i64: 28, 32>}, {pipeline_mode = #tpu.pipeline_mode<synchronous>, transform_indices = @transform_8, window_bounds = array<i64: 2, 32, 64>}, {pipeline_mode = #tpu.pipeline_mode<synchronous>, transform_indices = @transform_9, window_bounds = array<i64: 2, 64>}, {pipeline_mode = #tpu.pipeline_mode<synchronous>, transform_indices = @transform_10, window_bounds = array<i64: 2, 64, 32>}, {transform_indices = @transform_11, window_bounds = array<i64: 16, 32>}]} {
    %c0 = arith.constant 0 : index
    %c0_0 = arith.constant 0 : index
    %0 = vector.load %arg1[%c0, %c0_0] : memref<16x32xf32, #tpu.memory_space<vmem>>, vector<16x32xf32>
    %c0_1 = arith.constant 0 : index
    %c0_2 = arith.constant 0 : index
    %1 = vector.load %arg2[%c0_1, %c0_2] : memref<32x32xf32, #tpu.memory_space<vmem>>, vector<32x32xf32>
    %c0_3 = arith.constant 0 : index
    %c0_4 = arith.constant 0 : index
    %2 = vector.load %arg3[%c0_3, %c0_4] : memref<16x32xf32, #tpu.memory_space<vmem>>, vector<16x32xf32>
    %c0_5 = arith.constant 0 : index
    %c0_6 = arith.constant 0 : index
    %3 = vector.load %arg4[%c0_5, %c0_6] : memref<32x32xf32, #tpu.memory_space<vmem>>, vector<32x32xf32>
    %4 = arith.addf %1, %3 : vector<32x32xf32>
    %5 = arith.addf %0, %2 : vector<16x32xf32>
    %c0_7 = arith.constant 0 : index
    %c0_8 = arith.constant 0 : index
    %c0_9 = arith.constant 0 : index
    %6 = vector.load %arg5[%c0_7, %c0_8, %c0_9] : memref<2x32x64xf32, #tpu.memory_space<vmem>>, vector<1x32x64xf32>
    %7 = vector.shape_cast %6 : vector<1x32x64xf32> to vector<32x64xf32>
    %cst = arith.constant dense<0.000000e+00> : vector<16x64xf32>
    %8 = tpu.matmul %5, %7, %cst {dimension_numbers = #tpu.dot_dimension_numbers<[1], [0], [0], [1], [0, 0, 1, 1], [], []>} : vector<16x32xf32>, vector<32x64xf32>, vector<16x64xf32> -> vector<16x64xf32>
    %c0_10 = arith.constant 0 : index
    %c0_11 = arith.constant 0 : index
    %9 = vector.load %arg6[%c0_10, %c0_11] : memref<2x64xf32, #tpu.memory_space<vmem>>, vector<1x64xf32>
    %10 = vector.broadcast %9 : vector<1x64xf32> to vector<16x64xf32>
    %11 = arith.addf %8, %10 : vector<16x64xf32>
    %c0_12 = arith.constant 0 : index
    %c0_13 = arith.constant 0 : index
    %c0_14 = arith.constant 0 : index
    %12 = vector.load %arg7[%c0_12, %c0_13, %c0_14] : memref<12x32x32xf32, #tpu.memory_space<vmem>>, vector<1x32x32xf32>
    %13 = vector.shape_cast %12 : vector<1x32x32xf32> to vector<32x32xf32>
    %cst_15 = arith.constant dense<0.000000e+00> : vector<16x32xf32>
    %14 = tpu.matmul %0, %13, %cst_15 {dimension_numbers = #tpu.dot_dimension_numbers<[1], [0], [0], [1], [0, 0, 1, 1], [], []>} : vector<16x32xf32>, vector<32x32xf32>, vector<16x32xf32> -> vector<16x32xf32>
    %c0_16 = arith.constant 0 : index
    %c0_17 = arith.constant 0 : index
    %15 = vector.load %arg8[%c0_16, %c0_17] : memref<28x32xf32, #tpu.memory_space<vmem>>, vector<1x32xf32>
    %16 = vector.broadcast %15 : vector<1x32xf32> to vector<16x32xf32>
    %17 = arith.addf %14, %16 : vector<16x32xf32>
    %18 = vector.shape_cast %11 : vector<16x64xf32> to vector<2x8x64xf32>
    %19 = vector.extract_strided_slice %18 {offsets = [0, 0, 0], sizes = [2, 8, 32], strides = [1, 1, 1]} : vector<2x8x64xf32> to vector<2x8x32xf32>
    %20 = vector.extract_strided_slice %18 {offsets = [0, 0, 32], sizes = [2, 8, 32], strides = [1, 1, 1]} : vector<2x8x64xf32> to vector<2x8x32xf32>
    %21 = vector.shape_cast %17 : vector<16x32xf32> to vector<2x8x32xf32>
    %22 = vector.extract_strided_slice %19 {offsets = [0, 0, 0], sizes = [2, 8, 8], strides = [1, 1, 1]} : vector<2x8x32xf32> to vector<2x8x8xf32>
    %cst_18 = arith.constant 0.353553385 : f32
    %23 = vector.broadcast %cst_18 : f32 to vector<2x8x8xf32>
    %24 = arith.mulf %22, %23 : vector<2x8x8xf32>
    %25 = vector.extract_strided_slice %20 {offsets = [0, 0, 0], sizes = [2, 8, 8], strides = [1, 1, 1]} : vector<2x8x32xf32> to vector<2x8x8xf32>
    "tpu.trace_start"() <{level = 10 : i32, message = "bqe,bke->bqk"}> : () -> ()
    %cst_19 = arith.constant dense<0.000000e+00> : vector<2x8x8xf32>
    %26 = tpu.matmul %24, %25, %cst_19 {dimension_numbers = #tpu.dot_dimension_numbers<[2], [2], [1], [1], [0, 0, 0, 1, 1, 1], [0], [0]>} : vector<2x8x8xf32>, vector<2x8x8xf32>, vector<2x8x8xf32> -> vector<2x8x8xf32>
    "tpu.trace_stop"() : () -> ()
    %cst_20 = arith.constant dense<0xFF800000> : vector<2x8xf32>
    %27 = vector.multi_reduction <maximumf>, %26, %cst_20 [2] : vector<2x8x8xf32> to vector<2x8xf32>
    %28 = vector.shape_cast %27 : vector<2x8xf32> to vector<2x8x1xf32>
    %29 = vector.broadcast %28 : vector<2x8x1xf32> to vector<2x8x8xf32>
    %30 = arith.subf %26, %29 : vector<2x8x8xf32>
    %31 = math.exp %30 : vector<2x8x8xf32>
    %cst_21 = arith.constant dense<0.000000e+00> : vector<2x8xf32>
    %32 = vector.multi_reduction <add>, %31, %cst_21 [2] : vector<2x8x8xf32> to vector<2x8xf32>
    %33 = vector.shape_cast %32 : vector<2x8xf32> to vector<2x8x1xf32>
    %34 = tpu.reciprocal %33 {approx = true} : vector<2x8x1xf32> -> vector<2x8x1xf32>
    %35 = vector.broadcast %34 : vector<2x8x1xf32> to vector<2x8x8xf32>
    %36 = arith.mulf %31, %35 : vector<2x8x8xf32>
    %37 = vector.extract_strided_slice %21 {offsets = [0, 0, 0], sizes = [2, 8, 8], strides = [1, 1, 1]} : vector<2x8x32xf32> to vector<2x8x8xf32>
    "tpu.trace_start"() <{level = 10 : i32, message = "bqk,bke->bqe"}> : () -> ()
    %cst_22 = arith.constant dense<0.000000e+00> : vector<2x8x8xf32>
    %38 = tpu.matmul %36, %37, %cst_22 {dimension_numbers = #tpu.dot_dimension_numbers<[2], [1], [1], [2], [0, 0, 0, 1, 1, 2], [0], [0]>} : vector<2x8x8xf32>, vector<2x8x8xf32>, vector<2x8x8xf32> -> vector<2x8x8xf32>
    "tpu.trace_stop"() : () -> ()
    %39 = vector.extract_strided_slice %19 {offsets = [0, 0, 8], sizes = [2, 8, 8], strides = [1, 1, 1]} : vector<2x8x32xf32> to vector<2x8x8xf32>
    %cst_23 = arith.constant 0.353553385 : f32
    %40 = vector.broadcast %cst_23 : f32 to vector<2x8x8xf32>
    %41 = arith.mulf %39, %40 : vector<2x8x8xf32>
    %42 = vector.extract_strided_slice %20 {offsets = [0, 0, 8], sizes = [2, 8, 8], strides = [1, 1, 1]} : vector<2x8x32xf32> to vector<2x8x8xf32>
    "tpu.trace_start"() <{level = 10 : i32, message = "bqe,bke->bqk"}> : () -> ()
    %cst_24 = arith.constant dense<0.000000e+00> : vector<2x8x8xf32>
    %43 = tpu.matmul %41, %42, %cst_24 {dimension_numbers = #tpu.dot_dimension_numbers<[2], [2], [1], [1], [0, 0, 0, 1, 1, 1], [0], [0]>} : vector<2x8x8xf32>, vector<2x8x8xf32>, vector<2x8x8xf32> -> vector<2x8x8xf32>
    "tpu.trace_stop"() : () -> ()
    %cst_25 = arith.constant dense<0xFF800000> : vector<2x8xf32>
    %44 = vector.multi_reduction <maximumf>, %43, %cst_25 [2] : vector<2x8x8xf32> to vector<2x8xf32>
    %45 = vector.shape_cast %44 : vector<2x8xf32> to vector<2x8x1xf32>
    %46 = vector.broadcast %45 : vector<2x8x1xf32> to vector<2x8x8xf32>
    %47 = arith.subf %43, %46 : vector<2x8x8xf32>
    %48 = math.exp %47 : vector<2x8x8xf32>
    %cst_26 = arith.constant dense<0.000000e+00> : vector<2x8xf32>
    %49 = vector.multi_reduction <add>, %48, %cst_26 [2] : vector<2x8x8xf32> to vector<2x8xf32>
    %50 = vector.shape_cast %49 : vector<2x8xf32> to vector<2x8x1xf32>
    %51 = tpu.reciprocal %50 {approx = true} : vector<2x8x1xf32> -> vector<2x8x1xf32>
    %52 = vector.broadcast %51 : vector<2x8x1xf32> to vector<2x8x8xf32>
    %53 = arith.mulf %48, %52 : vector<2x8x8xf32>
    %54 = vector.extract_strided_slice %21 {offsets = [0, 0, 8], sizes = [2, 8, 8], strides = [1, 1, 1]} : vector<2x8x32xf32> to vector<2x8x8xf32>
    "tpu.trace_start"() <{level = 10 : i32, message = "bqk,bke->bqe"}> : () -> ()
    %cst_27 = arith.constant dense<0.000000e+00> : vector<2x8x8xf32>
    %55 = tpu.matmul %53, %54, %cst_27 {dimension_numbers = #tpu.dot_dimension_numbers<[2], [1], [1], [2], [0, 0, 0, 1, 1, 2], [0], [0]>} : vector<2x8x8xf32>, vector<2x8x8xf32>, vector<2x8x8xf32> -> vector<2x8x8xf32>
    "tpu.trace_stop"() : () -> ()
    %56 = vector.extract_strided_slice %19 {offsets = [0, 0, 16], sizes = [2, 8, 8], strides = [1, 1, 1]} : vector<2x8x32xf32> to vector<2x8x8xf32>
    %cst_28 = arith.constant 0.353553385 : f32
    %57 = vector.broadcast %cst_28 : f32 to vector<2x8x8xf32>
    %58 = arith.mulf %56, %57 : vector<2x8x8xf32>
    %59 = vector.extract_strided_slice %20 {offsets = [0, 0, 16], sizes = [2, 8, 8], strides = [1, 1, 1]} : vector<2x8x32xf32> to vector<2x8x8xf32>
    "tpu.trace_start"() <{level = 10 : i32, message = "bqe,bke->bqk"}> : () -> ()
    %cst_29 = arith.constant dense<0.000000e+00> : vector<2x8x8xf32>
    %60 = tpu.matmul %58, %59, %cst_29 {dimension_numbers = #tpu.dot_dimension_numbers<[2], [2], [1], [1], [0, 0, 0, 1, 1, 1], [0], [0]>} : vector<2x8x8xf32>, vector<2x8x8xf32>, vector<2x8x8xf32> -> vector<2x8x8xf32>
    "tpu.trace_stop"() : () -> ()
    %cst_30 = arith.constant dense<0xFF800000> : vector<2x8xf32>
    %61 = vector.multi_reduction <maximumf>, %60, %cst_30 [2] : vector<2x8x8xf32> to vector<2x8xf32>
    %62 = vector.shape_cast %61 : vector<2x8xf32> to vector<2x8x1xf32>
    %63 = vector.broadcast %62 : vector<2x8x1xf32> to vector<2x8x8xf32>
    %64 = arith.subf %60, %63 : vector<2x8x8xf32>
    %65 = math.exp %64 : vector<2x8x8xf32>
    %cst_31 = arith.constant dense<0.000000e+00> : vector<2x8xf32>
    %66 = vector.multi_reduction <add>, %65, %cst_31 [2] : vector<2x8x8xf32> to vector<2x8xf32>
    %67 = vector.shape_cast %66 : vector<2x8xf32> to vector<2x8x1xf32>
    %68 = tpu.reciprocal %67 {approx = true} : vector<2x8x1xf32> -> vector<2x8x1xf32>
    %69 = vector.broadcast %68 : vector<2x8x1xf32> to vector<2x8x8xf32>
    %70 = arith.mulf %65, %69 : vector<2x8x8xf32>
    %71 = vector.extract_strided_slice %21 {offsets = [0, 0, 16], sizes = [2, 8, 8], strides = [1, 1, 1]} : vector<2x8x32xf32> to vector<2x8x8xf32>
    "tpu.trace_start"() <{level = 10 : i32, message = "bqk,bke->bqe"}> : () -> ()
    %cst_32 = arith.constant dense<0.000000e+00> : vector<2x8x8xf32>
    %72 = tpu.matmul %70, %71, %cst_32 {dimension_numbers = #tpu.dot_dimension_numbers<[2], [1], [1], [2], [0, 0, 0, 1, 1, 2], [0], [0]>} : vector<2x8x8xf32>, vector<2x8x8xf32>, vector<2x8x8xf32> -> vector<2x8x8xf32>
    "tpu.trace_stop"() : () -> ()
    %73 = vector.extract_strided_slice %19 {offsets = [0, 0, 24], sizes = [2, 8, 8], strides = [1, 1, 1]} : vector<2x8x32xf32> to vector<2x8x8xf32>
    %cst_33 = arith.constant 0.353553385 : f32
    %74 = vector.broadcast %cst_33 : f32 to vector<2x8x8xf32>
    %75 = arith.mulf %73, %74 : vector<2x8x8xf32>
    %76 = vector.extract_strided_slice %20 {offsets = [0, 0, 24], sizes = [2, 8, 8], strides = [1, 1, 1]} : vector<2x8x32xf32> to vector<2x8x8xf32>
    "tpu.trace_start"() <{level = 10 : i32, message = "bqe,bke->bqk"}> : () -> ()
    %cst_34 = arith.constant dense<0.000000e+00> : vector<2x8x8xf32>
    %77 = tpu.matmul %75, %76, %cst_34 {dimension_numbers = #tpu.dot_dimension_numbers<[2], [2], [1], [1], [0, 0, 0, 1, 1, 1], [0], [0]>} : vector<2x8x8xf32>, vector<2x8x8xf32>, vector<2x8x8xf32> -> vector<2x8x8xf32>
    "tpu.trace_stop"() : () -> ()
    %cst_35 = arith.constant dense<0xFF800000> : vector<2x8xf32>
    %78 = vector.multi_reduction <maximumf>, %77, %cst_35 [2] : vector<2x8x8xf32> to vector<2x8xf32>
    %79 = vector.shape_cast %78 : vector<2x8xf32> to vector<2x8x1xf32>
    %80 = vector.broadcast %79 : vector<2x8x1xf32> to vector<2x8x8xf32>
    %81 = arith.subf %77, %80 : vector<2x8x8xf32>
    %82 = math.exp %81 : vector<2x8x8xf32>
    %cst_36 = arith.constant dense<0.000000e+00> : vector<2x8xf32>
    %83 = vector.multi_reduction <add>, %82, %cst_36 [2] : vector<2x8x8xf32> to vector<2x8xf32>
    %84 = vector.shape_cast %83 : vector<2x8xf32> to vector<2x8x1xf32>
    %85 = tpu.reciprocal %84 {approx = true} : vector<2x8x1xf32> -> vector<2x8x1xf32>
    %86 = vector.broadcast %85 : vector<2x8x1xf32> to vector<2x8x8xf32>
    %87 = arith.mulf %82, %86 : vector<2x8x8xf32>
    %88 = vector.extract_strided_slice %21 {offsets = [0, 0, 24], sizes = [2, 8, 8], strides = [1, 1, 1]} : vector<2x8x32xf32> to vector<2x8x8xf32>
    "tpu.trace_start"() <{level = 10 : i32, message = "bqk,bke->bqe"}> : () -> ()
    %cst_37 = arith.constant dense<0.000000e+00> : vector<2x8x8xf32>
    %89 = tpu.matmul %87, %88, %cst_37 {dimension_numbers = #tpu.dot_dimension_numbers<[2], [1], [1], [2], [0, 0, 0, 1, 1, 2], [0], [0]>} : vector<2x8x8xf32>, vector<2x8x8xf32>, vector<2x8x8xf32> -> vector<2x8x8xf32>
    "tpu.trace_stop"() : () -> ()
    %90 = tpu.concatenate %38, %55, %72, %89 in 2 : vector<2x8x8xf32>, vector<2x8x8xf32>, vector<2x8x8xf32>, vector<2x8x8xf32> -> vector<2x8x32xf32>
    %91 = vector.shape_cast %90 : vector<2x8x32xf32> to vector<16x32xf32>
    %c1 = arith.constant 1 : index
    %c0_38 = arith.constant 0 : index
    %c0_39 = arith.constant 0 : index
    %92 = vector.load %arg7[%c1, %c0_38, %c0_39] : memref<12x32x32xf32, #tpu.memory_space<vmem>>, vector<1x32x32xf32>
    %93 = vector.shape_cast %92 : vector<1x32x32xf32> to vector<32x32xf32>
    %cst_40 = arith.constant dense<0.000000e+00> : vector<16x32xf32>
    %94 = tpu.matmul %91, %93, %cst_40 {dimension_numbers = #tpu.dot_dimension_numbers<[1], [0], [0], [1], [0, 0, 1, 1], [], []>} : vector<16x32xf32>, vector<32x32xf32>, vector<16x32xf32> -> vector<16x32xf32>
    %c1_41 = arith.constant 1 : index
    %c0_42 = arith.constant 0 : index
    %95 = vector.load %arg8[%c1_41, %c0_42] : memref<28x32xf32, #tpu.memory_space<vmem>>, vector<1x32xf32>
    %96 = vector.broadcast %95 : vector<1x32xf32> to vector<16x32xf32>
    %97 = arith.addf %94, %96 : vector<16x32xf32>
    %98 = arith.addf %0, %97 : vector<16x32xf32>
    %c7 = arith.constant 7 : index
    %c0_43 = arith.constant 0 : index
    %99 = vector.load %arg8[%c7, %c0_43] : memref<28x32xf32, #tpu.memory_space<vmem>>, vector<1x32xf32>
    %c8 = arith.constant 8 : index
    %c0_44 = arith.constant 0 : index
    %100 = vector.load %arg8[%c8, %c0_44] : memref<28x32xf32, #tpu.memory_space<vmem>>, vector<1x32xf32>
    %cst_45 = arith.constant dense<0.000000e+00> : vector<16xf32>
    %101 = vector.multi_reduction <add>, %98, %cst_45 [1] : vector<16x32xf32> to vector<16xf32>
    %102 = vector.shape_cast %101 : vector<16xf32> to vector<16x1xf32>
    %cst_46 = arith.constant 3.200000e+01 : f32
    %103 = vector.broadcast %cst_46 : f32 to vector<16x1xf32>
    %104 = arith.divf %102, %103 : vector<16x1xf32>
    %105 = arith.mulf %98, %98 : vector<16x32xf32>
    %cst_47 = arith.constant dense<0.000000e+00> : vector<16xf32>
    %106 = vector.multi_reduction <add>, %105, %cst_47 [1] : vector<16x32xf32> to vector<16xf32>
    %107 = vector.shape_cast %106 : vector<16xf32> to vector<16x1xf32>
    %cst_48 = arith.constant 3.200000e+01 : f32
    %108 = vector.broadcast %cst_48 : f32 to vector<16x1xf32>
    %109 = arith.divf %107, %108 : vector<16x1xf32>
    %110 = vector.broadcast %104 : vector<16x1xf32> to vector<16x32xf32>
    %111 = arith.subf %98, %110 : vector<16x32xf32>
    %112 = arith.mulf %104, %104 : vector<16x1xf32>
    %113 = arith.subf %109, %112 : vector<16x1xf32>
    %cst_49 = arith.constant 9.99999974E-6 : f32
    %114 = vector.broadcast %cst_49 : f32 to vector<16x1xf32>
    %115 = arith.addf %113, %114 : vector<16x1xf32>
    %116 = math.rsqrt %115 : vector<16x1xf32>
    %117 = vector.broadcast %116 : vector<16x1xf32> to vector<16x32xf32>
    %118 = arith.mulf %111, %117 : vector<16x32xf32>
    %119 = vector.broadcast %99 : vector<1x32xf32> to vector<16x32xf32>
    %120 = arith.mulf %118, %119 : vector<16x32xf32>
    %121 = vector.broadcast %100 : vector<1x32xf32> to vector<16x32xf32>
    %122 = arith.addf %120, %121 : vector<16x32xf32>
    %123 = arith.addf %122, %2 : vector<16x32xf32>
    %c2 = arith.constant 2 : index
    %c0_50 = arith.constant 0 : index
    %c0_51 = arith.constant 0 : index
    %124 = vector.load %arg7[%c2, %c0_50, %c0_51] : memref<12x32x32xf32, #tpu.memory_space<vmem>>, vector<1x32x32xf32>
    %125 = vector.shape_cast %124 : vector<1x32x32xf32> to vector<32x32xf32>
    %cst_52 = arith.constant dense<0.000000e+00> : vector<16x32xf32>
    %126 = tpu.matmul %123, %125, %cst_52 {dimension_numbers = #tpu.dot_dimension_numbers<[1], [0], [0], [1], [0, 0, 1, 1], [], []>} : vector<16x32xf32>, vector<32x32xf32>, vector<16x32xf32> -> vector<16x32xf32>
    %c2_53 = arith.constant 2 : index
    %c0_54 = arith.constant 0 : index
    %127 = vector.load %arg8[%c2_53, %c0_54] : memref<28x32xf32, #tpu.memory_space<vmem>>, vector<1x32xf32>
    %128 = vector.broadcast %127 : vector<1x32xf32> to vector<16x32xf32>
    %129 = arith.addf %126, %128 : vector<16x32xf32>
    %c3 = arith.constant 3 : index
    %c0_55 = arith.constant 0 : index
    %c0_56 = arith.constant 0 : index
    %130 = vector.load %arg7[%c3, %c0_55, %c0_56] : memref<12x32x32xf32, #tpu.memory_space<vmem>>, vector<1x32x32xf32>
    %131 = vector.shape_cast %130 : vector<1x32x32xf32> to vector<32x32xf32>
    %cst_57 = arith.constant dense<0.000000e+00> : vector<32x32xf32>
    %132 = tpu.matmul %4, %131, %cst_57 {dimension_numbers = #tpu.dot_dimension_numbers<[1], [0], [0], [1], [0, 0, 1, 1], [], []>} : vector<32x32xf32>, vector<32x32xf32>, vector<32x32xf32> -> vector<32x32xf32>
    %c3_58 = arith.constant 3 : index
    %c0_59 = arith.constant 0 : index
    %133 = vector.load %arg8[%c3_58, %c0_59] : memref<28x32xf32, #tpu.memory_space<vmem>>, vector<1x32xf32>
    %134 = vector.broadcast %133 : vector<1x32xf32> to vector<32x32xf32>
    %135 = arith.addf %132, %134 : vector<32x32xf32>
    %c4 = arith.constant 4 : index
    %c0_60 = arith.constant 0 : index
    %c0_61 = arith.constant 0 : index
    %136 = vector.load %arg7[%c4, %c0_60, %c0_61] : memref<12x32x32xf32, #tpu.memory_space<vmem>>, vector<1x32x32xf32>
    %137 = vector.shape_cast %136 : vector<1x32x32xf32> to vector<32x32xf32>
    %cst_62 = arith.constant dense<0.000000e+00> : vector<32x32xf32>
    %138 = tpu.matmul %1, %137, %cst_62 {dimension_numbers = #tpu.dot_dimension_numbers<[1], [0], [0], [1], [0, 0, 1, 1], [], []>} : vector<32x32xf32>, vector<32x32xf32>, vector<32x32xf32> -> vector<32x32xf32>
    %c4_63 = arith.constant 4 : index
    %c0_64 = arith.constant 0 : index
    %139 = vector.load %arg8[%c4_63, %c0_64] : memref<28x32xf32, #tpu.memory_space<vmem>>, vector<1x32xf32>
    %140 = vector.broadcast %139 : vector<1x32xf32> to vector<32x32xf32>
    %141 = arith.addf %138, %140 : vector<32x32xf32>
    %142 = vector.shape_cast %129 : vector<16x32xf32> to vector<2x8x32xf32>
    %143 = vector.shape_cast %135 : vector<32x32xf32> to vector<2x16x32xf32>
    %144 = vector.shape_cast %141 : vector<32x32xf32> to vector<2x16x32xf32>
    %145 = vector.extract_strided_slice %142 {offsets = [0, 0, 0], sizes = [2, 8, 8], strides = [1, 1, 1]} : vector<2x8x32xf32> to vector<2x8x8xf32>
    %cst_65 = arith.constant 0.353553385 : f32
    %146 = vector.broadcast %cst_65 : f32 to vector<2x8x8xf32>
    %147 = arith.mulf %145, %146 : vector<2x8x8xf32>
    %148 = vector.extract_strided_slice %143 {offsets = [0, 0, 0], sizes = [2, 16, 8], strides = [1, 1, 1]} : vector<2x16x32xf32> to vector<2x16x8xf32>
    "tpu.trace_start"() <{level = 10 : i32, message = "bqe,bke->bqk"}> : () -> ()
    %cst_66 = arith.constant dense<0.000000e+00> : vector<2x8x16xf32>
    %149 = tpu.matmul %147, %148, %cst_66 {dimension_numbers = #tpu.dot_dimension_numbers<[2], [2], [1], [1], [0, 0, 0, 1, 1, 1], [0], [0]>} : vector<2x8x8xf32>, vector<2x16x8xf32>, vector<2x8x16xf32> -> vector<2x8x16xf32>
    "tpu.trace_stop"() : () -> ()
    %cst_67 = arith.constant dense<0xFF800000> : vector<2x8xf32>
    %150 = vector.multi_reduction <maximumf>, %149, %cst_67 [2] : vector<2x8x16xf32> to vector<2x8xf32>
    %151 = vector.shape_cast %150 : vector<2x8xf32> to vector<2x8x1xf32>
    %152 = vector.broadcast %151 : vector<2x8x1xf32> to vector<2x8x16xf32>
    %153 = arith.subf %149, %152 : vector<2x8x16xf32>
    %154 = math.exp %153 : vector<2x8x16xf32>
    %cst_68 = arith.constant dense<0.000000e+00> : vector<2x8xf32>
    %155 = vector.multi_reduction <add>, %154, %cst_68 [2] : vector<2x8x16xf32> to vector<2x8xf32>
    %156 = vector.shape_cast %155 : vector<2x8xf32> to vector<2x8x1xf32>
    %157 = tpu.reciprocal %156 {approx = true} : vector<2x8x1xf32> -> vector<2x8x1xf32>
    %158 = vector.broadcast %157 : vector<2x8x1xf32> to vector<2x8x16xf32>
    %159 = arith.mulf %154, %158 : vector<2x8x16xf32>
    %160 = vector.extract_strided_slice %144 {offsets = [0, 0, 0], sizes = [2, 16, 8], strides = [1, 1, 1]} : vector<2x16x32xf32> to vector<2x16x8xf32>
    "tpu.trace_start"() <{level = 10 : i32, message = "bqk,bke->bqe"}> : () -> ()
    %cst_69 = arith.constant dense<0.000000e+00> : vector<2x8x8xf32>
    %161 = tpu.matmul %159, %160, %cst_69 {dimension_numbers = #tpu.dot_dimension_numbers<[2], [1], [1], [2], [0, 0, 0, 1, 1, 2], [0], [0]>} : vector<2x8x16xf32>, vector<2x16x8xf32>, vector<2x8x8xf32> -> vector<2x8x8xf32>
    "tpu.trace_stop"() : () -> ()
    %162 = vector.extract_strided_slice %142 {offsets = [0, 0, 8], sizes = [2, 8, 8], strides = [1, 1, 1]} : vector<2x8x32xf32> to vector<2x8x8xf32>
    %cst_70 = arith.constant 0.353553385 : f32
    %163 = vector.broadcast %cst_70 : f32 to vector<2x8x8xf32>
    %164 = arith.mulf %162, %163 : vector<2x8x8xf32>
    %165 = vector.extract_strided_slice %143 {offsets = [0, 0, 8], sizes = [2, 16, 8], strides = [1, 1, 1]} : vector<2x16x32xf32> to vector<2x16x8xf32>
    "tpu.trace_start"() <{level = 10 : i32, message = "bqe,bke->bqk"}> : () -> ()
    %cst_71 = arith.constant dense<0.000000e+00> : vector<2x8x16xf32>
    %166 = tpu.matmul %164, %165, %cst_71 {dimension_numbers = #tpu.dot_dimension_numbers<[2], [2], [1], [1], [0, 0, 0, 1, 1, 1], [0], [0]>} : vector<2x8x8xf32>, vector<2x16x8xf32>, vector<2x8x16xf32> -> vector<2x8x16xf32>
    "tpu.trace_stop"() : () -> ()
    %cst_72 = arith.constant dense<0xFF800000> : vector<2x8xf32>
    %167 = vector.multi_reduction <maximumf>, %166, %cst_72 [2] : vector<2x8x16xf32> to vector<2x8xf32>
    %168 = vector.shape_cast %167 : vector<2x8xf32> to vector<2x8x1xf32>
    %169 = vector.broadcast %168 : vector<2x8x1xf32> to vector<2x8x16xf32>
    %170 = arith.subf %166, %169 : vector<2x8x16xf32>
    %171 = math.exp %170 : vector<2x8x16xf32>
    %cst_73 = arith.constant dense<0.000000e+00> : vector<2x8xf32>
    %172 = vector.multi_reduction <add>, %171, %cst_73 [2] : vector<2x8x16xf32> to vector<2x8xf32>
    %173 = vector.shape_cast %172 : vector<2x8xf32> to vector<2x8x1xf32>
    %174 = tpu.reciprocal %173 {approx = true} : vector<2x8x1xf32> -> vector<2x8x1xf32>
    %175 = vector.broadcast %174 : vector<2x8x1xf32> to vector<2x8x16xf32>
    %176 = arith.mulf %171, %175 : vector<2x8x16xf32>
    %177 = vector.extract_strided_slice %144 {offsets = [0, 0, 8], sizes = [2, 16, 8], strides = [1, 1, 1]} : vector<2x16x32xf32> to vector<2x16x8xf32>
    "tpu.trace_start"() <{level = 10 : i32, message = "bqk,bke->bqe"}> : () -> ()
    %cst_74 = arith.constant dense<0.000000e+00> : vector<2x8x8xf32>
    %178 = tpu.matmul %176, %177, %cst_74 {dimension_numbers = #tpu.dot_dimension_numbers<[2], [1], [1], [2], [0, 0, 0, 1, 1, 2], [0], [0]>} : vector<2x8x16xf32>, vector<2x16x8xf32>, vector<2x8x8xf32> -> vector<2x8x8xf32>
    "tpu.trace_stop"() : () -> ()
    %179 = vector.extract_strided_slice %142 {offsets = [0, 0, 16], sizes = [2, 8, 8], strides = [1, 1, 1]} : vector<2x8x32xf32> to vector<2x8x8xf32>
    %cst_75 = arith.constant 0.353553385 : f32
    %180 = vector.broadcast %cst_75 : f32 to vector<2x8x8xf32>
    %181 = arith.mulf %179, %180 : vector<2x8x8xf32>
    %182 = vector.extract_strided_slice %143 {offsets = [0, 0, 16], sizes = [2, 16, 8], strides = [1, 1, 1]} : vector<2x16x32xf32> to vector<2x16x8xf32>
    "tpu.trace_start"() <{level = 10 : i32, message = "bqe,bke->bqk"}> : () -> ()
    %cst_76 = arith.constant dense<0.000000e+00> : vector<2x8x16xf32>
    %183 = tpu.matmul %181, %182, %cst_76 {dimension_numbers = #tpu.dot_dimension_numbers<[2], [2], [1], [1], [0, 0, 0, 1, 1, 1], [0], [0]>} : vector<2x8x8xf32>, vector<2x16x8xf32>, vector<2x8x16xf32> -> vector<2x8x16xf32>
    "tpu.trace_stop"() : () -> ()
    %cst_77 = arith.constant dense<0xFF800000> : vector<2x8xf32>
    %184 = vector.multi_reduction <maximumf>, %183, %cst_77 [2] : vector<2x8x16xf32> to vector<2x8xf32>
    %185 = vector.shape_cast %184 : vector<2x8xf32> to vector<2x8x1xf32>
    %186 = vector.broadcast %185 : vector<2x8x1xf32> to vector<2x8x16xf32>
    %187 = arith.subf %183, %186 : vector<2x8x16xf32>
    %188 = math.exp %187 : vector<2x8x16xf32>
    %cst_78 = arith.constant dense<0.000000e+00> : vector<2x8xf32>
    %189 = vector.multi_reduction <add>, %188, %cst_78 [2] : vector<2x8x16xf32> to vector<2x8xf32>
    %190 = vector.shape_cast %189 : vector<2x8xf32> to vector<2x8x1xf32>
    %191 = tpu.reciprocal %190 {approx = true} : vector<2x8x1xf32> -> vector<2x8x1xf32>
    %192 = vector.broadcast %191 : vector<2x8x1xf32> to vector<2x8x16xf32>
    %193 = arith.mulf %188, %192 : vector<2x8x16xf32>
    %194 = vector.extract_strided_slice %144 {offsets = [0, 0, 16], sizes = [2, 16, 8], strides = [1, 1, 1]} : vector<2x16x32xf32> to vector<2x16x8xf32>
    "tpu.trace_start"() <{level = 10 : i32, message = "bqk,bke->bqe"}> : () -> ()
    %cst_79 = arith.constant dense<0.000000e+00> : vector<2x8x8xf32>
    %195 = tpu.matmul %193, %194, %cst_79 {dimension_numbers = #tpu.dot_dimension_numbers<[2], [1], [1], [2], [0, 0, 0, 1, 1, 2], [0], [0]>} : vector<2x8x16xf32>, vector<2x16x8xf32>, vector<2x8x8xf32> -> vector<2x8x8xf32>
    "tpu.trace_stop"() : () -> ()
    %196 = vector.extract_strided_slice %142 {offsets = [0, 0, 24], sizes = [2, 8, 8], strides = [1, 1, 1]} : vector<2x8x32xf32> to vector<2x8x8xf32>
    %cst_80 = arith.constant 0.353553385 : f32
    %197 = vector.broadcast %cst_80 : f32 to vector<2x8x8xf32>
    %198 = arith.mulf %196, %197 : vector<2x8x8xf32>
    %199 = vector.extract_strided_slice %143 {offsets = [0, 0, 24], sizes = [2, 16, 8], strides = [1, 1, 1]} : vector<2x16x32xf32> to vector<2x16x8xf32>
    "tpu.trace_start"() <{level = 10 : i32, message = "bqe,bke->bqk"}> : () -> ()
    %cst_81 = arith.constant dense<0.000000e+00> : vector<2x8x16xf32>
    %200 = tpu.matmul %198, %199, %cst_81 {dimension_numbers = #tpu.dot_dimension_numbers<[2], [2], [1], [1], [0, 0, 0, 1, 1, 1], [0], [0]>} : vector<2x8x8xf32>, vector<2x16x8xf32>, vector<2x8x16xf32> -> vector<2x8x16xf32>
    "tpu.trace_stop"() : () -> ()
    %cst_82 = arith.constant dense<0xFF800000> : vector<2x8xf32>
    %201 = vector.multi_reduction <maximumf>, %200, %cst_82 [2] : vector<2x8x16xf32> to vector<2x8xf32>
    %202 = vector.shape_cast %201 : vector<2x8xf32> to vector<2x8x1xf32>
    %203 = vector.broadcast %202 : vector<2x8x1xf32> to vector<2x8x16xf32>
    %204 = arith.subf %200, %203 : vector<2x8x16xf32>
    %205 = math.exp %204 : vector<2x8x16xf32>
    %cst_83 = arith.constant dense<0.000000e+00> : vector<2x8xf32>
    %206 = vector.multi_reduction <add>, %205, %cst_83 [2] : vector<2x8x16xf32> to vector<2x8xf32>
    %207 = vector.shape_cast %206 : vector<2x8xf32> to vector<2x8x1xf32>
    %208 = tpu.reciprocal %207 {approx = true} : vector<2x8x1xf32> -> vector<2x8x1xf32>
    %209 = vector.broadcast %208 : vector<2x8x1xf32> to vector<2x8x16xf32>
    %210 = arith.mulf %205, %209 : vector<2x8x16xf32>
    %211 = vector.extract_strided_slice %144 {offsets = [0, 0, 24], sizes = [2, 16, 8], strides = [1, 1, 1]} : vector<2x16x32xf32> to vector<2x16x8xf32>
    "tpu.trace_start"() <{level = 10 : i32, message = "bqk,bke->bqe"}> : () -> ()
    %cst_84 = arith.constant dense<0.000000e+00> : vector<2x8x8xf32>
    %212 = tpu.matmul %210, %211, %cst_84 {dimension_numbers = #tpu.dot_dimension_numbers<[2], [1], [1], [2], [0, 0, 0, 1, 1, 2], [0], [0]>} : vector<2x8x16xf32>, vector<2x16x8xf32>, vector<2x8x8xf32> -> vector<2x8x8xf32>
    "tpu.trace_stop"() : () -> ()
    %213 = tpu.concatenate %161, %178, %195, %212 in 2 : vector<2x8x8xf32>, vector<2x8x8xf32>, vector<2x8x8xf32>, vector<2x8x8xf32> -> vector<2x8x32xf32>
    %214 = vector.shape_cast %213 : vector<2x8x32xf32> to vector<16x32xf32>
    %c5 = arith.constant 5 : index
    %c0_85 = arith.constant 0 : index
    %c0_86 = arith.constant 0 : index
    %215 = vector.load %arg7[%c5, %c0_85, %c0_86] : memref<12x32x32xf32, #tpu.memory_space<vmem>>, vector<1x32x32xf32>
    %216 = vector.shape_cast %215 : vector<1x32x32xf32> to vector<32x32xf32>
    %cst_87 = arith.constant dense<0.000000e+00> : vector<16x32xf32>
    %217 = tpu.matmul %214, %216, %cst_87 {dimension_numbers = #tpu.dot_dimension_numbers<[1], [0], [0], [1], [0, 0, 1, 1], [], []>} : vector<16x32xf32>, vector<32x32xf32>, vector<16x32xf32> -> vector<16x32xf32>
    %c5_88 = arith.constant 5 : index
    %c0_89 = arith.constant 0 : index
    %218 = vector.load %arg8[%c5_88, %c0_89] : memref<28x32xf32, #tpu.memory_space<vmem>>, vector<1x32xf32>
    %219 = vector.broadcast %218 : vector<1x32xf32> to vector<16x32xf32>
    %220 = arith.addf %217, %219 : vector<16x32xf32>
    %221 = arith.addf %122, %220 : vector<16x32xf32>
    %c9 = arith.constant 9 : index
    %c0_90 = arith.constant 0 : index
    %222 = vector.load %arg8[%c9, %c0_90] : memref<28x32xf32, #tpu.memory_space<vmem>>, vector<1x32xf32>
    %c10 = arith.constant 10 : index
    %c0_91 = arith.constant 0 : index
    %223 = vector.load %arg8[%c10, %c0_91] : memref<28x32xf32, #tpu.memory_space<vmem>>, vector<1x32xf32>
    %cst_92 = arith.constant dense<0.000000e+00> : vector<16xf32>
    %224 = vector.multi_reduction <add>, %221, %cst_92 [1] : vector<16x32xf32> to vector<16xf32>
    %225 = vector.shape_cast %224 : vector<16xf32> to vector<16x1xf32>
    %cst_93 = arith.constant 3.200000e+01 : f32
    %226 = vector.broadcast %cst_93 : f32 to vector<16x1xf32>
    %227 = arith.divf %225, %226 : vector<16x1xf32>
    %228 = arith.mulf %221, %221 : vector<16x32xf32>
    %cst_94 = arith.constant dense<0.000000e+00> : vector<16xf32>
    %229 = vector.multi_reduction <add>, %228, %cst_94 [1] : vector<16x32xf32> to vector<16xf32>
    %230 = vector.shape_cast %229 : vector<16xf32> to vector<16x1xf32>
    %cst_95 = arith.constant 3.200000e+01 : f32
    %231 = vector.broadcast %cst_95 : f32 to vector<16x1xf32>
    %232 = arith.divf %230, %231 : vector<16x1xf32>
    %233 = vector.broadcast %227 : vector<16x1xf32> to vector<16x32xf32>
    %234 = arith.subf %221, %233 : vector<16x32xf32>
    %235 = arith.mulf %227, %227 : vector<16x1xf32>
    %236 = arith.subf %232, %235 : vector<16x1xf32>
    %cst_96 = arith.constant 9.99999974E-6 : f32
    %237 = vector.broadcast %cst_96 : f32 to vector<16x1xf32>
    %238 = arith.addf %236, %237 : vector<16x1xf32>
    %239 = math.rsqrt %238 : vector<16x1xf32>
    %240 = vector.broadcast %239 : vector<16x1xf32> to vector<16x32xf32>
    %241 = arith.mulf %234, %240 : vector<16x32xf32>
    %242 = vector.broadcast %222 : vector<1x32xf32> to vector<16x32xf32>
    %243 = arith.mulf %241, %242 : vector<16x32xf32>
    %244 = vector.broadcast %223 : vector<1x32xf32> to vector<16x32xf32>
    %245 = arith.addf %243, %244 : vector<16x32xf32>
    %c0_97 = arith.constant 0 : index
    %c0_98 = arith.constant 0 : index
    %c0_99 = arith.constant 0 : index
    %246 = vector.load %arg9[%c0_97, %c0_98, %c0_99] : memref<2x32x64xf32, #tpu.memory_space<vmem>>, vector<1x32x64xf32>
    %247 = vector.shape_cast %246 : vector<1x32x64xf32> to vector<32x64xf32>
    %cst_100 = arith.constant dense<0.000000e+00> : vector<16x64xf32>
    %248 = tpu.matmul %245, %247, %cst_100 {dimension_numbers = #tpu.dot_dimension_numbers<[1], [0], [0], [1], [0, 0, 1, 1], [], []>} : vector<16x32xf32>, vector<32x64xf32>, vector<16x64xf32> -> vector<16x64xf32>
    %c0_101 = arith.constant 0 : index
    %c0_102 = arith.constant 0 : index
    %249 = vector.load %arg10[%c0_101, %c0_102] : memref<2x64xf32, #tpu.memory_space<vmem>>, vector<1x64xf32>
    %250 = vector.broadcast %249 : vector<1x64xf32> to vector<16x64xf32>
    %251 = arith.addf %248, %250 : vector<16x64xf32>
    %cst_103 = arith.constant 0.000000e+00 : f32
    %252 = vector.broadcast %cst_103 : f32 to vector<16x64xf32>
    %253 = arith.maximumf %251, %252 : vector<16x64xf32>
    %c0_104 = arith.constant 0 : index
    %c0_105 = arith.constant 0 : index
    %c0_106 = arith.constant 0 : index
    %254 = vector.load %arg11[%c0_104, %c0_105, %c0_106] : memref<2x64x32xf32, #tpu.memory_space<vmem>>, vector<1x64x32xf32>
    %255 = vector.shape_cast %254 : vector<1x64x32xf32> to vector<64x32xf32>
    %cst_107 = arith.constant dense<0.000000e+00> : vector<16x32xf32>
    %256 = tpu.matmul %253, %255, %cst_107 {dimension_numbers = #tpu.dot_dimension_numbers<[1], [0], [0], [1], [0, 0, 1, 1], [], []>} : vector<16x64xf32>, vector<64x32xf32>, vector<16x32xf32> -> vector<16x32xf32>
    %c6 = arith.constant 6 : index
    %c0_108 = arith.constant 0 : index
    %257 = vector.load %arg8[%c6, %c0_108] : memref<28x32xf32, #tpu.memory_space<vmem>>, vector<1x32xf32>
    %258 = vector.broadcast %257 : vector<1x32xf32> to vector<16x32xf32>
    %259 = arith.addf %256, %258 : vector<16x32xf32>
    %260 = arith.addf %245, %259 : vector<16x32xf32>
    %c11 = arith.constant 11 : index
    %c0_109 = arith.constant 0 : index
    %261 = vector.load %arg8[%c11, %c0_109] : memref<28x32xf32, #tpu.memory_space<vmem>>, vector<1x32xf32>
    %c12 = arith.constant 12 : index
    %c0_110 = arith.constant 0 : index
    %262 = vector.load %arg8[%c12, %c0_110] : memref<28x32xf32, #tpu.memory_space<vmem>>, vector<1x32xf32>
    %cst_111 = arith.constant dense<0.000000e+00> : vector<16xf32>
    %263 = vector.multi_reduction <add>, %260, %cst_111 [1] : vector<16x32xf32> to vector<16xf32>
    %264 = vector.shape_cast %263 : vector<16xf32> to vector<16x1xf32>
    %cst_112 = arith.constant 3.200000e+01 : f32
    %265 = vector.broadcast %cst_112 : f32 to vector<16x1xf32>
    %266 = arith.divf %264, %265 : vector<16x1xf32>
    %267 = arith.mulf %260, %260 : vector<16x32xf32>
    %cst_113 = arith.constant dense<0.000000e+00> : vector<16xf32>
    %268 = vector.multi_reduction <add>, %267, %cst_113 [1] : vector<16x32xf32> to vector<16xf32>
    %269 = vector.shape_cast %268 : vector<16xf32> to vector<16x1xf32>
    %cst_114 = arith.constant 3.200000e+01 : f32
    %270 = vector.broadcast %cst_114 : f32 to vector<16x1xf32>
    %271 = arith.divf %269, %270 : vector<16x1xf32>
    %272 = vector.broadcast %266 : vector<16x1xf32> to vector<16x32xf32>
    %273 = arith.subf %260, %272 : vector<16x32xf32>
    %274 = arith.mulf %266, %266 : vector<16x1xf32>
    %275 = arith.subf %271, %274 : vector<16x1xf32>
    %cst_115 = arith.constant 9.99999974E-6 : f32
    %276 = vector.broadcast %cst_115 : f32 to vector<16x1xf32>
    %277 = arith.addf %275, %276 : vector<16x1xf32>
    %278 = math.rsqrt %277 : vector<16x1xf32>
    %279 = vector.broadcast %278 : vector<16x1xf32> to vector<16x32xf32>
    %280 = arith.mulf %273, %279 : vector<16x32xf32>
    %281 = vector.broadcast %261 : vector<1x32xf32> to vector<16x32xf32>
    %282 = arith.mulf %280, %281 : vector<16x32xf32>
    %283 = vector.broadcast %262 : vector<1x32xf32> to vector<16x32xf32>
    %284 = arith.addf %282, %283 : vector<16x32xf32>
    %285 = arith.addf %284, %2 : vector<16x32xf32>
    %c1_116 = arith.constant 1 : index
    %c0_117 = arith.constant 0 : index
    %c0_118 = arith.constant 0 : index
    %286 = vector.load %arg5[%c1_116, %c0_117, %c0_118] : memref<2x32x64xf32, #tpu.memory_space<vmem>>, vector<1x32x64xf32>
    %287 = vector.shape_cast %286 : vector<1x32x64xf32> to vector<32x64xf32>
    %cst_119 = arith.constant dense<0.000000e+00> : vector<16x64xf32>
    %288 = tpu.matmul %285, %287, %cst_119 {dimension_numbers = #tpu.dot_dimension_numbers<[1], [0], [0], [1], [0, 0, 1, 1], [], []>} : vector<16x32xf32>, vector<32x64xf32>, vector<16x64xf32> -> vector<16x64xf32>
    %c1_120 = arith.constant 1 : index
    %c0_121 = arith.constant 0 : index
    %289 = vector.load %arg6[%c1_120, %c0_121] : memref<2x64xf32, #tpu.memory_space<vmem>>, vector<1x64xf32>
    %290 = vector.broadcast %289 : vector<1x64xf32> to vector<16x64xf32>
    %291 = arith.addf %288, %290 : vector<16x64xf32>
    %c6_122 = arith.constant 6 : index
    %c0_123 = arith.constant 0 : index
    %c0_124 = arith.constant 0 : index
    %292 = vector.load %arg7[%c6_122, %c0_123, %c0_124] : memref<12x32x32xf32, #tpu.memory_space<vmem>>, vector<1x32x32xf32>
    %293 = vector.shape_cast %292 : vector<1x32x32xf32> to vector<32x32xf32>
    %cst_125 = arith.constant dense<0.000000e+00> : vector<16x32xf32>
    %294 = tpu.matmul %284, %293, %cst_125 {dimension_numbers = #tpu.dot_dimension_numbers<[1], [0], [0], [1], [0, 0, 1, 1], [], []>} : vector<16x32xf32>, vector<32x32xf32>, vector<16x32xf32> -> vector<16x32xf32>
    %c13 = arith.constant 13 : index
    %c0_126 = arith.constant 0 : index
    %295 = vector.load %arg8[%c13, %c0_126] : memref<28x32xf32, #tpu.memory_space<vmem>>, vector<1x32xf32>
    %296 = vector.broadcast %295 : vector<1x32xf32> to vector<16x32xf32>
    %297 = arith.addf %294, %296 : vector<16x32xf32>
    %298 = vector.shape_cast %291 : vector<16x64xf32> to vector<2x8x64xf32>
    %299 = vector.extract_strided_slice %298 {offsets = [0, 0, 0], sizes = [2, 8, 32], strides = [1, 1, 1]} : vector<2x8x64xf32> to vector<2x8x32xf32>
    %300 = vector.extract_strided_slice %298 {offsets = [0, 0, 32], sizes = [2, 8, 32], strides = [1, 1, 1]} : vector<2x8x64xf32> to vector<2x8x32xf32>
    %301 = vector.shape_cast %297 : vector<16x32xf32> to vector<2x8x32xf32>
    %302 = vector.extract_strided_slice %299 {offsets = [0, 0, 0], sizes = [2, 8, 8], strides = [1, 1, 1]} : vector<2x8x32xf32> to vector<2x8x8xf32>
    %cst_127 = arith.constant 0.353553385 : f32
    %303 = vector.broadcast %cst_127 : f32 to vector<2x8x8xf32>
    %304 = arith.mulf %302, %303 : vector<2x8x8xf32>
    %305 = vector.extract_strided_slice %300 {offsets = [0, 0, 0], sizes = [2, 8, 8], strides = [1, 1, 1]} : vector<2x8x32xf32> to vector<2x8x8xf32>
    "tpu.trace_start"() <{level = 10 : i32, message = "bqe,bke->bqk"}> : () -> ()
    %cst_128 = arith.constant dense<0.000000e+00> : vector<2x8x8xf32>
    %306 = tpu.matmul %304, %305, %cst_128 {dimension_numbers = #tpu.dot_dimension_numbers<[2], [2], [1], [1], [0, 0, 0, 1, 1, 1], [0], [0]>} : vector<2x8x8xf32>, vector<2x8x8xf32>, vector<2x8x8xf32> -> vector<2x8x8xf32>
    "tpu.trace_stop"() : () -> ()
    %cst_129 = arith.constant dense<0xFF800000> : vector<2x8xf32>
    %307 = vector.multi_reduction <maximumf>, %306, %cst_129 [2] : vector<2x8x8xf32> to vector<2x8xf32>
    %308 = vector.shape_cast %307 : vector<2x8xf32> to vector<2x8x1xf32>
    %309 = vector.broadcast %308 : vector<2x8x1xf32> to vector<2x8x8xf32>
    %310 = arith.subf %306, %309 : vector<2x8x8xf32>
    %311 = math.exp %310 : vector<2x8x8xf32>
    %cst_130 = arith.constant dense<0.000000e+00> : vector<2x8xf32>
    %312 = vector.multi_reduction <add>, %311, %cst_130 [2] : vector<2x8x8xf32> to vector<2x8xf32>
    %313 = vector.shape_cast %312 : vector<2x8xf32> to vector<2x8x1xf32>
    %314 = tpu.reciprocal %313 {approx = true} : vector<2x8x1xf32> -> vector<2x8x1xf32>
    %315 = vector.broadcast %314 : vector<2x8x1xf32> to vector<2x8x8xf32>
    %316 = arith.mulf %311, %315 : vector<2x8x8xf32>
    %317 = vector.extract_strided_slice %301 {offsets = [0, 0, 0], sizes = [2, 8, 8], strides = [1, 1, 1]} : vector<2x8x32xf32> to vector<2x8x8xf32>
    "tpu.trace_start"() <{level = 10 : i32, message = "bqk,bke->bqe"}> : () -> ()
    %cst_131 = arith.constant dense<0.000000e+00> : vector<2x8x8xf32>
    %318 = tpu.matmul %316, %317, %cst_131 {dimension_numbers = #tpu.dot_dimension_numbers<[2], [1], [1], [2], [0, 0, 0, 1, 1, 2], [0], [0]>} : vector<2x8x8xf32>, vector<2x8x8xf32>, vector<2x8x8xf32> -> vector<2x8x8xf32>
    "tpu.trace_stop"() : () -> ()
    %319 = vector.extract_strided_slice %299 {offsets = [0, 0, 8], sizes = [2, 8, 8], strides = [1, 1, 1]} : vector<2x8x32xf32> to vector<2x8x8xf32>
    %cst_132 = arith.constant 0.353553385 : f32
    %320 = vector.broadcast %cst_132 : f32 to vector<2x8x8xf32>
    %321 = arith.mulf %319, %320 : vector<2x8x8xf32>
    %322 = vector.extract_strided_slice %300 {offsets = [0, 0, 8], sizes = [2, 8, 8], strides = [1, 1, 1]} : vector<2x8x32xf32> to vector<2x8x8xf32>
    "tpu.trace_start"() <{level = 10 : i32, message = "bqe,bke->bqk"}> : () -> ()
    %cst_133 = arith.constant dense<0.000000e+00> : vector<2x8x8xf32>
    %323 = tpu.matmul %321, %322, %cst_133 {dimension_numbers = #tpu.dot_dimension_numbers<[2], [2], [1], [1], [0, 0, 0, 1, 1, 1], [0], [0]>} : vector<2x8x8xf32>, vector<2x8x8xf32>, vector<2x8x8xf32> -> vector<2x8x8xf32>
    "tpu.trace_stop"() : () -> ()
    %cst_134 = arith.constant dense<0xFF800000> : vector<2x8xf32>
    %324 = vector.multi_reduction <maximumf>, %323, %cst_134 [2] : vector<2x8x8xf32> to vector<2x8xf32>
    %325 = vector.shape_cast %324 : vector<2x8xf32> to vector<2x8x1xf32>
    %326 = vector.broadcast %325 : vector<2x8x1xf32> to vector<2x8x8xf32>
    %327 = arith.subf %323, %326 : vector<2x8x8xf32>
    %328 = math.exp %327 : vector<2x8x8xf32>
    %cst_135 = arith.constant dense<0.000000e+00> : vector<2x8xf32>
    %329 = vector.multi_reduction <add>, %328, %cst_135 [2] : vector<2x8x8xf32> to vector<2x8xf32>
    %330 = vector.shape_cast %329 : vector<2x8xf32> to vector<2x8x1xf32>
    %331 = tpu.reciprocal %330 {approx = true} : vector<2x8x1xf32> -> vector<2x8x1xf32>
    %332 = vector.broadcast %331 : vector<2x8x1xf32> to vector<2x8x8xf32>
    %333 = arith.mulf %328, %332 : vector<2x8x8xf32>
    %334 = vector.extract_strided_slice %301 {offsets = [0, 0, 8], sizes = [2, 8, 8], strides = [1, 1, 1]} : vector<2x8x32xf32> to vector<2x8x8xf32>
    "tpu.trace_start"() <{level = 10 : i32, message = "bqk,bke->bqe"}> : () -> ()
    %cst_136 = arith.constant dense<0.000000e+00> : vector<2x8x8xf32>
    %335 = tpu.matmul %333, %334, %cst_136 {dimension_numbers = #tpu.dot_dimension_numbers<[2], [1], [1], [2], [0, 0, 0, 1, 1, 2], [0], [0]>} : vector<2x8x8xf32>, vector<2x8x8xf32>, vector<2x8x8xf32> -> vector<2x8x8xf32>
    "tpu.trace_stop"() : () -> ()
    %336 = vector.extract_strided_slice %299 {offsets = [0, 0, 16], sizes = [2, 8, 8], strides = [1, 1, 1]} : vector<2x8x32xf32> to vector<2x8x8xf32>
    %cst_137 = arith.constant 0.353553385 : f32
    %337 = vector.broadcast %cst_137 : f32 to vector<2x8x8xf32>
    %338 = arith.mulf %336, %337 : vector<2x8x8xf32>
    %339 = vector.extract_strided_slice %300 {offsets = [0, 0, 16], sizes = [2, 8, 8], strides = [1, 1, 1]} : vector<2x8x32xf32> to vector<2x8x8xf32>
    "tpu.trace_start"() <{level = 10 : i32, message = "bqe,bke->bqk"}> : () -> ()
    %cst_138 = arith.constant dense<0.000000e+00> : vector<2x8x8xf32>
    %340 = tpu.matmul %338, %339, %cst_138 {dimension_numbers = #tpu.dot_dimension_numbers<[2], [2], [1], [1], [0, 0, 0, 1, 1, 1], [0], [0]>} : vector<2x8x8xf32>, vector<2x8x8xf32>, vector<2x8x8xf32> -> vector<2x8x8xf32>
    "tpu.trace_stop"() : () -> ()
    %cst_139 = arith.constant dense<0xFF800000> : vector<2x8xf32>
    %341 = vector.multi_reduction <maximumf>, %340, %cst_139 [2] : vector<2x8x8xf32> to vector<2x8xf32>
    %342 = vector.shape_cast %341 : vector<2x8xf32> to vector<2x8x1xf32>
    %343 = vector.broadcast %342 : vector<2x8x1xf32> to vector<2x8x8xf32>
    %344 = arith.subf %340, %343 : vector<2x8x8xf32>
    %345 = math.exp %344 : vector<2x8x8xf32>
    %cst_140 = arith.constant dense<0.000000e+00> : vector<2x8xf32>
    %346 = vector.multi_reduction <add>, %345, %cst_140 [2] : vector<2x8x8xf32> to vector<2x8xf32>
    %347 = vector.shape_cast %346 : vector<2x8xf32> to vector<2x8x1xf32>
    %348 = tpu.reciprocal %347 {approx = true} : vector<2x8x1xf32> -> vector<2x8x1xf32>
    %349 = vector.broadcast %348 : vector<2x8x1xf32> to vector<2x8x8xf32>
    %350 = arith.mulf %345, %349 : vector<2x8x8xf32>
    %351 = vector.extract_strided_slice %301 {offsets = [0, 0, 16], sizes = [2, 8, 8], strides = [1, 1, 1]} : vector<2x8x32xf32> to vector<2x8x8xf32>
    "tpu.trace_start"() <{level = 10 : i32, message = "bqk,bke->bqe"}> : () -> ()
    %cst_141 = arith.constant dense<0.000000e+00> : vector<2x8x8xf32>
    %352 = tpu.matmul %350, %351, %cst_141 {dimension_numbers = #tpu.dot_dimension_numbers<[2], [1], [1], [2], [0, 0, 0, 1, 1, 2], [0], [0]>} : vector<2x8x8xf32>, vector<2x8x8xf32>, vector<2x8x8xf32> -> vector<2x8x8xf32>
    "tpu.trace_stop"() : () -> ()
    %353 = vector.extract_strided_slice %299 {offsets = [0, 0, 24], sizes = [2, 8, 8], strides = [1, 1, 1]} : vector<2x8x32xf32> to vector<2x8x8xf32>
    %cst_142 = arith.constant 0.353553385 : f32
    %354 = vector.broadcast %cst_142 : f32 to vector<2x8x8xf32>
    %355 = arith.mulf %353, %354 : vector<2x8x8xf32>
    %356 = vector.extract_strided_slice %300 {offsets = [0, 0, 24], sizes = [2, 8, 8], strides = [1, 1, 1]} : vector<2x8x32xf32> to vector<2x8x8xf32>
    "tpu.trace_start"() <{level = 10 : i32, message = "bqe,bke->bqk"}> : () -> ()
    %cst_143 = arith.constant dense<0.000000e+00> : vector<2x8x8xf32>
    %357 = tpu.matmul %355, %356, %cst_143 {dimension_numbers = #tpu.dot_dimension_numbers<[2], [2], [1], [1], [0, 0, 0, 1, 1, 1], [0], [0]>} : vector<2x8x8xf32>, vector<2x8x8xf32>, vector<2x8x8xf32> -> vector<2x8x8xf32>
    "tpu.trace_stop"() : () -> ()
    %cst_144 = arith.constant dense<0xFF800000> : vector<2x8xf32>
    %358 = vector.multi_reduction <maximumf>, %357, %cst_144 [2] : vector<2x8x8xf32> to vector<2x8xf32>
    %359 = vector.shape_cast %358 : vector<2x8xf32> to vector<2x8x1xf32>
    %360 = vector.broadcast %359 : vector<2x8x1xf32> to vector<2x8x8xf32>
    %361 = arith.subf %357, %360 : vector<2x8x8xf32>
    %362 = math.exp %361 : vector<2x8x8xf32>
    %cst_145 = arith.constant dense<0.000000e+00> : vector<2x8xf32>
    %363 = vector.multi_reduction <add>, %362, %cst_145 [2] : vector<2x8x8xf32> to vector<2x8xf32>
    %364 = vector.shape_cast %363 : vector<2x8xf32> to vector<2x8x1xf32>
    %365 = tpu.reciprocal %364 {approx = true} : vector<2x8x1xf32> -> vector<2x8x1xf32>
    %366 = vector.broadcast %365 : vector<2x8x1xf32> to vector<2x8x8xf32>
    %367 = arith.mulf %362, %366 : vector<2x8x8xf32>
    %368 = vector.extract_strided_slice %301 {offsets = [0, 0, 24], sizes = [2, 8, 8], strides = [1, 1, 1]} : vector<2x8x32xf32> to vector<2x8x8xf32>
    "tpu.trace_start"() <{level = 10 : i32, message = "bqk,bke->bqe"}> : () -> ()
    %cst_146 = arith.constant dense<0.000000e+00> : vector<2x8x8xf32>
    %369 = tpu.matmul %367, %368, %cst_146 {dimension_numbers = #tpu.dot_dimension_numbers<[2], [1], [1], [2], [0, 0, 0, 1, 1, 2], [0], [0]>} : vector<2x8x8xf32>, vector<2x8x8xf32>, vector<2x8x8xf32> -> vector<2x8x8xf32>
    "tpu.trace_stop"() : () -> ()
    %370 = tpu.concatenate %318, %335, %352, %369 in 2 : vector<2x8x8xf32>, vector<2x8x8xf32>, vector<2x8x8xf32>, vector<2x8x8xf32> -> vector<2x8x32xf32>
    %371 = vector.shape_cast %370 : vector<2x8x32xf32> to vector<16x32xf32>
    %c7_147 = arith.constant 7 : index
    %c0_148 = arith.constant 0 : index
    %c0_149 = arith.constant 0 : index
    %372 = vector.load %arg7[%c7_147, %c0_148, %c0_149] : memref<12x32x32xf32, #tpu.memory_space<vmem>>, vector<1x32x32xf32>
    %373 = vector.shape_cast %372 : vector<1x32x32xf32> to vector<32x32xf32>
    %cst_150 = arith.constant dense<0.000000e+00> : vector<16x32xf32>
    %374 = tpu.matmul %371, %373, %cst_150 {dimension_numbers = #tpu.dot_dimension_numbers<[1], [0], [0], [1], [0, 0, 1, 1], [], []>} : vector<16x32xf32>, vector<32x32xf32>, vector<16x32xf32> -> vector<16x32xf32>
    %c14 = arith.constant 14 : index
    %c0_151 = arith.constant 0 : index
    %375 = vector.load %arg8[%c14, %c0_151] : memref<28x32xf32, #tpu.memory_space<vmem>>, vector<1x32xf32>
    %376 = vector.broadcast %375 : vector<1x32xf32> to vector<16x32xf32>
    %377 = arith.addf %374, %376 : vector<16x32xf32>
    %378 = arith.addf %284, %377 : vector<16x32xf32>
    %c20 = arith.constant 20 : index
    %c0_152 = arith.constant 0 : index
    %379 = vector.load %arg8[%c20, %c0_152] : memref<28x32xf32, #tpu.memory_space<vmem>>, vector<1x32xf32>
    %c21 = arith.constant 21 : index
    %c0_153 = arith.constant 0 : index
    %380 = vector.load %arg8[%c21, %c0_153] : memref<28x32xf32, #tpu.memory_space<vmem>>, vector<1x32xf32>
    %cst_154 = arith.constant dense<0.000000e+00> : vector<16xf32>
    %381 = vector.multi_reduction <add>, %378, %cst_154 [1] : vector<16x32xf32> to vector<16xf32>
    %382 = vector.shape_cast %381 : vector<16xf32> to vector<16x1xf32>
    %cst_155 = arith.constant 3.200000e+01 : f32
    %383 = vector.broadcast %cst_155 : f32 to vector<16x1xf32>
    %384 = arith.divf %382, %383 : vector<16x1xf32>
    %385 = arith.mulf %378, %378 : vector<16x32xf32>
    %cst_156 = arith.constant dense<0.000000e+00> : vector<16xf32>
    %386 = vector.multi_reduction <add>, %385, %cst_156 [1] : vector<16x32xf32> to vector<16xf32>
    %387 = vector.shape_cast %386 : vector<16xf32> to vector<16x1xf32>
    %cst_157 = arith.constant 3.200000e+01 : f32
    %388 = vector.broadcast %cst_157 : f32 to vector<16x1xf32>
    %389 = arith.divf %387, %388 : vector<16x1xf32>
    %390 = vector.broadcast %384 : vector<16x1xf32> to vector<16x32xf32>
    %391 = arith.subf %378, %390 : vector<16x32xf32>
    %392 = arith.mulf %384, %384 : vector<16x1xf32>
    %393 = arith.subf %389, %392 : vector<16x1xf32>
    %cst_158 = arith.constant 9.99999974E-6 : f32
    %394 = vector.broadcast %cst_158 : f32 to vector<16x1xf32>
    %395 = arith.addf %393, %394 : vector<16x1xf32>
    %396 = math.rsqrt %395 : vector<16x1xf32>
    %397 = vector.broadcast %396 : vector<16x1xf32> to vector<16x32xf32>
    %398 = arith.mulf %391, %397 : vector<16x32xf32>
    %399 = vector.broadcast %379 : vector<1x32xf32> to vector<16x32xf32>
    %400 = arith.mulf %398, %399 : vector<16x32xf32>
    %401 = vector.broadcast %380 : vector<1x32xf32> to vector<16x32xf32>
    %402 = arith.addf %400, %401 : vector<16x32xf32>
    %403 = arith.addf %402, %2 : vector<16x32xf32>
    %c8_159 = arith.constant 8 : index
    %c0_160 = arith.constant 0 : index
    %c0_161 = arith.constant 0 : index
    %404 = vector.load %arg7[%c8_159, %c0_160, %c0_161] : memref<12x32x32xf32, #tpu.memory_space<vmem>>, vector<1x32x32xf32>
    %405 = vector.shape_cast %404 : vector<1x32x32xf32> to vector<32x32xf32>
    %cst_162 = arith.constant dense<0.000000e+00> : vector<16x32xf32>
    %406 = tpu.matmul %403, %405, %cst_162 {dimension_numbers = #tpu.dot_dimension_numbers<[1], [0], [0], [1], [0, 0, 1, 1], [], []>} : vector<16x32xf32>, vector<32x32xf32>, vector<16x32xf32> -> vector<16x32xf32>
    %c15 = arith.constant 15 : index
    %c0_163 = arith.constant 0 : index
    %407 = vector.load %arg8[%c15, %c0_163] : memref<28x32xf32, #tpu.memory_space<vmem>>, vector<1x32xf32>
    %408 = vector.broadcast %407 : vector<1x32xf32> to vector<16x32xf32>
    %409 = arith.addf %406, %408 : vector<16x32xf32>
    %c9_164 = arith.constant 9 : index
    %c0_165 = arith.constant 0 : index
    %c0_166 = arith.constant 0 : index
    %410 = vector.load %arg7[%c9_164, %c0_165, %c0_166] : memref<12x32x32xf32, #tpu.memory_space<vmem>>, vector<1x32x32xf32>
    %411 = vector.shape_cast %410 : vector<1x32x32xf32> to vector<32x32xf32>
    %cst_167 = arith.constant dense<0.000000e+00> : vector<32x32xf32>
    %412 = tpu.matmul %4, %411, %cst_167 {dimension_numbers = #tpu.dot_dimension_numbers<[1], [0], [0], [1], [0, 0, 1, 1], [], []>} : vector<32x32xf32>, vector<32x32xf32>, vector<32x32xf32> -> vector<32x32xf32>
    %c16 = arith.constant 16 : index
    %c0_168 = arith.constant 0 : index
    %413 = vector.load %arg8[%c16, %c0_168] : memref<28x32xf32, #tpu.memory_space<vmem>>, vector<1x32xf32>
    %414 = vector.broadcast %413 : vector<1x32xf32> to vector<32x32xf32>
    %415 = arith.addf %412, %414 : vector<32x32xf32>
    %c10_169 = arith.constant 10 : index
    %c0_170 = arith.constant 0 : index
    %c0_171 = arith.constant 0 : index
    %416 = vector.load %arg7[%c10_169, %c0_170, %c0_171] : memref<12x32x32xf32, #tpu.memory_space<vmem>>, vector<1x32x32xf32>
    %417 = vector.shape_cast %416 : vector<1x32x32xf32> to vector<32x32xf32>
    %cst_172 = arith.constant dense<0.000000e+00> : vector<32x32xf32>
    %418 = tpu.matmul %1, %417, %cst_172 {dimension_numbers = #tpu.dot_dimension_numbers<[1], [0], [0], [1], [0, 0, 1, 1], [], []>} : vector<32x32xf32>, vector<32x32xf32>, vector<32x32xf32> -> vector<32x32xf32>
    %c17 = arith.constant 17 : index
    %c0_173 = arith.constant 0 : index
    %419 = vector.load %arg8[%c17, %c0_173] : memref<28x32xf32, #tpu.memory_space<vmem>>, vector<1x32xf32>
    %420 = vector.broadcast %419 : vector<1x32xf32> to vector<32x32xf32>
    %421 = arith.addf %418, %420 : vector<32x32xf32>
    %422 = vector.shape_cast %409 : vector<16x32xf32> to vector<2x8x32xf32>
    %423 = vector.shape_cast %415 : vector<32x32xf32> to vector<2x16x32xf32>
    %424 = vector.shape_cast %421 : vector<32x32xf32> to vector<2x16x32xf32>
    %425 = vector.extract_strided_slice %422 {offsets = [0, 0, 0], sizes = [2, 8, 8], strides = [1, 1, 1]} : vector<2x8x32xf32> to vector<2x8x8xf32>
    %cst_174 = arith.constant 0.353553385 : f32
    %426 = vector.broadcast %cst_174 : f32 to vector<2x8x8xf32>
    %427 = arith.mulf %425, %426 : vector<2x8x8xf32>
    %428 = vector.extract_strided_slice %423 {offsets = [0, 0, 0], sizes = [2, 16, 8], strides = [1, 1, 1]} : vector<2x16x32xf32> to vector<2x16x8xf32>
    "tpu.trace_start"() <{level = 10 : i32, message = "bqe,bke->bqk"}> : () -> ()
    %cst_175 = arith.constant dense<0.000000e+00> : vector<2x8x16xf32>
    %429 = tpu.matmul %427, %428, %cst_175 {dimension_numbers = #tpu.dot_dimension_numbers<[2], [2], [1], [1], [0, 0, 0, 1, 1, 1], [0], [0]>} : vector<2x8x8xf32>, vector<2x16x8xf32>, vector<2x8x16xf32> -> vector<2x8x16xf32>
    "tpu.trace_stop"() : () -> ()
    %cst_176 = arith.constant dense<0xFF800000> : vector<2x8xf32>
    %430 = vector.multi_reduction <maximumf>, %429, %cst_176 [2] : vector<2x8x16xf32> to vector<2x8xf32>
    %431 = vector.shape_cast %430 : vector<2x8xf32> to vector<2x8x1xf32>
    %432 = vector.broadcast %431 : vector<2x8x1xf32> to vector<2x8x16xf32>
    %433 = arith.subf %429, %432 : vector<2x8x16xf32>
    %434 = math.exp %433 : vector<2x8x16xf32>
    %cst_177 = arith.constant dense<0.000000e+00> : vector<2x8xf32>
    %435 = vector.multi_reduction <add>, %434, %cst_177 [2] : vector<2x8x16xf32> to vector<2x8xf32>
    %436 = vector.shape_cast %435 : vector<2x8xf32> to vector<2x8x1xf32>
    %437 = tpu.reciprocal %436 {approx = true} : vector<2x8x1xf32> -> vector<2x8x1xf32>
    %438 = vector.broadcast %437 : vector<2x8x1xf32> to vector<2x8x16xf32>
    %439 = arith.mulf %434, %438 : vector<2x8x16xf32>
    %440 = vector.extract_strided_slice %424 {offsets = [0, 0, 0], sizes = [2, 16, 8], strides = [1, 1, 1]} : vector<2x16x32xf32> to vector<2x16x8xf32>
    "tpu.trace_start"() <{level = 10 : i32, message = "bqk,bke->bqe"}> : () -> ()
    %cst_178 = arith.constant dense<0.000000e+00> : vector<2x8x8xf32>
    %441 = tpu.matmul %439, %440, %cst_178 {dimension_numbers = #tpu.dot_dimension_numbers<[2], [1], [1], [2], [0, 0, 0, 1, 1, 2], [0], [0]>} : vector<2x8x16xf32>, vector<2x16x8xf32>, vector<2x8x8xf32> -> vector<2x8x8xf32>
    "tpu.trace_stop"() : () -> ()
    %442 = vector.extract_strided_slice %422 {offsets = [0, 0, 8], sizes = [2, 8, 8], strides = [1, 1, 1]} : vector<2x8x32xf32> to vector<2x8x8xf32>
    %cst_179 = arith.constant 0.353553385 : f32
    %443 = vector.broadcast %cst_179 : f32 to vector<2x8x8xf32>
    %444 = arith.mulf %442, %443 : vector<2x8x8xf32>
    %445 = vector.extract_strided_slice %423 {offsets = [0, 0, 8], sizes = [2, 16, 8], strides = [1, 1, 1]} : vector<2x16x32xf32> to vector<2x16x8xf32>
    "tpu.trace_start"() <{level = 10 : i32, message = "bqe,bke->bqk"}> : () -> ()
    %cst_180 = arith.constant dense<0.000000e+00> : vector<2x8x16xf32>
    %446 = tpu.matmul %444, %445, %cst_180 {dimension_numbers = #tpu.dot_dimension_numbers<[2], [2], [1], [1], [0, 0, 0, 1, 1, 1], [0], [0]>} : vector<2x8x8xf32>, vector<2x16x8xf32>, vector<2x8x16xf32> -> vector<2x8x16xf32>
    "tpu.trace_stop"() : () -> ()
    %cst_181 = arith.constant dense<0xFF800000> : vector<2x8xf32>
    %447 = vector.multi_reduction <maximumf>, %446, %cst_181 [2] : vector<2x8x16xf32> to vector<2x8xf32>
    %448 = vector.shape_cast %447 : vector<2x8xf32> to vector<2x8x1xf32>
    %449 = vector.broadcast %448 : vector<2x8x1xf32> to vector<2x8x16xf32>
    %450 = arith.subf %446, %449 : vector<2x8x16xf32>
    %451 = math.exp %450 : vector<2x8x16xf32>
    %cst_182 = arith.constant dense<0.000000e+00> : vector<2x8xf32>
    %452 = vector.multi_reduction <add>, %451, %cst_182 [2] : vector<2x8x16xf32> to vector<2x8xf32>
    %453 = vector.shape_cast %452 : vector<2x8xf32> to vector<2x8x1xf32>
    %454 = tpu.reciprocal %453 {approx = true} : vector<2x8x1xf32> -> vector<2x8x1xf32>
    %455 = vector.broadcast %454 : vector<2x8x1xf32> to vector<2x8x16xf32>
    %456 = arith.mulf %451, %455 : vector<2x8x16xf32>
    %457 = vector.extract_strided_slice %424 {offsets = [0, 0, 8], sizes = [2, 16, 8], strides = [1, 1, 1]} : vector<2x16x32xf32> to vector<2x16x8xf32>
    "tpu.trace_start"() <{level = 10 : i32, message = "bqk,bke->bqe"}> : () -> ()
    %cst_183 = arith.constant dense<0.000000e+00> : vector<2x8x8xf32>
    %458 = tpu.matmul %456, %457, %cst_183 {dimension_numbers = #tpu.dot_dimension_numbers<[2], [1], [1], [2], [0, 0, 0, 1, 1, 2], [0], [0]>} : vector<2x8x16xf32>, vector<2x16x8xf32>, vector<2x8x8xf32> -> vector<2x8x8xf32>
    "tpu.trace_stop"() : () -> ()
    %459 = vector.extract_strided_slice %422 {offsets = [0, 0, 16], sizes = [2, 8, 8], strides = [1, 1, 1]} : vector<2x8x32xf32> to vector<2x8x8xf32>
    %cst_184 = arith.constant 0.353553385 : f32
    %460 = vector.broadcast %cst_184 : f32 to vector<2x8x8xf32>
    %461 = arith.mulf %459, %460 : vector<2x8x8xf32>
    %462 = vector.extract_strided_slice %423 {offsets = [0, 0, 16], sizes = [2, 16, 8], strides = [1, 1, 1]} : vector<2x16x32xf32> to vector<2x16x8xf32>
    "tpu.trace_start"() <{level = 10 : i32, message = "bqe,bke->bqk"}> : () -> ()
    %cst_185 = arith.constant dense<0.000000e+00> : vector<2x8x16xf32>
    %463 = tpu.matmul %461, %462, %cst_185 {dimension_numbers = #tpu.dot_dimension_numbers<[2], [2], [1], [1], [0, 0, 0, 1, 1, 1], [0], [0]>} : vector<2x8x8xf32>, vector<2x16x8xf32>, vector<2x8x16xf32> -> vector<2x8x16xf32>
    "tpu.trace_stop"() : () -> ()
    %cst_186 = arith.constant dense<0xFF800000> : vector<2x8xf32>
    %464 = vector.multi_reduction <maximumf>, %463, %cst_186 [2] : vector<2x8x16xf32> to vector<2x8xf32>
    %465 = vector.shape_cast %464 : vector<2x8xf32> to vector<2x8x1xf32>
    %466 = vector.broadcast %465 : vector<2x8x1xf32> to vector<2x8x16xf32>
    %467 = arith.subf %463, %466 : vector<2x8x16xf32>
    %468 = math.exp %467 : vector<2x8x16xf32>
    %cst_187 = arith.constant dense<0.000000e+00> : vector<2x8xf32>
    %469 = vector.multi_reduction <add>, %468, %cst_187 [2] : vector<2x8x16xf32> to vector<2x8xf32>
    %470 = vector.shape_cast %469 : vector<2x8xf32> to vector<2x8x1xf32>
    %471 = tpu.reciprocal %470 {approx = true} : vector<2x8x1xf32> -> vector<2x8x1xf32>
    %472 = vector.broadcast %471 : vector<2x8x1xf32> to vector<2x8x16xf32>
    %473 = arith.mulf %468, %472 : vector<2x8x16xf32>
    %474 = vector.extract_strided_slice %424 {offsets = [0, 0, 16], sizes = [2, 16, 8], strides = [1, 1, 1]} : vector<2x16x32xf32> to vector<2x16x8xf32>
    "tpu.trace_start"() <{level = 10 : i32, message = "bqk,bke->bqe"}> : () -> ()
    %cst_188 = arith.constant dense<0.000000e+00> : vector<2x8x8xf32>
    %475 = tpu.matmul %473, %474, %cst_188 {dimension_numbers = #tpu.dot_dimension_numbers<[2], [1], [1], [2], [0, 0, 0, 1, 1, 2], [0], [0]>} : vector<2x8x16xf32>, vector<2x16x8xf32>, vector<2x8x8xf32> -> vector<2x8x8xf32>
    "tpu.trace_stop"() : () -> ()
    %476 = vector.extract_strided_slice %422 {offsets = [0, 0, 24], sizes = [2, 8, 8], strides = [1, 1, 1]} : vector<2x8x32xf32> to vector<2x8x8xf32>
    %cst_189 = arith.constant 0.353553385 : f32
    %477 = vector.broadcast %cst_189 : f32 to vector<2x8x8xf32>
    %478 = arith.mulf %476, %477 : vector<2x8x8xf32>
    %479 = vector.extract_strided_slice %423 {offsets = [0, 0, 24], sizes = [2, 16, 8], strides = [1, 1, 1]} : vector<2x16x32xf32> to vector<2x16x8xf32>
    "tpu.trace_start"() <{level = 10 : i32, message = "bqe,bke->bqk"}> : () -> ()
    %cst_190 = arith.constant dense<0.000000e+00> : vector<2x8x16xf32>
    %480 = tpu.matmul %478, %479, %cst_190 {dimension_numbers = #tpu.dot_dimension_numbers<[2], [2], [1], [1], [0, 0, 0, 1, 1, 1], [0], [0]>} : vector<2x8x8xf32>, vector<2x16x8xf32>, vector<2x8x16xf32> -> vector<2x8x16xf32>
    "tpu.trace_stop"() : () -> ()
    %cst_191 = arith.constant dense<0xFF800000> : vector<2x8xf32>
    %481 = vector.multi_reduction <maximumf>, %480, %cst_191 [2] : vector<2x8x16xf32> to vector<2x8xf32>
    %482 = vector.shape_cast %481 : vector<2x8xf32> to vector<2x8x1xf32>
    %483 = vector.broadcast %482 : vector<2x8x1xf32> to vector<2x8x16xf32>
    %484 = arith.subf %480, %483 : vector<2x8x16xf32>
    %485 = math.exp %484 : vector<2x8x16xf32>
    %cst_192 = arith.constant dense<0.000000e+00> : vector<2x8xf32>
    %486 = vector.multi_reduction <add>, %485, %cst_192 [2] : vector<2x8x16xf32> to vector<2x8xf32>
    %487 = vector.shape_cast %486 : vector<2x8xf32> to vector<2x8x1xf32>
    %488 = tpu.reciprocal %487 {approx = true} : vector<2x8x1xf32> -> vector<2x8x1xf32>
    %489 = vector.broadcast %488 : vector<2x8x1xf32> to vector<2x8x16xf32>
    %490 = arith.mulf %485, %489 : vector<2x8x16xf32>
    %491 = vector.extract_strided_slice %424 {offsets = [0, 0, 24], sizes = [2, 16, 8], strides = [1, 1, 1]} : vector<2x16x32xf32> to vector<2x16x8xf32>
    "tpu.trace_start"() <{level = 10 : i32, message = "bqk,bke->bqe"}> : () -> ()
    %cst_193 = arith.constant dense<0.000000e+00> : vector<2x8x8xf32>
    %492 = tpu.matmul %490, %491, %cst_193 {dimension_numbers = #tpu.dot_dimension_numbers<[2], [1], [1], [2], [0, 0, 0, 1, 1, 2], [0], [0]>} : vector<2x8x16xf32>, vector<2x16x8xf32>, vector<2x8x8xf32> -> vector<2x8x8xf32>
    "tpu.trace_stop"() : () -> ()
    %493 = tpu.concatenate %441, %458, %475, %492 in 2 : vector<2x8x8xf32>, vector<2x8x8xf32>, vector<2x8x8xf32>, vector<2x8x8xf32> -> vector<2x8x32xf32>
    %494 = vector.shape_cast %493 : vector<2x8x32xf32> to vector<16x32xf32>
    %c11_194 = arith.constant 11 : index
    %c0_195 = arith.constant 0 : index
    %c0_196 = arith.constant 0 : index
    %495 = vector.load %arg7[%c11_194, %c0_195, %c0_196] : memref<12x32x32xf32, #tpu.memory_space<vmem>>, vector<1x32x32xf32>
    %496 = vector.shape_cast %495 : vector<1x32x32xf32> to vector<32x32xf32>
    %cst_197 = arith.constant dense<0.000000e+00> : vector<16x32xf32>
    %497 = tpu.matmul %494, %496, %cst_197 {dimension_numbers = #tpu.dot_dimension_numbers<[1], [0], [0], [1], [0, 0, 1, 1], [], []>} : vector<16x32xf32>, vector<32x32xf32>, vector<16x32xf32> -> vector<16x32xf32>
    %c18 = arith.constant 18 : index
    %c0_198 = arith.constant 0 : index
    %498 = vector.load %arg8[%c18, %c0_198] : memref<28x32xf32, #tpu.memory_space<vmem>>, vector<1x32xf32>
    %499 = vector.broadcast %498 : vector<1x32xf32> to vector<16x32xf32>
    %500 = arith.addf %497, %499 : vector<16x32xf32>
    %501 = arith.addf %402, %500 : vector<16x32xf32>
    %c22 = arith.constant 22 : index
    %c0_199 = arith.constant 0 : index
    %502 = vector.load %arg8[%c22, %c0_199] : memref<28x32xf32, #tpu.memory_space<vmem>>, vector<1x32xf32>
    %c23 = arith.constant 23 : index
    %c0_200 = arith.constant 0 : index
    %503 = vector.load %arg8[%c23, %c0_200] : memref<28x32xf32, #tpu.memory_space<vmem>>, vector<1x32xf32>
    %cst_201 = arith.constant dense<0.000000e+00> : vector<16xf32>
    %504 = vector.multi_reduction <add>, %501, %cst_201 [1] : vector<16x32xf32> to vector<16xf32>
    %505 = vector.shape_cast %504 : vector<16xf32> to vector<16x1xf32>
    %cst_202 = arith.constant 3.200000e+01 : f32
    %506 = vector.broadcast %cst_202 : f32 to vector<16x1xf32>
    %507 = arith.divf %505, %506 : vector<16x1xf32>
    %508 = arith.mulf %501, %501 : vector<16x32xf32>
    %cst_203 = arith.constant dense<0.000000e+00> : vector<16xf32>
    %509 = vector.multi_reduction <add>, %508, %cst_203 [1] : vector<16x32xf32> to vector<16xf32>
    %510 = vector.shape_cast %509 : vector<16xf32> to vector<16x1xf32>
    %cst_204 = arith.constant 3.200000e+01 : f32
    %511 = vector.broadcast %cst_204 : f32 to vector<16x1xf32>
    %512 = arith.divf %510, %511 : vector<16x1xf32>
    %513 = vector.broadcast %507 : vector<16x1xf32> to vector<16x32xf32>
    %514 = arith.subf %501, %513 : vector<16x32xf32>
    %515 = arith.mulf %507, %507 : vector<16x1xf32>
    %516 = arith.subf %512, %515 : vector<16x1xf32>
    %cst_205 = arith.constant 9.99999974E-6 : f32
    %517 = vector.broadcast %cst_205 : f32 to vector<16x1xf32>
    %518 = arith.addf %516, %517 : vector<16x1xf32>
    %519 = math.rsqrt %518 : vector<16x1xf32>
    %520 = vector.broadcast %519 : vector<16x1xf32> to vector<16x32xf32>
    %521 = arith.mulf %514, %520 : vector<16x32xf32>
    %522 = vector.broadcast %502 : vector<1x32xf32> to vector<16x32xf32>
    %523 = arith.mulf %521, %522 : vector<16x32xf32>
    %524 = vector.broadcast %503 : vector<1x32xf32> to vector<16x32xf32>
    %525 = arith.addf %523, %524 : vector<16x32xf32>
    %c1_206 = arith.constant 1 : index
    %c0_207 = arith.constant 0 : index
    %c0_208 = arith.constant 0 : index
    %526 = vector.load %arg9[%c1_206, %c0_207, %c0_208] : memref<2x32x64xf32, #tpu.memory_space<vmem>>, vector<1x32x64xf32>
    %527 = vector.shape_cast %526 : vector<1x32x64xf32> to vector<32x64xf32>
    %cst_209 = arith.constant dense<0.000000e+00> : vector<16x64xf32>
    %528 = tpu.matmul %525, %527, %cst_209 {dimension_numbers = #tpu.dot_dimension_numbers<[1], [0], [0], [1], [0, 0, 1, 1], [], []>} : vector<16x32xf32>, vector<32x64xf32>, vector<16x64xf32> -> vector<16x64xf32>
    %c1_210 = arith.constant 1 : index
    %c0_211 = arith.constant 0 : index
    %529 = vector.load %arg10[%c1_210, %c0_211] : memref<2x64xf32, #tpu.memory_space<vmem>>, vector<1x64xf32>
    %530 = vector.broadcast %529 : vector<1x64xf32> to vector<16x64xf32>
    %531 = arith.addf %528, %530 : vector<16x64xf32>
    %cst_212 = arith.constant 0.000000e+00 : f32
    %532 = vector.broadcast %cst_212 : f32 to vector<16x64xf32>
    %533 = arith.maximumf %531, %532 : vector<16x64xf32>
    %c1_213 = arith.constant 1 : index
    %c0_214 = arith.constant 0 : index
    %c0_215 = arith.constant 0 : index
    %534 = vector.load %arg11[%c1_213, %c0_214, %c0_215] : memref<2x64x32xf32, #tpu.memory_space<vmem>>, vector<1x64x32xf32>
    %535 = vector.shape_cast %534 : vector<1x64x32xf32> to vector<64x32xf32>
    %cst_216 = arith.constant dense<0.000000e+00> : vector<16x32xf32>
    %536 = tpu.matmul %533, %535, %cst_216 {dimension_numbers = #tpu.dot_dimension_numbers<[1], [0], [0], [1], [0, 0, 1, 1], [], []>} : vector<16x64xf32>, vector<64x32xf32>, vector<16x32xf32> -> vector<16x32xf32>
    %c19 = arith.constant 19 : index
    %c0_217 = arith.constant 0 : index
    %537 = vector.load %arg8[%c19, %c0_217] : memref<28x32xf32, #tpu.memory_space<vmem>>, vector<1x32xf32>
    %538 = vector.broadcast %537 : vector<1x32xf32> to vector<16x32xf32>
    %539 = arith.addf %536, %538 : vector<16x32xf32>
    %540 = arith.addf %525, %539 : vector<16x32xf32>
    %c24 = arith.constant 24 : index
    %c0_218 = arith.constant 0 : index
    %541 = vector.load %arg8[%c24, %c0_218] : memref<28x32xf32, #tpu.memory_space<vmem>>, vector<1x32xf32>
    %c25 = arith.constant 25 : index
    %c0_219 = arith.constant 0 : index
    %542 = vector.load %arg8[%c25, %c0_219] : memref<28x32xf32, #tpu.memory_space<vmem>>, vector<1x32xf32>
    %cst_220 = arith.constant dense<0.000000e+00> : vector<16xf32>
    %543 = vector.multi_reduction <add>, %540, %cst_220 [1] : vector<16x32xf32> to vector<16xf32>
    %544 = vector.shape_cast %543 : vector<16xf32> to vector<16x1xf32>
    %cst_221 = arith.constant 3.200000e+01 : f32
    %545 = vector.broadcast %cst_221 : f32 to vector<16x1xf32>
    %546 = arith.divf %544, %545 : vector<16x1xf32>
    %547 = arith.mulf %540, %540 : vector<16x32xf32>
    %cst_222 = arith.constant dense<0.000000e+00> : vector<16xf32>
    %548 = vector.multi_reduction <add>, %547, %cst_222 [1] : vector<16x32xf32> to vector<16xf32>
    %549 = vector.shape_cast %548 : vector<16xf32> to vector<16x1xf32>
    %cst_223 = arith.constant 3.200000e+01 : f32
    %550 = vector.broadcast %cst_223 : f32 to vector<16x1xf32>
    %551 = arith.divf %549, %550 : vector<16x1xf32>
    %552 = vector.broadcast %546 : vector<16x1xf32> to vector<16x32xf32>
    %553 = arith.subf %540, %552 : vector<16x32xf32>
    %554 = arith.mulf %546, %546 : vector<16x1xf32>
    %555 = arith.subf %551, %554 : vector<16x1xf32>
    %cst_224 = arith.constant 9.99999974E-6 : f32
    %556 = vector.broadcast %cst_224 : f32 to vector<16x1xf32>
    %557 = arith.addf %555, %556 : vector<16x1xf32>
    %558 = math.rsqrt %557 : vector<16x1xf32>
    %559 = vector.broadcast %558 : vector<16x1xf32> to vector<16x32xf32>
    %560 = arith.mulf %553, %559 : vector<16x32xf32>
    %561 = vector.broadcast %541 : vector<1x32xf32> to vector<16x32xf32>
    %562 = arith.mulf %560, %561 : vector<16x32xf32>
    %563 = vector.broadcast %542 : vector<1x32xf32> to vector<16x32xf32>
    %564 = arith.addf %562, %563 : vector<16x32xf32>
    %c26 = arith.constant 26 : index
    %c0_225 = arith.constant 0 : index
    %565 = vector.load %arg8[%c26, %c0_225] : memref<28x32xf32, #tpu.memory_space<vmem>>, vector<1x32xf32>
    %c27 = arith.constant 27 : index
    %c0_226 = arith.constant 0 : index
    %566 = vector.load %arg8[%c27, %c0_226] : memref<28x32xf32, #tpu.memory_space<vmem>>, vector<1x32xf32>
    %cst_227 = arith.constant dense<0.000000e+00> : vector<16xf32>
    %567 = vector.multi_reduction <add>, %564, %cst_227 [1] : vector<16x32xf32> to vector<16xf32>
    %568 = vector.shape_cast %567 : vector<16xf32> to vector<16x1xf32>
    %cst_228 = arith.constant 3.200000e+01 : f32
    %569 = vector.broadcast %cst_228 : f32 to vector<16x1xf32>
    %570 = arith.divf %568, %569 : vector<16x1xf32>
    %571 = arith.mulf %564, %564 : vector<16x32xf32>
    %cst_229 = arith.constant dense<0.000000e+00> : vector<16xf32>
    %572 = vector.multi_reduction <add>, %571, %cst_229 [1] : vector<16x32xf32> to vector<16xf32>
    %573 = vector.shape_cast %572 : vector<16xf32> to vector<16x1xf32>
    %cst_230 = arith.constant 3.200000e+01 : f32
    %574 = vector.broadcast %cst_230 : f32 to vector<16x1xf32>
    %575 = arith.divf %573, %574 : vector<16x1xf32>
    %576 = vector.broadcast %570 : vector<16x1xf32> to vector<16x32xf32>
    %577 = arith.subf %564, %576 : vector<16x32xf32>
    %578 = arith.mulf %570, %570 : vector<16x1xf32>
    %579 = arith.subf %575, %578 : vector<16x1xf32>
    %cst_231 = arith.constant 9.99999974E-6 : f32
    %580 = vector.broadcast %cst_231 : f32 to vector<16x1xf32>
    %581 = arith.addf %579, %580 : vector<16x1xf32>
    %582 = math.rsqrt %581 : vector<16x1xf32>
    %583 = vector.broadcast %582 : vector<16x1xf32> to vector<16x32xf32>
    %584 = arith.mulf %577, %583 : vector<16x32xf32>
    %585 = vector.broadcast %565 : vector<1x32xf32> to vector<16x32xf32>
    %586 = arith.mulf %584, %585 : vector<16x32xf32>
    %587 = vector.broadcast %566 : vector<1x32xf32> to vector<16x32xf32>
    %588 = arith.addf %586, %587 : vector<16x32xf32>
    %c0_232 = arith.constant 0 : index
    %c0_233 = arith.constant 0 : index
    %589 = vector.load %arg12[%c0_232, %c0_233] : memref<16x32xf32, #tpu.memory_space<vmem>>, vector<16x32xf32>
    tpu.vector_store %arg12[%c0_232, %c0_233], %588 {strides = array<i32>} : memref<16x32xf32, #tpu.memory_space<vmem>>, vector<16x32xf32>,
    return
  }
  func.func @transform_0(%arg0: i32) -> (i32, i32) {
    %c0_i32 = arith.constant 0 : i32
    %c0_i32_0 = arith.constant 0 : i32
    return %arg0, %c0_i32 : i32, i32
  }
  func.func @transform_1(%arg0: i32) -> (i32, i32) {
    %c0_i32 = arith.constant 0 : i32
    %c0_i32_0 = arith.constant 0 : i32
    return %arg0, %c0_i32 : i32, i32
  }
  func.func @transform_2(%arg0: i32) -> (i32, i32) {
    %c0_i32 = arith.constant 0 : i32
    %c0_i32_0 = arith.constant 0 : i32
    return %arg0, %c0_i32 : i32, i32
  }
  func.func @transform_3(%arg0: i32) -> (i32, i32) {
    %c0_i32 = arith.constant 0 : i32
    %c0_i32_0 = arith.constant 0 : i32
    return %arg0, %c0_i32 : i32, i32
  }
  func.func @transform_4(%arg0: i32) -> (i32, i32, i32) {
    %c0_i32 = arith.constant 0 : i32
    %c0_i32_0 = arith.constant 0 : i32
    %c0_i32_1 = arith.constant 0 : i32
    %c0_i32_2 = arith.constant 0 : i32
    return %c0_i32, %c0_i32_0, %c0_i32_1 : i32, i32, i32
  }
  func.func @transform_5(%arg0: i32) -> (i32, i32) {
    %c0_i32 = arith.constant 0 : i32
    %c0_i32_0 = arith.constant 0 : i32
    %c0_i32_1 = arith.constant 0 : i32
    return %c0_i32, %c0_i32_0 : i32, i32
  }
  func.func @transform_6(%arg0: i32) -> (i32, i32, i32) {
    %c0_i32 = arith.constant 0 : i32
    %c0_i32_0 = arith.constant 0 : i32
    %c0_i32_1 = arith.constant 0 : i32
    %c0_i32_2 = arith.constant 0 : i32
    return %c0_i32, %c0_i32_0, %c0_i32_1 : i32, i32, i32
  }
  func.func @transform_7(%arg0: i32) -> (i32, i32) {
    %c0_i32 = arith.constant 0 : i32
    %c0_i32_0 = arith.constant 0 : i32
    %c0_i32_1 = arith.constant 0 : i32
    return %c0_i32, %c0_i32_0 : i32, i32
  }
  func.func @transform_8(%arg0: i32) -> (i32, i32, i32) {
    %c0_i32 = arith.constant 0 : i32
    %c0_i32_0 = arith.constant 0 : i32
    %c0_i32_1 = arith.constant 0 : i32
    %c0_i32_2 = arith.constant 0 : i32
    return %c0_i32, %c0_i32_0, %c0_i32_1 : i32, i32, i32
  }
  func.func @transform_9(%arg0: i32) -> (i32, i32) {
    %c0_i32 = arith.constant 0 : i32
    %c0_i32_0 = arith.constant 0 : i32
    %c0_i32_1 = arith.constant 0 : i32
    return %c0_i32, %c0_i32_0 : i32, i32
  }
  func.func @transform_10(%arg0: i32) -> (i32, i32, i32) {
    %c0_i32 = arith.constant 0 : i32
    %c0_i32_0 = arith.constant 0 : i32
    %c0_i32_1 = arith.constant 0 : i32
    %c0_i32_2 = arith.constant 0 : i32
    return %c0_i32, %c0_i32_0, %c0_i32_1 : i32, i32, i32
  }
  func.func @transform_11(%arg0: i32) -> (i32, i32) {
    %c0_i32 = arith.constant 0 : i32
    %c0_i32_0 = arith.constant 0 : i32
    return %arg0, %c0_i32 : i32, i32
  }
}

</mosaic_0001>

<llo_original>
// kernel: _lambda_.1
$region0: #{_lambda_.1}
  #allocation0 [shape = 'u32[]', space=smem, size = 0x4, offset = 0x4, fixed_abs, tag = 'smem constant byte address 0x4 - core index']
  #allocation1 [shape = 'u32[72,128]{1,0:T(1,128)}', space=vmem, size = 0x9000, scoped, tag = 'internal scratch']
  %s0 = inlined_call_operand.vmem [shape: f32[16,32], index: 0, kind: input, shape index: {}]
  %s1 = inlined_call_operand.vmem [shape: f32[32,32], index: 1, kind: input, shape index: {}]
  %s2 = inlined_call_operand.vmem [shape: f32[16,32], index: 2, kind: input, shape index: {}]
  %s3 = inlined_call_operand.vmem [shape: f32[32,32], index: 3, kind: input, shape index: {}]
  %s4 = inlined_call_operand.vmem [shape: f32[2,32,64], index: 4, kind: input, shape index: {}]
  %s5 = inlined_call_operand.vmem [shape: f32[2,64], index: 5, kind: input, shape index: {}]
  %s6 = inlined_call_operand.hbm [shape: f32[12,32,32], index: 6, kind: input, shape index: {}]
  %s7 = inlined_call_operand.vmem [shape: f32[28,32], index: 7, kind: input, shape index: {}]
  %s8 = inlined_call_operand.vmem [shape: f32[2,32,64], index: 8, kind: input, shape index: {}]
  %s9 = inlined_call_operand.vmem [shape: f32[2,64], index: 9, kind: input, shape index: {}]
  %s10 = inlined_call_operand.vmem [shape: f32[2,64,32], index: 10, kind: input, shape index: {}]
  %s11 = inlined_call_operand.vmem [shape: f32[16,32], index: 11, kind: output, shape index: {}]
  %s12 = sld [smem:[#allocation0]]
  $region58: #{_lambda_.1} parent=0
    _
  %s14 = ssub.s32 1, %s12
  %s15 = scalar_select 0, %s14, %s12
  $region1: #{_lambda_.1} parent=0
    #allocation2 [shape = 'u8[196608]{0}', space=vmem, size = 0x30000, scoped, tag = 'input window, operand 6, single buffered']
    #allocation3 [shape = 's32[1]{0}', space=sflag, size = 0x4, scoped, tag = 'scoped memory for _lambda_.1']
    %16 = vsyncpa [#allocation3], 0
    // Predicated region
    $region2: #{_lambda_.1} parent=1 // pred_check
      _
    $region3: #{_lambda_.1} parent=1 // pred_check_branch
      %18 = sbr.rel (0) target = $region5
    $region4: #{_lambda_.1} parent=1 // pred_region
      _
    $region5: #{_lambda_.1} parent=1 // pred_fallthru
      _
    // Predicated region
    $region6: #{_lambda_.1} parent=1 // pred_check
      _
    $region7: #{_lambda_.1} parent=1 // pred_check_branch
      %20 = sbr.rel (0) target = $region9
    $region8: #{_lambda_.1} parent=1 // pred_region
      _
    $region9: #{_lambda_.1} parent=1 // pred_fallthru
      _
    // Predicated region
    $region10: #{_lambda_.1} parent=1 // pred_check
      _
    $region11: #{_lambda_.1} parent=1 // pred_check_branch
      %22 = sbr.rel (0) target = $region13
    $region12: #{_lambda_.1} parent=1 // pred_region
      _
    $region13: #{_lambda_.1} parent=1 // pred_fallthru
      _
    // Predicated region
    $region14: #{_lambda_.1} parent=1 // pred_check
      _
    $region15: #{_lambda_.1} parent=1 // pred_check_branch
      %24 = sbr.rel (0) target = $region17
    $region16: #{_lambda_.1} parent=1 // pred_region
      _
    $region17: #{_lambda_.1} parent=1 // pred_fallthru
      _
    // Predicated region
    $region18: #{_lambda_.1} parent=1 // pred_check
      _
    $region19: #{_lambda_.1} parent=1 // pred_check_branch
      %26 = sbr.rel (0) target = $region21
    $region20: #{_lambda_.1} parent=1 // pred_region
      _
    $region21: #{_lambda_.1} parent=1 // pred_fallthru
      _
    // Predicated region
    $region22: #{_lambda_.1} parent=1 // pred_check
      _
    $region23: #{_lambda_.1} parent=1 // pred_check_branch
      %28 = sbr.rel (0) target = $region25
    $region24: #{_lambda_.1} parent=1 // pred_region
      _
    $region25: #{_lambda_.1} parent=1 // pred_fallthru
      _
    // Predicated region
    $region26: #{_lambda_.1} parent=1 // pred_check
      _
    $region27: #{_lambda_.1} parent=1 // pred_check_branch
      %30 = sbr.rel (0) target = $region29
    $region28: #{_lambda_.1} parent=1 // pred_region
      %32 = vsyncadd [#allocation3], 0
      %s33 = sshll.u32 %s6, 4
      %s34 = int_to_ptr.hbm [resolvable:$true] %s33
      %s35 = sshll.u32 [#allocation2], 4
      %s36 = int_to_ptr.vmem [resolvable:$true] %s35
      %41 = dma.hbm_to_vmem [thread:$0]  %s34, 6144, %s36, [#allocation3], 128, 128, 8
    $region29: #{_lambda_.1} parent=1 // pred_fallthru
      _
    // Predicated region
    $region30: #{_lambda_.1} parent=1 // pred_check
      _
    $region31: #{_lambda_.1} parent=1 // pred_check_branch
      %43 = sbr.rel (0) target = $region33
    $region32: #{_lambda_.1} parent=1 // pred_region
      _
    $region33: #{_lambda_.1} parent=1 // pred_fallthru
      _
    // Predicated region
    $region34: #{_lambda_.1} parent=1 // pred_check
      _
    $region35: #{_lambda_.1} parent=1 // pred_check_branch
      %45 = sbr.rel (0) target = $region37
    $region36: #{_lambda_.1} parent=1 // pred_region
      _
    $region37: #{_lambda_.1} parent=1 // pred_fallthru
      _
    // Predicated region
    $region38: #{_lambda_.1} parent=1 // pred_check
      _
    $region39: #{_lambda_.1} parent=1 // pred_check_branch
      %47 = sbr.rel (0) target = $region41
    $region40: #{_lambda_.1} parent=1 // pred_region
      _
    $region41: #{_lambda_.1} parent=1 // pred_fallthru
      _
    // Predicated region
    $region42: #{_lambda_.1} parent=1 // pred_check
      _
    $region43: #{_lambda_.1} parent=1 // pred_check_branch
      %49 = sbr.rel (0) target = $region45
    $region44: #{_lambda_.1} parent=1 // pred_region
      _
    $region45: #{_lambda_.1} parent=1 // pred_fallthru
      _
    // Predicated region
    $region46: #{_lambda_.1} parent=1 // pred_check
      _
    $region47: #{_lambda_.1} parent=1 // pred_check_branch
      %51 = sbr.rel (0) target = $region49
    $region48: #{_lambda_.1} parent=1 // pred_region
      %53 = dma.done [#allocation3], 6144
    $region49: #{_lambda_.1} parent=1 // pred_fallthru
      _
    %v54 = vld [vmem:[%s0] sm:$0xff]
    %v55 = vld [vmem:[%s0 + $0x8] sm:$0xff]
    %v56 = vld [vmem:[%s1] sm:$0xff]
    %v57 = vld [vmem:[%s1 + $0x8] sm:$0xff]
    %v58 = vld [vmem:[%s1 + $0x10] sm:$0xff]
    %v59 = vld [vmem:[%s1 + $0x18] sm:$0xff]
    %v60 = vld [vmem:[%s2] sm:$0xff]
    %v61 = vld [vmem:[%s2 + $0x8] sm:$0xff]
    %v62 = vld [vmem:[%s3] sm:$0xff]
    %v63 = vld [vmem:[%s3 + $0x8] sm:$0xff]
    %v64 = vld [vmem:[%s3 + $0x10] sm:$0xff]
    %v65 = vld [vmem:[%s3 + $0x18] sm:$0xff]
    %v66 = vadd.f32 %v56, %v62
    %v67 = vadd.f32 %v57, %v63
    %v68 = vadd.f32 %v58, %v64
    %v69 = vadd.f32 %v59, %v65
    %v70 = vadd.f32 %v54, %v60
    %v71 = vadd.f32 %v55, %v61
    %v72 = vld [vmem:[%s4] sm:$0xff]
    %v73 = vld [vmem:[%s4 + $0x8] sm:$0xff]
    %v74 = vld [vmem:[%s4 + $0x10] sm:$0xff]
    %v75 = vld [vmem:[%s4 + $0x18] sm:$0xff]
    %v76 = vld [vmem:[%s5] sm:$0x1]
    %v77 = vperm.slane %v76, 0
    %vm78 = vcmask 261120
    %v80 = vsel %vm78, %v70, 0
    %v83 = vsel %vm78, %v71, 0
    %85 = vmatpush.msra.mxu0 0.0
    %86 = vmatpush.msra.mxu0 0.0
    %87 = vmatpush.msra.mxu0 0.0
    %88 = vmatpush.msra.mxu0 0.0
    %89 = vmatpush.msra.mxu0 0.0
    %90 = vmatpush.msra.mxu0 0.0
    %91 = vmatpush.msra.mxu0 0.0
    %92 = vmatpush.msra.mxu0 0.0
    %93 = vmatpush.msra.mxu0 0.0
    %94 = vmatpush.msra.mxu0 0.0
    %95 = vmatpush.msra.mxu0 0.0
    %96 = vmatpush.msra.mxu0 0.0
    %97 = vmatpush.msra.mxu0 %v75
    %98 = vmatpush.msra.mxu0 %v74
    %99 = vmatpush.msra.mxu0 %v73
    %100 = vmatpush.msra.mxu0 %v72
    %101 = vmatmul.f32.gmra.mxu0 %v80
    %v102 = vpop.f32.mrf.mxu0
    %v103 = vadd.f32 %v77, %v102
    %104 = vmatmul.f32.gmra.mxu0 %v83
    %v105 = vpop.f32.mrf.mxu0
    %v106 = vadd.f32 %v77, %v105
    %107 = vdwg.mxu0
    %v108 = vld [vmem:[#allocation2] sm:$0xff]
    %v109 = vld [vmem:[#allocation2 + $0x8] sm:$0xff]
    %v110 = vld [vmem:[#allocation2 + $0x10] sm:$0xff]
    %v111 = vld [vmem:[#allocation2 + $0x18] sm:$0xff]
    %v112 = vld [vmem:[%s7] sm:$0x1]
    %v113 = vperm.slane %v112, 0
    %v115 = vsel %vm78, %v54, 0
    %v118 = vsel %vm78, %v55, 0
    %120 = vmatpush.msra.mxu0 0.0
    %121 = vmatpush.msra.mxu0 0.0
    %122 = vmatpush.msra.mxu0 0.0
    %123 = vmatpush.msra.mxu0 0.0
    %124 = vmatpush.msra.mxu0 0.0
    %125 = vmatpush.msra.mxu0 0.0
    %126 = vmatpush.msra.mxu0 0.0
    %127 = vmatpush.msra.mxu0 0.0
    %128 = vmatpush.msra.mxu0 0.0
    %129 = vmatpush.msra.mxu0 0.0
    %130 = vmatpush.msra.mxu0 0.0
    %131 = vmatpush.msra.mxu0 0.0
    %132 = vmatpush.msra.mxu0 %v111
    %133 = vmatpush.msra.mxu0 %v110
    %134 = vmatpush.msra.mxu0 %v109
    %135 = vmatpush.msra.mxu0 %v108
    %136 = vmatmul.f32.gmra.mxu0 %v115
    %v137 = vpop.f32.mrf.mxu0
    %v138 = vadd.f32 %v113, %v137
    %139 = vmatmul.f32.gmra.mxu0 %v118
    %v140 = vpop.f32.mrf.mxu0
    %v141 = vadd.f32 %v113, %v140
    %142 = vdwg.mxu0
    %v143 = vmul.f32 %v103, 0.35355338
    %v144 = vmul.f32 %v106, 0.35355338
    %146 = vrot.lane.b32.xlu0 %v103, 96
    %v147 = vpop.permute.xlu0 %146
    %vm148 = vcmask 64512
    %v150 = vsel %vm148, %v143, 0
    %v152 = vsel %vm148, %v147, 0
    %154 = vmatpush.xpose.msra.mxu0 0.0
    %155 = vmatpush.xpose.msra.mxu0 0.0
    %156 = vmatpush.xpose.msra.mxu0 0.0
    %157 = vmatpush.xpose.msra.mxu0 0.0
    %158 = vmatpush.xpose.msra.mxu0 0.0
    %159 = vmatpush.xpose.msra.mxu0 0.0
    %160 = vmatpush.xpose.msra.mxu0 0.0
    %161 = vmatpush.xpose.msra.mxu0 0.0
    %162 = vmatpush.xpose.msra.mxu0 0.0
    %163 = vmatpush.xpose.msra.mxu0 0.0
    %164 = vmatpush.xpose.msra.mxu0 0.0
    %165 = vmatpush.xpose.msra.mxu0 0.0
    %166 = vmatpush.xpose.msra.mxu0 0.0
    %167 = vmatpush.xpose.msra.mxu0 0.0
    %168 = vmatpush.xpose.msra.mxu0 0.0
    %169 = vmatpush.xpose.msra.mxu0 %v152
    %170 = vmatmul.f32.gmra.mxu0 %v150
    %v171 = vpop.f32.mrf.mxu0
    %v172 = vadd.f32 0.0, %v171
    %173 = vdwg.mxu0
    %175 = vrot.lane.b32.xlu0 %v106, 96
    %v176 = vpop.permute.xlu0 %175
    %v178 = vsel %vm148, %v144, 0
    %v180 = vsel %vm148, %v176, 0
    %182 = vmatpush.xpose.msra.mxu0 0.0
    %183 = vmatpush.xpose.msra.mxu0 0.0
    %184 = vmatpush.xpose.msra.mxu0 0.0
    %185 = vmatpush.xpose.msra.mxu0 0.0
    %186 = vmatpush.xpose.msra.mxu0 0.0
    %187 = vmatpush.xpose.msra.mxu0 0.0
    %188 = vmatpush.xpose.msra.mxu0 0.0
    %189 = vmatpush.xpose.msra.mxu0 0.0
    %190 = vmatpush.xpose.msra.mxu0 0.0
    %191 = vmatpush.xpose.msra.mxu0 0.0
    %192 = vmatpush.xpose.msra.mxu0 0.0
    %193 = vmatpush.xpose.msra.mxu0 0.0
    %194 = vmatpush.xpose.msra.mxu0 0.0
    %195 = vmatpush.xpose.msra.mxu0 0.0
    %196 = vmatpush.xpose.msra.mxu0 0.0
    %197 = vmatpush.xpose.msra.mxu0 %v180
    %198 = vmatmul.f32.gmra.mxu0 %v178
    %v199 = vpop.f32.mrf.mxu0
    %v200 = vadd.f32 0.0, %v199
    %201 = vdwg.mxu0
    %v202 = vsel %vm148, %v172, -inf
    %203 = vmax.xlane.f32.xlu0 %v202
    %v204 = vpop.xlane.xlu0 %203
    %v205 = vsel %vm148, %v200, -inf
    %206 = vmax.xlane.f32.xlu0 %v205
    %v207 = vpop.xlane.xlu0 %206
    %v208 = vsub.f32 %v172, %v204
    %v209 = vsub.f32 %v200, %v207
    %v210 = vmul.f32 %v208, 1.442695
    %v211 = vpow.pop %v210
    %v212 = vmul.f32 %v209, 1.442695
    %v213 = vpow.pop %v212
    %v214 = vsel %vm148, %v211, 0.0
    %215 = vadd.xlane.f32.xlu0 %v214
    %v216 = vpop.xlane.xlu0 %215
    %v217 = vsel %vm148, %v213, 0.0
    %218 = vadd.xlane.f32.xlu0 %v217
    %v219 = vpop.xlane.xlu0 %218
    %v220 = vrcp.pop %v216
    %v221 = vrcp.pop %v219
    %v222 = vmul.f32 %v211, %v220
    %v223 = vmul.f32 %v213, %v221
    %v225 = vsel %vm148, %v222, 0
    %227 = vmatpush.msra.mxu0 0.0
    %228 = vmatpush.msra.mxu0 0.0
    %229 = vmatpush.msra.mxu0 0.0
    %230 = vmatpush.msra.mxu0 0.0
    %231 = vmatpush.msra.mxu0 0.0
    %232 = vmatpush.msra.mxu0 0.0
    %233 = vmatpush.msra.mxu0 0.0
    %234 = vmatpush.msra.mxu0 0.0
    %235 = vmatpush.msra.mxu0 0.0
    %236 = vmatpush.msra.mxu0 0.0
    %237 = vmatpush.msra.mxu0 0.0
    %238 = vmatpush.msra.mxu0 0.0
    %239 = vmatpush.msra.mxu0 0.0
    %240 = vmatpush.msra.mxu0 0.0
    %241 = vmatpush.msra.mxu0 0.0
    %242 = vmatpush.msra.mxu0 %v138
    %243 = vmatmul.f32.gmra.mxu0 %v225
    %v244 = vpop.f32.mrf.mxu0
    %v245 = vadd.f32 0.0, %v244
    %246 = vdwg.mxu0
    %v248 = vsel %vm148, %v223, 0
    %250 = vmatpush.msra.mxu0 0.0
    %251 = vmatpush.msra.mxu0 0.0
    %252 = vmatpush.msra.mxu0 0.0
    %253 = vmatpush.msra.mxu0 0.0
    %254 = vmatpush.msra.mxu0 0.0
    %255 = vmatpush.msra.mxu0 0.0
    %256 = vmatpush.msra.mxu0 0.0
    %257 = vmatpush.msra.mxu0 0.0
    %258 = vmatpush.msra.mxu0 0.0
    %259 = vmatpush.msra.mxu0 0.0
    %260 = vmatpush.msra.mxu0 0.0
    %261 = vmatpush.msra.mxu0 0.0
    %262 = vmatpush.msra.mxu0 0.0
    %263 = vmatpush.msra.mxu0 0.0
    %264 = vmatpush.msra.mxu0 0.0
    %265 = vmatpush.msra.mxu0 %v141
    %266 = vmatmul.f32.gmra.mxu0 %v248
    %v267 = vpop.f32.mrf.mxu0
    %v268 = vadd.f32 0.0, %v267
    %269 = vdwg.mxu0
    %270 = vrot.lane.b32.xlu0 %v143, 120
    %v271 = vpop.permute.xlu0 %270
    %272 = vrot.lane.b32.xlu0 %v103, 88
    %v273 = vpop.permute.xlu0 %272
    %v274 = vsel %vm148, %v271, 0
    %v276 = vsel %vm148, %v273, 0
    %278 = vmatpush.xpose.msra.mxu0 0.0
    %279 = vmatpush.xpose.msra.mxu0 0.0
    %280 = vmatpush.xpose.msra.mxu0 0.0
    %281 = vmatpush.xpose.msra.mxu0 0.0
    %282 = vmatpush.xpose.msra.mxu0 0.0
    %283 = vmatpush.xpose.msra.mxu0 0.0
    %284 = vmatpush.xpose.msra.mxu0 0.0
    %285 = vmatpush.xpose.msra.mxu0 0.0
    %286 = vmatpush.xpose.msra.mxu0 0.0
    %287 = vmatpush.xpose.msra.mxu0 0.0
    %288 = vmatpush.xpose.msra.mxu0 0.0
    %289 = vmatpush.xpose.msra.mxu0 0.0
    %290 = vmatpush.xpose.msra.mxu0 0.0
    %291 = vmatpush.xpose.msra.mxu0 0.0
    %292 = vmatpush.xpose.msra.mxu0 0.0
    %293 = vmatpush.xpose.msra.mxu0 %v276
    %294 = vmatmul.f32.gmra.mxu0 %v274
    %v295 = vpop.f32.mrf.mxu0
    %v296 = vadd.f32 0.0, %v295
    %297 = vdwg.mxu0
    %298 = vrot.lane.b32.xlu0 %v144, 120
    %v299 = vpop.permute.xlu0 %298
    %300 = vrot.lane.b32.xlu0 %v106, 88
    %v301 = vpop.permute.xlu0 %300
    %v302 = vsel %vm148, %v299, 0
    %v304 = vsel %vm148, %v301, 0
    %306 = vmatpush.xpose.msra.mxu0 0.0
    %307 = vmatpush.xpose.msra.mxu0 0.0
    %308 = vmatpush.xpose.msra.mxu0 0.0
    %309 = vmatpush.xpose.msra.mxu0 0.0
    %310 = vmatpush.xpose.msra.mxu0 0.0
    %311 = vmatpush.xpose.msra.mxu0 0.0
    %312 = vmatpush.xpose.msra.mxu0 0.0
    %313 = vmatpush.xpose.msra.mxu0 0.0
    %314 = vmatpush.xpose.msra.mxu0 0.0
    %315 = vmatpush.xpose.msra.mxu0 0.0
    %316 = vmatpush.xpose.msra.mxu0 0.0
    %317 = vmatpush.xpose.msra.mxu0 0.0
    %318 = vmatpush.xpose.msra.mxu0 0.0
    %319 = vmatpush.xpose.msra.mxu0 0.0
    %320 = vmatpush.xpose.msra.mxu0 0.0
    %321 = vmatpush.xpose.msra.mxu0 %v304
    %322 = vmatmul.f32.gmra.mxu0 %v302
    %v323 = vpop.f32.mrf.mxu0
    %v324 = vadd.f32 0.0, %v323
    %325 = vdwg.mxu0
    %v326 = vsel %vm148, %v296, -inf
    %327 = vmax.xlane.f32.xlu0 %v326
    %v328 = vpop.xlane.xlu0 %327
    %v329 = vsel %vm148, %v324, -inf
    %330 = vmax.xlane.f32.xlu0 %v329
    %v331 = vpop.xlane.xlu0 %330
    %v332 = vsub.f32 %v296, %v328
    %v333 = vsub.f32 %v324, %v331
    %v334 = vmul.f32 %v332, 1.442695
    %v335 = vpow.pop %v334
    %v336 = vmul.f32 %v333, 1.442695
    %v337 = vpow.pop %v336
    %v338 = vsel %vm148, %v335, 0.0
    %339 = vadd.xlane.f32.xlu0 %v338
    %v340 = vpop.xlane.xlu0 %339
    %v341 = vsel %vm148, %v337, 0.0
    %342 = vadd.xlane.f32.xlu0 %v341
    %v343 = vpop.xlane.xlu0 %342
    %v344 = vrcp.pop %v340
    %v345 = vrcp.pop %v343
    %v346 = vmul.f32 %v335, %v344
    %v347 = vmul.f32 %v337, %v345
    %349 = vrot.lane.b32.xlu0 %v138, 120
    %v350 = vpop.permute.xlu0 %349
    %v353 = vsel %vm148, %v346, 0
    %355 = vmatpush.msra.mxu0 0.0
    %356 = vmatpush.msra.mxu0 0.0
    %357 = vmatpush.msra.mxu0 0.0
    %358 = vmatpush.msra.mxu0 0.0
    %359 = vmatpush.msra.mxu0 0.0
    %360 = vmatpush.msra.mxu0 0.0
    %361 = vmatpush.msra.mxu0 0.0
    %362 = vmatpush.msra.mxu0 0.0
    %363 = vmatpush.msra.mxu0 0.0
    %364 = vmatpush.msra.mxu0 0.0
    %365 = vmatpush.msra.mxu0 0.0
    %366 = vmatpush.msra.mxu0 0.0
    %367 = vmatpush.msra.mxu0 0.0
    %368 = vmatpush.msra.mxu0 0.0
    %369 = vmatpush.msra.mxu0 0.0
    %370 = vmatpush.msra.mxu0 %v350
    %371 = vmatmul.f32.gmra.mxu0 %v353
    %v372 = vpop.f32.mrf.mxu0
    %v373 = vadd.f32 0.0, %v372
    %374 = vdwg.mxu0
    %376 = vrot.lane.b32.xlu0 %v141, 120
    %v377 = vpop.permute.xlu0 %376
    %v380 = vsel %vm148, %v347, 0
    %382 = vmatpush.msra.mxu0 0.0
    %383 = vmatpush.msra.mxu0 0.0
    %384 = vmatpush.msra.mxu0 0.0
    %385 = vmatpush.msra.mxu0 0.0
    %386 = vmatpush.msra.mxu0 0.0
    %387 = vmatpush.msra.mxu0 0.0
    %388 = vmatpush.msra.mxu0 0.0
    %389 = vmatpush.msra.mxu0 0.0
    %390 = vmatpush.msra.mxu0 0.0
    %391 = vmatpush.msra.mxu0 0.0
    %392 = vmatpush.msra.mxu0 0.0
    %393 = vmatpush.msra.mxu0 0.0
    %394 = vmatpush.msra.mxu0 0.0
    %395 = vmatpush.msra.mxu0 0.0
    %396 = vmatpush.msra.mxu0 0.0
    %397 = vmatpush.msra.mxu0 %v377
    %398 = vmatmul.f32.gmra.mxu0 %v380
    %v399 = vpop.f32.mrf.mxu0
    %v400 = vadd.f32 0.0, %v399
    %401 = vdwg.mxu0
    %402 = vrot.lane.b32.xlu0 %v143, 112
    %v403 = vpop.permute.xlu0 %402
    %404 = vrot.lane.b32.xlu0 %v103, 80
    %v405 = vpop.permute.xlu0 %404
    %v406 = vsel %vm148, %v403, 0
    %v408 = vsel %vm148, %v405, 0
    %410 = vmatpush.xpose.msra.mxu0 0.0
    %411 = vmatpush.xpose.msra.mxu0 0.0
    %412 = vmatpush.xpose.msra.mxu0 0.0
    %413 = vmatpush.xpose.msra.mxu0 0.0
    %414 = vmatpush.xpose.msra.mxu0 0.0
    %415 = vmatpush.xpose.msra.mxu0 0.0
    %416 = vmatpush.xpose.msra.mxu0 0.0
    %417 = vmatpush.xpose.msra.mxu0 0.0
    %418 = vmatpush.xpose.msra.mxu0 0.0
    %419 = vmatpush.xpose.msra.mxu0 0.0
    %420 = vmatpush.xpose.msra.mxu0 0.0
    %421 = vmatpush.xpose.msra.mxu0 0.0
    %422 = vmatpush.xpose.msra.mxu0 0.0
    %423 = vmatpush.xpose.msra.mxu0 0.0
    %424 = vmatpush.xpose.msra.mxu0 0.0
    %425 = vmatpush.xpose.msra.mxu0 %v408
    %426 = vmatmul.f32.gmra.mxu0 %v406
    %v427 = vpop.f32.mrf.mxu0
    %v428 = vadd.f32 0.0, %v427
    %429 = vdwg.mxu0
    %430 = vrot.lane.b32.xlu0 %v144, 112
    %v431 = vpop.permute.xlu0 %430
    %432 = vrot.lane.b32.xlu0 %v106, 80
    %v433 = vpop.permute.xlu0 %432
    %v434 = vsel %vm148, %v431, 0
    %v436 = vsel %vm148, %v433, 0
    %438 = vmatpush.xpose.msra.mxu0 0.0
    %439 = vmatpush.xpose.msra.mxu0 0.0
    %440 = vmatpush.xpose.msra.mxu0 0.0
    %441 = vmatpush.xpose.msra.mxu0 0.0
    %442 = vmatpush.xpose.msra.mxu0 0.0
    %443 = vmatpush.xpose.msra.mxu0 0.0
    %444 = vmatpush.xpose.msra.mxu0 0.0
    %445 = vmatpush.xpose.msra.mxu0 0.0
    %446 = vmatpush.xpose.msra.mxu0 0.0
    %447 = vmatpush.xpose.msra.mxu0 0.0
    %448 = vmatpush.xpose.msra.mxu0 0.0
    %449 = vmatpush.xpose.msra.mxu0 0.0
    %450 = vmatpush.xpose.msra.mxu0 0.0
    %451 = vmatpush.xpose.msra.mxu0 0.0
    %452 = vmatpush.xpose.msra.mxu0 0.0
    %453 = vmatpush.xpose.msra.mxu0 %v436
    %454 = vmatmul.f32.gmra.mxu0 %v434
    %v455 = vpop.f32.mrf.mxu0
    %v456 = vadd.f32 0.0, %v455
    %457 = vdwg.mxu0
    %v458 = vsel %vm148, %v428, -inf
    %459 = vmax.xlane.f32.xlu0 %v458
    %v460 = vpop.xlane.xlu0 %459
    %v461 = vsel %vm148, %v456, -inf
    %462 = vmax.xlane.f32.xlu0 %v461
    %v463 = vpop.xlane.xlu0 %462
    %v464 = vsub.f32 %v428, %v460
    %v465 = vsub.f32 %v456, %v463
    %v466 = vmul.f32 %v464, 1.442695
    %v467 = vpow.pop %v466
    %v468 = vmul.f32 %v465, 1.442695
    %v469 = vpow.pop %v468
    %v470 = vsel %vm148, %v467, 0.0
    %471 = vadd.xlane.f32.xlu0 %v470
    %v472 = vpop.xlane.xlu0 %471
    %v473 = vsel %vm148, %v469, 0.0
    %474 = vadd.xlane.f32.xlu0 %v473
    %v475 = vpop.xlane.xlu0 %474
    %v476 = vrcp.pop %v472
    %v477 = vrcp.pop %v475
    %v478 = vmul.f32 %v467, %v476
    %v479 = vmul.f32 %v469, %v477
    %480 = vrot.lane.b32.xlu0 %v138, 112
    %v481 = vpop.permute.xlu0 %480
    %v484 = vsel %vm148, %v478, 0
    %486 = vmatpush.msra.mxu0 0.0
    %487 = vmatpush.msra.mxu0 0.0
    %488 = vmatpush.msra.mxu0 0.0
    %489 = vmatpush.msra.mxu0 0.0
    %490 = vmatpush.msra.mxu0 0.0
    %491 = vmatpush.msra.mxu0 0.0
    %492 = vmatpush.msra.mxu0 0.0
    %493 = vmatpush.msra.mxu0 0.0
    %494 = vmatpush.msra.mxu0 0.0
    %495 = vmatpush.msra.mxu0 0.0
    %496 = vmatpush.msra.mxu0 0.0
    %497 = vmatpush.msra.mxu0 0.0
    %498 = vmatpush.msra.mxu0 0.0
    %499 = vmatpush.msra.mxu0 0.0
    %500 = vmatpush.msra.mxu0 0.0
    %501 = vmatpush.msra.mxu0 %v481
    %502 = vmatmul.f32.gmra.mxu0 %v484
    %v503 = vpop.f32.mrf.mxu0
    %v504 = vadd.f32 0.0, %v503
    %505 = vdwg.mxu0
    %506 = vrot.lane.b32.xlu0 %v141, 112
    %v507 = vpop.permute.xlu0 %506
    %v510 = vsel %vm148, %v479, 0
    %512 = vmatpush.msra.mxu0 0.0
    %513 = vmatpush.msra.mxu0 0.0
    %514 = vmatpush.msra.mxu0 0.0
    %515 = vmatpush.msra.mxu0 0.0
    %516 = vmatpush.msra.mxu0 0.0
    %517 = vmatpush.msra.mxu0 0.0
    %518 = vmatpush.msra.mxu0 0.0
    %519 = vmatpush.msra.mxu0 0.0
    %520 = vmatpush.msra.mxu0 0.0
    %521 = vmatpush.msra.mxu0 0.0
    %522 = vmatpush.msra.mxu0 0.0
    %523 = vmatpush.msra.mxu0 0.0
    %524 = vmatpush.msra.mxu0 0.0
    %525 = vmatpush.msra.mxu0 0.0
    %526 = vmatpush.msra.mxu0 0.0
    %527 = vmatpush.msra.mxu0 %v507
    %528 = vmatmul.f32.gmra.mxu0 %v510
    %v529 = vpop.f32.mrf.mxu0
    %v530 = vadd.f32 0.0, %v529
    %531 = vdwg.mxu0
    %532 = vrot.lane.b32.xlu0 %v143, 104
    %v533 = vpop.permute.xlu0 %532
    %534 = vrot.lane.b32.xlu0 %v103, 72
    %v535 = vpop.permute.xlu0 %534
    %v536 = vsel %vm148, %v533, 0
    %v538 = vsel %vm148, %v535, 0
    %540 = vmatpush.xpose.msra.mxu0 0.0
    %541 = vmatpush.xpose.msra.mxu0 0.0
    %542 = vmatpush.xpose.msra.mxu0 0.0
    %543 = vmatpush.xpose.msra.mxu0 0.0
    %544 = vmatpush.xpose.msra.mxu0 0.0
    %545 = vmatpush.xpose.msra.mxu0 0.0
    %546 = vmatpush.xpose.msra.mxu0 0.0
    %547 = vmatpush.xpose.msra.mxu0 0.0
    %548 = vmatpush.xpose.msra.mxu0 0.0
    %549 = vmatpush.xpose.msra.mxu0 0.0
    %550 = vmatpush.xpose.msra.mxu0 0.0
    %551 = vmatpush.xpose.msra.mxu0 0.0
    %552 = vmatpush.xpose.msra.mxu0 0.0
    %553 = vmatpush.xpose.msra.mxu0 0.0
    %554 = vmatpush.xpose.msra.mxu0 0.0
    %555 = vmatpush.xpose.msra.mxu0 %v538
    %556 = vmatmul.f32.gmra.mxu0 %v536
    %v557 = vpop.f32.mrf.mxu0
    %v558 = vadd.f32 0.0, %v557
    %559 = vdwg.mxu0
    %560 = vrot.lane.b32.xlu0 %v144, 104
    %v561 = vpop.permute.xlu0 %560
    %562 = vrot.lane.b32.xlu0 %v106, 72
    %v563 = vpop.permute.xlu0 %562
    %v564 = vsel %vm148, %v561, 0
    %v566 = vsel %vm148, %v563, 0
    %568 = vmatpush.xpose.msra.mxu0 0.0
    %569 = vmatpush.xpose.msra.mxu0 0.0
    %570 = vmatpush.xpose.msra.mxu0 0.0
    %571 = vmatpush.xpose.msra.mxu0 0.0
    %572 = vmatpush.xpose.msra.mxu0 0.0
    %573 = vmatpush.xpose.msra.mxu0 0.0
    %574 = vmatpush.xpose.msra.mxu0 0.0
    %575 = vmatpush.xpose.msra.mxu0 0.0
    %576 = vmatpush.xpose.msra.mxu0 0.0
    %577 = vmatpush.xpose.msra.mxu0 0.0
    %578 = vmatpush.xpose.msra.mxu0 0.0
    %579 = vmatpush.xpose.msra.mxu0 0.0
    %580 = vmatpush.xpose.msra.mxu0 0.0
    %581 = vmatpush.xpose.msra.mxu0 0.0
    %582 = vmatpush.xpose.msra.mxu0 0.0
    %583 = vmatpush.xpose.msra.mxu0 %v566
    %584 = vmatmul.f32.gmra.mxu0 %v564
    %v585 = vpop.f32.mrf.mxu0
    %v586 = vadd.f32 0.0, %v585
    %587 = vdwg.mxu0
    %v588 = vsel %vm148, %v558, -inf
    %589 = vmax.xlane.f32.xlu0 %v588
    %v590 = vpop.xlane.xlu0 %589
    %v591 = vsel %vm148, %v586, -inf
    %592 = vmax.xlane.f32.xlu0 %v591
    %v593 = vpop.xlane.xlu0 %592
    %v594 = vsub.f32 %v558, %v590
    %v595 = vsub.f32 %v586, %v593
    %v596 = vmul.f32 %v594, 1.442695
    %v597 = vpow.pop %v596
    %v598 = vmul.f32 %v595, 1.442695
    %v599 = vpow.pop %v598
    %v600 = vsel %vm148, %v597, 0.0
    %601 = vadd.xlane.f32.xlu0 %v600
    %v602 = vpop.xlane.xlu0 %601
    %v603 = vsel %vm148, %v599, 0.0
    %604 = vadd.xlane.f32.xlu0 %v603
    %v605 = vpop.xlane.xlu0 %604
    %v606 = vrcp.pop %v602
    %v607 = vrcp.pop %v605
    %v608 = vmul.f32 %v597, %v606
    %v609 = vmul.f32 %v599, %v607
    %610 = vrot.lane.b32.xlu0 %v138, 104
    %v611 = vpop.permute.xlu0 %610
    %v614 = vsel %vm148, %v608, 0
    %616 = vmatpush.msra.mxu0 0.0
    %617 = vmatpush.msra.mxu0 0.0
    %618 = vmatpush.msra.mxu0 0.0
    %619 = vmatpush.msra.mxu0 0.0
    %620 = vmatpush.msra.mxu0 0.0
    %621 = vmatpush.msra.mxu0 0.0
    %622 = vmatpush.msra.mxu0 0.0
    %623 = vmatpush.msra.mxu0 0.0
    %624 = vmatpush.msra.mxu0 0.0
    %625 = vmatpush.msra.mxu0 0.0
    %626 = vmatpush.msra.mxu0 0.0
    %627 = vmatpush.msra.mxu0 0.0
    %628 = vmatpush.msra.mxu0 0.0
    %629 = vmatpush.msra.mxu0 0.0
    %630 = vmatpush.msra.mxu0 0.0
    %631 = vmatpush.msra.mxu0 %v611
    %632 = vmatmul.f32.gmra.mxu0 %v614
    %v633 = vpop.f32.mrf.mxu0
    %v634 = vadd.f32 0.0, %v633
    %635 = vdwg.mxu0
    %636 = vrot.lane.b32.xlu0 %v141, 104
    %v637 = vpop.permute.xlu0 %636
    %v640 = vsel %vm148, %v609, 0
    %642 = vmatpush.msra.mxu0 0.0
    %643 = vmatpush.msra.mxu0 0.0
    %644 = vmatpush.msra.mxu0 0.0
    %645 = vmatpush.msra.mxu0 0.0
    %646 = vmatpush.msra.mxu0 0.0
    %647 = vmatpush.msra.mxu0 0.0
    %648 = vmatpush.msra.mxu0 0.0
    %649 = vmatpush.msra.mxu0 0.0
    %650 = vmatpush.msra.mxu0 0.0
    %651 = vmatpush.msra.mxu0 0.0
    %652 = vmatpush.msra.mxu0 0.0
    %653 = vmatpush.msra.mxu0 0.0
    %654 = vmatpush.msra.mxu0 0.0
    %655 = vmatpush.msra.mxu0 0.0
    %656 = vmatpush.msra.mxu0 0.0
    %657 = vmatpush.msra.mxu0 %v637
    %658 = vmatmul.f32.gmra.mxu0 %v640
    %v659 = vpop.f32.mrf.mxu0
    %v660 = vadd.f32 0.0, %v659
    %661 = vdwg.mxu0
    %664 = vrot.lane.b32.xlu0 %v373, 8
    %v665 = vpop.permute.xlu0 %664
    %666 = vrot.lane.b32.xlu0 %v400, 8
    %v667 = vpop.permute.xlu0 %666
    %672 = vrot.lane.b32.xlu0 %v504, 16
    %v673 = vpop.permute.xlu0 %672
    %674 = vrot.lane.b32.xlu0 %v530, 16
    %v675 = vpop.permute.xlu0 %674
    %680 = vrot.lane.b32.xlu0 %v634, 24
    %v681 = vpop.permute.xlu0 %680
    %682 = vrot.lane.b32.xlu0 %v660, 24
    %v683 = vpop.permute.xlu0 %682
    %v686 = vsel %vm148, %v245, %v665
    %v687 = vsel %vm148, %v268, %v667
    %vm688 = vcmask 130048
    %v689 = vsel %vm688, %v686, %v673
    %v690 = vsel %vm688, %v687, %v675
    %vm691 = vcmask 195584
    %v692 = vsel %vm691, %v689, %v681
    %v693 = vsel %vm691, %v690, %v683
    %s694 = scalar_lea.vmem [#allocation2], 32
    %v695 = vld [vmem:[%s694] sm:$0xff]
    %v696 = vld [vmem:[%s694 + $0x8] sm:$0xff]
    %v697 = vld [vmem:[%s694 + $0x10] sm:$0xff]
    %v698 = vld [vmem:[%s694 + $0x18] sm:$0xff]
    %v699 = vld [vmem:[%s7 + $0x1] sm:$0x1]
    %v700 = vperm.slane %v699, 0
    %v702 = vsel %vm78, %v692, 0
    %v705 = vsel %vm78, %v693, 0
    %707 = vmatpush.msra.mxu0 0.0
    %708 = vmatpush.msra.mxu0 0.0
    %709 = vmatpush.msra.mxu0 0.0
    %710 = vmatpush.msra.mxu0 0.0
    %711 = vmatpush.msra.mxu0 0.0
    %712 = vmatpush.msra.mxu0 0.0
    %713 = vmatpush.msra.mxu0 0.0
    %714 = vmatpush.msra.mxu0 0.0
    %715 = vmatpush.msra.mxu0 0.0
    %716 = vmatpush.msra.mxu0 0.0
    %717 = vmatpush.msra.mxu0 0.0
    %718 = vmatpush.msra.mxu0 0.0
    %719 = vmatpush.msra.mxu0 %v698
    %720 = vmatpush.msra.mxu0 %v697
    %721 = vmatpush.msra.mxu0 %v696
    %722 = vmatpush.msra.mxu0 %v695
    %723 = vmatmul.f32.gmra.mxu0 %v702
    %v724 = vpop.f32.mrf.mxu0
    %v725 = vadd.f32 %v700, %v724
    %726 = vmatmul.f32.gmra.mxu0 %v705
    %v727 = vpop.f32.mrf.mxu0
    %v728 = vadd.f32 %v700, %v727
    %729 = vdwg.mxu0
    %v730 = vadd.f32 %v54, %v725
    %v731 = vadd.f32 %v55, %v728
    %v732 = vld [vmem:[%s7 + $0x7] sm:$0x1]
    %v733 = vld [vmem:[%s7 + $0x8] sm:$0x1]
    %v734 = vsel %vm78, %v730, 0.0
    %735 = vadd.xlane.f32.xlu0 %v734
    %v736 = vpop.xlane.xlu0 %735
    %v737 = vsel %vm78, %v731, 0.0
    %738 = vadd.xlane.f32.xlu0 %v737
    %v739 = vpop.xlane.xlu0 %738
    %v740 = vrcp.pop 32.0
    %v741 = vmul.f32 32.0, %v740
    %v742 = vsub.f32 1.0, %v741
    %v743 = vmul.f32 %v740, %v742
    %v744 = vadd.f32 %v740, %v743
    %vm745 = vweird.f32 %v740
    %v746 = vsel %vm745, %v740, %v744
    %v747 = vmul.f32 %v736, %v746
    %v748 = vmul.f32 %v739, %v746
    %v749 = vmul.f32 %v730, %v730
    %v750 = vmul.f32 %v731, %v731
    %v751 = vsel %vm78, %v749, 0.0
    %752 = vadd.xlane.f32.xlu0 %v751
    %v753 = vpop.xlane.xlu0 %752
    %v754 = vsel %vm78, %v750, 0.0
    %755 = vadd.xlane.f32.xlu0 %v754
    %v756 = vpop.xlane.xlu0 %755
    %v757 = vmul.f32 %v753, %v746
    %v758 = vmul.f32 %v756, %v746
    %v759 = vsub.f32 %v730, %v747
    %v760 = vsub.f32 %v731, %v748
    %v761 = vmul.f32 %v747, %v747
    %v762 = vmul.f32 %v748, %v748
    %v763 = vsub.f32 %v757, %v761
    %v764 = vsub.f32 %v758, %v762
    %v765 = vadd.f32 %v763, 1e-05
    %v766 = vadd.f32 %v764, 1e-05
    %v767 = vrsqrt.pop %v765
    %v768 = vmul.f32 %v767, %v765
    %v769 = vmul.f32 %v768, %v767
    %v770 = vmul.f32 0.5, %v769
    %v771 = vsub.f32 1.5, %v770
    %v772 = vmul.f32 %v767, %v771
    %vm773 = vweird.f32 %v765
    %vm774 = vweird.f32 %v767
    %vm775 = vmor %vm773, %vm774
    %v776 = vsel %vm775, %v767, %v772
    %v777 = vrsqrt.pop %v766
    %v778 = vmul.f32 %v777, %v766
    %v779 = vmul.f32 %v778, %v777
    %v780 = vmul.f32 0.5, %v779
    %v781 = vsub.f32 1.5, %v780
    %v782 = vmul.f32 %v777, %v781
    %vm783 = vweird.f32 %v766
    %vm784 = vweird.f32 %v777
    %vm785 = vmor %vm783, %vm784
    %v786 = vsel %vm785, %v777, %v782
    %v787 = vmul.f32 %v759, %v776
    %v788 = vmul.f32 %v760, %v786
    %v789 = vperm.slane %v732, 0
    %v790 = vmul.f32 %v787, %v789
    %v791 = vmul.f32 %v788, %v789
    %v792 = vperm.slane %v733, 0
    %v793 = vadd.f32 %v790, %v792
    %v794 = vadd.f32 %v791, %v792
    %v795 = vadd.f32 %v793, %v60
    %v796 = vadd.f32 %v794, %v61
    %s797 = scalar_lea.vmem [#allocation2], 64
    %v798 = vld [vmem:[%s797] sm:$0xff]
    %v799 = vld [vmem:[%s797 + $0x8] sm:$0xff]
    %v800 = vld [vmem:[%s797 + $0x10] sm:$0xff]
    %v801 = vld [vmem:[%s797 + $0x18] sm:$0xff]
    %v802 = vld [vmem:[%s7 + $0x2] sm:$0x1]
    %v803 = vperm.slane %v802, 0
    %v805 = vsel %vm78, %v795, 0
    %v808 = vsel %vm78, %v796, 0
    %810 = vmatpush.msra.mxu0 0.0
    %811 = vmatpush.msra.mxu0 0.0
    %812 = vmatpush.msra.mxu0 0.0
    %813 = vmatpush.msra.mxu0 0.0
    %814 = vmatpush.msra.mxu0 0.0
    %815 = vmatpush.msra.mxu0 0.0
    %816 = vmatpush.msra.mxu0 0.0
    %817 = vmatpush.msra.mxu0 0.0
    %818 = vmatpush.msra.mxu0 0.0
    %819 = vmatpush.msra.mxu0 0.0
    %820 = vmatpush.msra.mxu0 0.0
    %821 = vmatpush.msra.mxu0 0.0
    %822 = vmatpush.msra.mxu0 %v801
    %823 = vmatpush.msra.mxu0 %v800
    %824 = vmatpush.msra.mxu0 %v799
    %825 = vmatpush.msra.mxu0 %v798
    %826 = vmatmul.f32.gmra.mxu0 %v805
    %v827 = vpop.f32.mrf.mxu0
    %v828 = vadd.f32 %v803, %v827
    %829 = vmatmul.f32.gmra.mxu0 %v808
    %v830 = vpop.f32.mrf.mxu0
    %v831 = vadd.f32 %v803, %v830
    %832 = vdwg.mxu0
    %s833 = scalar_lea.vmem [#allocation2], 96
    %v834 = vld [vmem:[%s833] sm:$0xff]
    %v835 = vld [vmem:[%s833 + $0x8] sm:$0xff]
    %v836 = vld [vmem:[%s833 + $0x10] sm:$0xff]
    %v837 = vld [vmem:[%s833 + $0x18] sm:$0xff]
    %v838 = vld [vmem:[%s7 + $0x3] sm:$0x1]
    %v839 = vperm.slane %v838, 0
    %v841 = vsel %vm78, %v66, 0
    %v844 = vsel %vm78, %v67, 0
    %v847 = vsel %vm78, %v68, 0
    %v850 = vsel %vm78, %v69, 0
    %852 = vmatpush.msra.mxu0 0.0
    %853 = vmatpush.msra.mxu0 0.0
    %854 = vmatpush.msra.mxu0 0.0
    %855 = vmatpush.msra.mxu0 0.0
    %856 = vmatpush.msra.mxu0 0.0
    %857 = vmatpush.msra.mxu0 0.0
    %858 = vmatpush.msra.mxu0 0.0
    %859 = vmatpush.msra.mxu0 0.0
    %860 = vmatpush.msra.mxu0 0.0
    %861 = vmatpush.msra.mxu0 0.0
    %862 = vmatpush.msra.mxu0 0.0
    %863 = vmatpush.msra.mxu0 0.0
    %864 = vmatpush.msra.mxu0 %v837
    %865 = vmatpush.msra.mxu0 %v836
    %866 = vmatpush.msra.mxu0 %v835
    %867 = vmatpush.msra.mxu0 %v834
    %868 = vmatmul.f32.gmra.mxu0 %v841
    %v869 = vpop.f32.mrf.mxu0
    %v870 = vadd.f32 %v839, %v869
    %871 = vmatmul.f32.gmra.mxu0 %v844
    %v872 = vpop.f32.mrf.mxu0
    %v873 = vadd.f32 %v839, %v872
    %874 = vmatmul.f32.gmra.mxu0 %v847
    %v875 = vpop.f32.mrf.mxu0
    %v876 = vadd.f32 %v839, %v875
    %877 = vmatmul.f32.gmra.mxu0 %v850
    %v878 = vpop.f32.mrf.mxu0
    %v879 = vadd.f32 %v839, %v878
    %880 = vdwg.mxu0
    %s881 = scalar_lea.vmem [#allocation2], 128
    %v882 = vld [vmem:[%s881] sm:$0xff]
    %v883 = vld [vmem:[%s881 + $0x8] sm:$0xff]
    %v884 = vld [vmem:[%s881 + $0x10] sm:$0xff]
    %v885 = vld [vmem:[%s881 + $0x18] sm:$0xff]
    %v886 = vld [vmem:[%s7 + $0x4] sm:$0x1]
    %v887 = vperm.slane %v886, 0
    %v889 = vsel %vm78, %v56, 0
    %v892 = vsel %vm78, %v57, 0
    %v895 = vsel %vm78, %v58, 0
    %v898 = vsel %vm78, %v59, 0
    %900 = vmatpush.msra.mxu0 0.0
    %901 = vmatpush.msra.mxu0 0.0
    %902 = vmatpush.msra.mxu0 0.0
    %903 = vmatpush.msra.mxu0 0.0
    %904 = vmatpush.msra.mxu0 0.0
    %905 = vmatpush.msra.mxu0 0.0
    %906 = vmatpush.msra.mxu0 0.0
    %907 = vmatpush.msra.mxu0 0.0
    %908 = vmatpush.msra.mxu0 0.0
    %909 = vmatpush.msra.mxu0 0.0
    %910 = vmatpush.msra.mxu0 0.0
    %911 = vmatpush.msra.mxu0 0.0
    %912 = vmatpush.msra.mxu0 %v885
    %913 = vmatpush.msra.mxu0 %v884
    %914 = vmatpush.msra.mxu0 %v883
    %915 = vmatpush.msra.mxu0 %v882
    %916 = vmatmul.f32.gmra.mxu0 %v889
    %v917 = vpop.f32.mrf.mxu0
    %v918 = vadd.f32 %v887, %v917
    %919 = vmatmul.f32.gmra.mxu0 %v892
    %v920 = vpop.f32.mrf.mxu0
    %v921 = vadd.f32 %v887, %v920
    %922 = vmatmul.f32.gmra.mxu0 %v895
    %v923 = vpop.f32.mrf.mxu0
    %v924 = vadd.f32 %v887, %v923
    %925 = vmatmul.f32.gmra.mxu0 %v898
    %v926 = vpop.f32.mrf.mxu0
    %v927 = vadd.f32 %v887, %v926
    %928 = vdwg.mxu0
    %v929 = vmul.f32 %v828, 0.35355338
    %v930 = vmul.f32 %v831, 0.35355338
    %v932 = vsel %vm148, %v929, 0
    %v935 = vsel %vm148, %v870, 0
    %v938 = vsel %vm148, %v873, 0
    %940 = vmatpush.xpose.msra.mxu0 0.0
    %941 = vmatpush.xpose.msra.mxu0 0.0
    %942 = vmatpush.xpose.msra.mxu0 0.0
    %943 = vmatpush.xpose.msra.mxu0 0.0
    %944 = vmatpush.xpose.msra.mxu0 0.0
    %945 = vmatpush.xpose.msra.mxu0 0.0
    %946 = vmatpush.xpose.msra.mxu0 0.0
    %947 = vmatpush.xpose.msra.mxu0 0.0
    %948 = vmatpush.xpose.msra.mxu0 0.0
    %949 = vmatpush.xpose.msra.mxu0 0.0
    %950 = vmatpush.xpose.msra.mxu0 0.0
    %951 = vmatpush.xpose.msra.mxu0 0.0
    %952 = vmatpush.xpose.msra.mxu0 0.0
    %953 = vmatpush.xpose.msra.mxu0 0.0
    %954 = vmatpush.xpose.msra.mxu0 %v938
    %955 = vmatpush.xpose.msra.mxu0 %v935
    %956 = vmatmul.f32.gmra.mxu0 %v932
    %v957 = vpop.f32.mrf.mxu0
    %v958 = vadd.f32 0.0, %v957
    %959 = vdwg.mxu0
    %v961 = vsel %vm148, %v930, 0
    %v964 = vsel %vm148, %v876, 0
    %v967 = vsel %vm148, %v879, 0
    %969 = vmatpush.xpose.msra.mxu0 0.0
    %970 = vmatpush.xpose.msra.mxu0 0.0
    %971 = vmatpush.xpose.msra.mxu0 0.0
    %972 = vmatpush.xpose.msra.mxu0 0.0
    %973 = vmatpush.xpose.msra.mxu0 0.0
    %974 = vmatpush.xpose.msra.mxu0 0.0
    %975 = vmatpush.xpose.msra.mxu0 0.0
    %976 = vmatpush.xpose.msra.mxu0 0.0
    %977 = vmatpush.xpose.msra.mxu0 0.0
    %978 = vmatpush.xpose.msra.mxu0 0.0
    %979 = vmatpush.xpose.msra.mxu0 0.0
    %980 = vmatpush.xpose.msra.mxu0 0.0
    %981 = vmatpush.xpose.msra.mxu0 0.0
    %982 = vmatpush.xpose.msra.mxu0 0.0
    %983 = vmatpush.xpose.msra.mxu0 %v967
    %984 = vmatpush.xpose.msra.mxu0 %v964
    %985 = vmatmul.f32.gmra.mxu0 %v961
    %v986 = vpop.f32.mrf.mxu0
    %v987 = vadd.f32 0.0, %v986
    %988 = vdwg.mxu0
    %v989 = vsel %vm688, %v958, -inf
    %990 = vmax.xlane.f32.xlu0 %v989
    %v991 = vpop.xlane.xlu0 %990
    %v992 = vsel %vm688, %v987, -inf
    %993 = vmax.xlane.f32.xlu0 %v992
    %v994 = vpop.xlane.xlu0 %993
    %v995 = vsub.f32 %v958, %v991
    %v996 = vsub.f32 %v987, %v994
    %v997 = vmul.f32 %v995, 1.442695
    %v998 = vpow.pop %v997
    %v999 = vmul.f32 %v996, 1.442695
    %v1000 = vpow.pop %v999
    %v1001 = vsel %vm688, %v998, 0.0
    %1002 = vadd.xlane.f32.xlu0 %v1001
    %v1003 = vpop.xlane.xlu0 %1002
    %v1004 = vsel %vm688, %v1000, 0.0
    %1005 = vadd.xlane.f32.xlu0 %v1004
    %v1006 = vpop.xlane.xlu0 %1005
    %v1007 = vrcp.pop %v1003
    %v1008 = vrcp.pop %v1006
    %v1009 = vmul.f32 %v998, %v1007
    %v1010 = vmul.f32 %v1000, %v1008
    %v1012 = vsel %vm688, %v1009, 0
    %1014 = vmatpush.msra.mxu0 0.0
    %1015 = vmatpush.msra.mxu0 0.0
    %1016 = vmatpush.msra.mxu0 0.0
    %1017 = vmatpush.msra.mxu0 0.0
    %1018 = vmatpush.msra.mxu0 0.0
    %1019 = vmatpush.msra.mxu0 0.0
    %1020 = vmatpush.msra.mxu0 0.0
    %1021 = vmatpush.msra.mxu0 0.0
    %1022 = vmatpush.msra.mxu0 0.0
    %1023 = vmatpush.msra.mxu0 0.0
    %1024 = vmatpush.msra.mxu0 0.0
    %1025 = vmatpush.msra.mxu0 0.0
    %1026 = vmatpush.msra.mxu0 0.0
    %1027 = vmatpush.msra.mxu0 0.0
    %1028 = vmatpush.msra.mxu0 %v921
    %1029 = vmatpush.msra.mxu0 %v918
    %1030 = vmatmul.f32.gmra.mxu0 %v1012
    %v1031 = vpop.f32.mrf.mxu0
    %v1032 = vadd.f32 0.0, %v1031
    %1033 = vdwg.mxu0
    %v1035 = vsel %vm688, %v1010, 0
    %1037 = vmatpush.msra.mxu0 0.0
    %1038 = vmatpush.msra.mxu0 0.0
    %1039 = vmatpush.msra.mxu0 0.0
    %1040 = vmatpush.msra.mxu0 0.0
    %1041 = vmatpush.msra.mxu0 0.0
    %1042 = vmatpush.msra.mxu0 0.0
    %1043 = vmatpush.msra.mxu0 0.0
    %1044 = vmatpush.msra.mxu0 0.0
    %1045 = vmatpush.msra.mxu0 0.0
    %1046 = vmatpush.msra.mxu0 0.0
    %1047 = vmatpush.msra.mxu0 0.0
    %1048 = vmatpush.msra.mxu0 0.0
    %1049 = vmatpush.msra.mxu0 0.0
    %1050 = vmatpush.msra.mxu0 0.0
    %1051 = vmatpush.msra.mxu0 %v927
    %1052 = vmatpush.msra.mxu0 %v924
    %1053 = vmatmul.f32.gmra.mxu0 %v1035
    %v1054 = vpop.f32.mrf.mxu0
    %v1055 = vadd.f32 0.0, %v1054
    %1056 = vdwg.mxu0
    %1057 = vrot.lane.b32.xlu0 %v929, 120
    %v1058 = vpop.permute.xlu0 %1057
    %1059 = vrot.lane.b32.xlu0 %v870, 120
    %v1060 = vpop.permute.xlu0 %1059
    %1061 = vrot.lane.b32.xlu0 %v873, 120
    %v1062 = vpop.permute.xlu0 %1061
    %v1063 = vsel %vm148, %v1058, 0
    %v1065 = vsel %vm148, %v1060, 0
    %v1067 = vsel %vm148, %v1062, 0
    %1069 = vmatpush.xpose.msra.mxu0 0.0
    %1070 = vmatpush.xpose.msra.mxu0 0.0
    %1071 = vmatpush.xpose.msra.mxu0 0.0
    %1072 = vmatpush.xpose.msra.mxu0 0.0
    %1073 = vmatpush.xpose.msra.mxu0 0.0
    %1074 = vmatpush.xpose.msra.mxu0 0.0
    %1075 = vmatpush.xpose.msra.mxu0 0.0
    %1076 = vmatpush.xpose.msra.mxu0 0.0
    %1077 = vmatpush.xpose.msra.mxu0 0.0
    %1078 = vmatpush.xpose.msra.mxu0 0.0
    %1079 = vmatpush.xpose.msra.mxu0 0.0
    %1080 = vmatpush.xpose.msra.mxu0 0.0
    %1081 = vmatpush.xpose.msra.mxu0 0.0
    %1082 = vmatpush.xpose.msra.mxu0 0.0
    %1083 = vmatpush.xpose.msra.mxu0 %v1067
    %1084 = vmatpush.xpose.msra.mxu0 %v1065
    %1085 = vmatmul.f32.gmra.mxu0 %v1063
    %v1086 = vpop.f32.mrf.mxu0
    %v1087 = vadd.f32 0.0, %v1086
    %1088 = vdwg.mxu0
    %1089 = vrot.lane.b32.xlu0 %v930, 120
    %v1090 = vpop.permute.xlu0 %1089
    %1091 = vrot.lane.b32.xlu0 %v876, 120
    %v1092 = vpop.permute.xlu0 %1091
    %1093 = vrot.lane.b32.xlu0 %v879, 120
    %v1094 = vpop.permute.xlu0 %1093
    %v1095 = vsel %vm148, %v1090, 0
    %v1097 = vsel %vm148, %v1092, 0
    %v1099 = vsel %vm148, %v1094, 0
    %1101 = vmatpush.xpose.msra.mxu0 0.0
    %1102 = vmatpush.xpose.msra.mxu0 0.0
    %1103 = vmatpush.xpose.msra.mxu0 0.0
    %1104 = vmatpush.xpose.msra.mxu0 0.0
    %1105 = vmatpush.xpose.msra.mxu0 0.0
    %1106 = vmatpush.xpose.msra.mxu0 0.0
    %1107 = vmatpush.xpose.msra.mxu0 0.0
    %1108 = vmatpush.xpose.msra.mxu0 0.0
    %1109 = vmatpush.xpose.msra.mxu0 0.0
    %1110 = vmatpush.xpose.msra.mxu0 0.0
    %1111 = vmatpush.xpose.msra.mxu0 0.0
    %1112 = vmatpush.xpose.msra.mxu0 0.0
    %1113 = vmatpush.xpose.msra.mxu0 0.0
    %1114 = vmatpush.xpose.msra.mxu0 0.0
    %1115 = vmatpush.xpose.msra.mxu0 %v1099
    %1116 = vmatpush.xpose.msra.mxu0 %v1097
    %1117 = vmatmul.f32.gmra.mxu0 %v1095
    %v1118 = vpop.f32.mrf.mxu0
    %v1119 = vadd.f32 0.0, %v1118
    %1120 = vdwg.mxu0
    %v1121 = vsel %vm688, %v1087, -inf
    %1122 = vmax.xlane.f32.xlu0 %v1121
    %v1123 = vpop.xlane.xlu0 %1122
    %v1124 = vsel %vm688, %v1119, -inf
    %1125 = vmax.xlane.f32.xlu0 %v1124
    %v1126 = vpop.xlane.xlu0 %1125
    %v1127 = vsub.f32 %v1087, %v1123
    %v1128 = vsub.f32 %v1119, %v1126
    %v1129 = vmul.f32 %v1127, 1.442695
    %v1130 = vpow.pop %v1129
    %v1131 = vmul.f32 %v1128, 1.442695
    %v1132 = vpow.pop %v1131
    %v1133 = vsel %vm688, %v1130, 0.0
    %1134 = vadd.xlane.f32.xlu0 %v1133
    %v1135 = vpop.xlane.xlu0 %1134
    %v1136 = vsel %vm688, %v1132, 0.0
    %1137 = vadd.xlane.f32.xlu0 %v1136
    %v1138 = vpop.xlane.xlu0 %1137
    %v1139 = vrcp.pop %v1135
    %v1140 = vrcp.pop %v1138
    %v1141 = vmul.f32 %v1130, %v1139
    %v1142 = vmul.f32 %v1132, %v1140
    %1145 = vrot.lane.b32.xlu0 %v918, 120
    %v1146 = vpop.permute.xlu0 %1145
    %1147 = vrot.lane.b32.xlu0 %v921, 120
    %v1148 = vpop.permute.xlu0 %1147
    %v1152 = vsel %vm688, %v1141, 0
    %1154 = vmatpush.msra.mxu0 0.0
    %1155 = vmatpush.msra.mxu0 0.0
    %1156 = vmatpush.msra.mxu0 0.0
    %1157 = vmatpush.msra.mxu0 0.0
    %1158 = vmatpush.msra.mxu0 0.0
    %1159 = vmatpush.msra.mxu0 0.0
    %1160 = vmatpush.msra.mxu0 0.0
    %1161 = vmatpush.msra.mxu0 0.0
    %1162 = vmatpush.msra.mxu0 0.0
    %1163 = vmatpush.msra.mxu0 0.0
    %1164 = vmatpush.msra.mxu0 0.0
    %1165 = vmatpush.msra.mxu0 0.0
    %1166 = vmatpush.msra.mxu0 0.0
    %1167 = vmatpush.msra.mxu0 0.0
    %1168 = vmatpush.msra.mxu0 %v1148
    %1169 = vmatpush.msra.mxu0 %v1146
    %1170 = vmatmul.f32.gmra.mxu0 %v1152
    %v1171 = vpop.f32.mrf.mxu0
    %v1172 = vadd.f32 0.0, %v1171
    %1173 = vdwg.mxu0
    %1176 = vrot.lane.b32.xlu0 %v924, 120
    %v1177 = vpop.permute.xlu0 %1176
    %1178 = vrot.lane.b32.xlu0 %v927, 120
    %v1179 = vpop.permute.xlu0 %1178
    %v1183 = vsel %vm688, %v1142, 0
    %1185 = vmatpush.msra.mxu0 0.0
    %1186 = vmatpush.msra.mxu0 0.0
    %1187 = vmatpush.msra.mxu0 0.0
    %1188 = vmatpush.msra.mxu0 0.0
    %1189 = vmatpush.msra.mxu0 0.0
    %1190 = vmatpush.msra.mxu0 0.0
    %1191 = vmatpush.msra.mxu0 0.0
    %1192 = vmatpush.msra.mxu0 0.0
    %1193 = vmatpush.msra.mxu0 0.0
    %1194 = vmatpush.msra.mxu0 0.0
    %1195 = vmatpush.msra.mxu0 0.0
    %1196 = vmatpush.msra.mxu0 0.0
    %1197 = vmatpush.msra.mxu0 0.0
    %1198 = vmatpush.msra.mxu0 0.0
    %1199 = vmatpush.msra.mxu0 %v1179
    %1200 = vmatpush.msra.mxu0 %v1177
    %1201 = vmatmul.f32.gmra.mxu0 %v1183
    %v1202 = vpop.f32.mrf.mxu0
    %v1203 = vadd.f32 0.0, %v1202
    %1204 = vdwg.mxu0
    %1205 = vrot.lane.b32.xlu0 %v929, 112
    %v1206 = vpop.permute.xlu0 %1205
    %1207 = vrot.lane.b32.xlu0 %v870, 112
    %v1208 = vpop.permute.xlu0 %1207
    %1209 = vrot.lane.b32.xlu0 %v873, 112
    %v1210 = vpop.permute.xlu0 %1209
    %v1211 = vsel %vm148, %v1206, 0
    %v1213 = vsel %vm148, %v1208, 0
    %v1215 = vsel %vm148, %v1210, 0
    %1217 = vmatpush.xpose.msra.mxu0 0.0
    %1218 = vmatpush.xpose.msra.mxu0 0.0
    %1219 = vmatpush.xpose.msra.mxu0 0.0
    %1220 = vmatpush.xpose.msra.mxu0 0.0
    %1221 = vmatpush.xpose.msra.mxu0 0.0
    %1222 = vmatpush.xpose.msra.mxu0 0.0
    %1223 = vmatpush.xpose.msra.mxu0 0.0
    %1224 = vmatpush.xpose.msra.mxu0 0.0
    %1225 = vmatpush.xpose.msra.mxu0 0.0
    %1226 = vmatpush.xpose.msra.mxu0 0.0
    %1227 = vmatpush.xpose.msra.mxu0 0.0
    %1228 = vmatpush.xpose.msra.mxu0 0.0
    %1229 = vmatpush.xpose.msra.mxu0 0.0
    %1230 = vmatpush.xpose.msra.mxu0 0.0
    %1231 = vmatpush.xpose.msra.mxu0 %v1215
    %1232 = vmatpush.xpose.msra.mxu0 %v1213
    %1233 = vmatmul.f32.gmra.mxu0 %v1211
    %v1234 = vpop.f32.mrf.mxu0
    %v1235 = vadd.f32 0.0, %v1234
    %1236 = vdwg.mxu0
    %1237 = vrot.lane.b32.xlu0 %v930, 112
    %v1238 = vpop.permute.xlu0 %1237
    %1239 = vrot.lane.b32.xlu0 %v876, 112
    %v1240 = vpop.permute.xlu0 %1239
    %1241 = vrot.lane.b32.xlu0 %v879, 112
    %v1242 = vpop.permute.xlu0 %1241
    %v1243 = vsel %vm148, %v1238, 0
    %v1245 = vsel %vm148, %v1240, 0
    %v1247 = vsel %vm148, %v1242, 0
    %1249 = vmatpush.xpose.msra.mxu0 0.0
    %1250 = vmatpush.xpose.msra.mxu0 0.0
    %1251 = vmatpush.xpose.msra.mxu0 0.0
    %1252 = vmatpush.xpose.msra.mxu0 0.0
    %1253 = vmatpush.xpose.msra.mxu0 0.0
    %1254 = vmatpush.xpose.msra.mxu0 0.0
    %1255 = vmatpush.xpose.msra.mxu0 0.0
    %1256 = vmatpush.xpose.msra.mxu0 0.0
    %1257 = vmatpush.xpose.msra.mxu0 0.0
    %1258 = vmatpush.xpose.msra.mxu0 0.0
    %1259 = vmatpush.xpose.msra.mxu0 0.0
    %1260 = vmatpush.xpose.msra.mxu0 0.0
    %1261 = vmatpush.xpose.msra.mxu0 0.0
    %1262 = vmatpush.xpose.msra.mxu0 0.0
    %1263 = vmatpush.xpose.msra.mxu0 %v1247
    %1264 = vmatpush.xpose.msra.mxu0 %v1245
    %1265 = vmatmul.f32.gmra.mxu0 %v1243
    %v1266 = vpop.f32.mrf.mxu0
    %v1267 = vadd.f32 0.0, %v1266
    %1268 = vdwg.mxu0
    %v1269 = vsel %vm688, %v1235, -inf
    %1270 = vmax.xlane.f32.xlu0 %v1269
    %v1271 = vpop.xlane.xlu0 %1270
    %v1272 = vsel %vm688, %v1267, -inf
    %1273 = vmax.xlane.f32.xlu0 %v1272
    %v1274 = vpop.xlane.xlu0 %1273
    %v1275 = vsub.f32 %v1235, %v1271
    %v1276 = vsub.f32 %v1267, %v1274
    %v1277 = vmul.f32 %v1275, 1.442695
    %v1278 = vpow.pop %v1277
    %v1279 = vmul.f32 %v1276, 1.442695
    %v1280 = vpow.pop %v1279
    %v1281 = vsel %vm688, %v1278, 0.0
    %1282 = vadd.xlane.f32.xlu0 %v1281
    %v1283 = vpop.xlane.xlu0 %1282
    %v1284 = vsel %vm688, %v1280, 0.0
    %1285 = vadd.xlane.f32.xlu0 %v1284
    %v1286 = vpop.xlane.xlu0 %1285
    %v1287 = vrcp.pop %v1283
    %v1288 = vrcp.pop %v1286
    %v1289 = vmul.f32 %v1278, %v1287
    %v1290 = vmul.f32 %v1280, %v1288
    %1291 = vrot.lane.b32.xlu0 %v918, 112
    %v1292 = vpop.permute.xlu0 %1291
    %1293 = vrot.lane.b32.xlu0 %v921, 112
    %v1294 = vpop.permute.xlu0 %1293
    %v1298 = vsel %vm688, %v1289, 0
    %1300 = vmatpush.msra.mxu0 0.0
    %1301 = vmatpush.msra.mxu0 0.0
    %1302 = vmatpush.msra.mxu0 0.0
    %1303 = vmatpush.msra.mxu0 0.0
    %1304 = vmatpush.msra.mxu0 0.0
    %1305 = vmatpush.msra.mxu0 0.0
    %1306 = vmatpush.msra.mxu0 0.0
    %1307 = vmatpush.msra.mxu0 0.0
    %1308 = vmatpush.msra.mxu0 0.0
    %1309 = vmatpush.msra.mxu0 0.0
    %1310 = vmatpush.msra.mxu0 0.0
    %1311 = vmatpush.msra.mxu0 0.0
    %1312 = vmatpush.msra.mxu0 0.0
    %1313 = vmatpush.msra.mxu0 0.0
    %1314 = vmatpush.msra.mxu0 %v1294
    %1315 = vmatpush.msra.mxu0 %v1292
    %1316 = vmatmul.f32.gmra.mxu0 %v1298
    %v1317 = vpop.f32.mrf.mxu0
    %v1318 = vadd.f32 0.0, %v1317
    %1319 = vdwg.mxu0
    %1320 = vrot.lane.b32.xlu0 %v924, 112
    %v1321 = vpop.permute.xlu0 %1320
    %1322 = vrot.lane.b32.xlu0 %v927, 112
    %v1323 = vpop.permute.xlu0 %1322
    %v1327 = vsel %vm688, %v1290, 0
    %1329 = vmatpush.msra.mxu0 0.0
    %1330 = vmatpush.msra.mxu0 0.0
    %1331 = vmatpush.msra.mxu0 0.0
    %1332 = vmatpush.msra.mxu0 0.0
    %1333 = vmatpush.msra.mxu0 0.0
    %1334 = vmatpush.msra.mxu0 0.0
    %1335 = vmatpush.msra.mxu0 0.0
    %1336 = vmatpush.msra.mxu0 0.0
    %1337 = vmatpush.msra.mxu0 0.0
    %1338 = vmatpush.msra.mxu0 0.0
    %1339 = vmatpush.msra.mxu0 0.0
    %1340 = vmatpush.msra.mxu0 0.0
    %1341 = vmatpush.msra.mxu0 0.0
    %1342 = vmatpush.msra.mxu0 0.0
    %1343 = vmatpush.msra.mxu0 %v1323
    %1344 = vmatpush.msra.mxu0 %v1321
    %1345 = vmatmul.f32.gmra.mxu0 %v1327
    %v1346 = vpop.f32.mrf.mxu0
    %v1347 = vadd.f32 0.0, %v1346
    %1348 = vdwg.mxu0
    %1349 = vrot.lane.b32.xlu0 %v929, 104
    %v1350 = vpop.permute.xlu0 %1349
    %1351 = vrot.lane.b32.xlu0 %v870, 104
    %v1352 = vpop.permute.xlu0 %1351
    %1353 = vrot.lane.b32.xlu0 %v873, 104
    %v1354 = vpop.permute.xlu0 %1353
    %v1355 = vsel %vm148, %v1350, 0
    %v1357 = vsel %vm148, %v1352, 0
    %v1359 = vsel %vm148, %v1354, 0
    %1361 = vmatpush.xpose.msra.mxu0 0.0
    %1362 = vmatpush.xpose.msra.mxu0 0.0
    %1363 = vmatpush.xpose.msra.mxu0 0.0
    %1364 = vmatpush.xpose.msra.mxu0 0.0
    %1365 = vmatpush.xpose.msra.mxu0 0.0
    %1366 = vmatpush.xpose.msra.mxu0 0.0
    %1367 = vmatpush.xpose.msra.mxu0 0.0
    %1368 = vmatpush.xpose.msra.mxu0 0.0
    %1369 = vmatpush.xpose.msra.mxu0 0.0
    %1370 = vmatpush.xpose.msra.mxu0 0.0
    %1371 = vmatpush.xpose.msra.mxu0 0.0
    %1372 = vmatpush.xpose.msra.mxu0 0.0
    %1373 = vmatpush.xpose.msra.mxu0 0.0
    %1374 = vmatpush.xpose.msra.mxu0 0.0
    %1375 = vmatpush.xpose.msra.mxu0 %v1359
    %1376 = vmatpush.xpose.msra.mxu0 %v1357
    %1377 = vmatmul.f32.gmra.mxu0 %v1355
    %v1378 = vpop.f32.mrf.mxu0
    %v1379 = vadd.f32 0.0, %v1378
    %1380 = vdwg.mxu0
    %1381 = vrot.lane.b32.xlu0 %v930, 104
    %v1382 = vpop.permute.xlu0 %1381
    %1383 = vrot.lane.b32.xlu0 %v876, 104
    %v1384 = vpop.permute.xlu0 %1383
    %1385 = vrot.lane.b32.xlu0 %v879, 104
    %v1386 = vpop.permute.xlu0 %1385
    %v1387 = vsel %vm148, %v1382, 0
    %v1389 = vsel %vm148, %v1384, 0
    %v1391 = vsel %vm148, %v1386, 0
    %1393 = vmatpush.xpose.msra.mxu0 0.0
    %1394 = vmatpush.xpose.msra.mxu0 0.0
    %1395 = vmatpush.xpose.msra.mxu0 0.0
    %1396 = vmatpush.xpose.msra.mxu0 0.0
    %1397 = vmatpush.xpose.msra.mxu0 0.0
    %1398 = vmatpush.xpose.msra.mxu0 0.0
    %1399 = vmatpush.xpose.msra.mxu0 0.0
    %1400 = vmatpush.xpose.msra.mxu0 0.0
    %1401 = vmatpush.xpose.msra.mxu0 0.0
    %1402 = vmatpush.xpose.msra.mxu0 0.0
    %1403 = vmatpush.xpose.msra.mxu0 0.0
    %1404 = vmatpush.xpose.msra.mxu0 0.0
    %1405 = vmatpush.xpose.msra.mxu0 0.0
    %1406 = vmatpush.xpose.msra.mxu0 0.0
    %1407 = vmatpush.xpose.msra.mxu0 %v1391
    %1408 = vmatpush.xpose.msra.mxu0 %v1389
    %1409 = vmatmul.f32.gmra.mxu0 %v1387
    %v1410 = vpop.f32.mrf.mxu0
    %v1411 = vadd.f32 0.0, %v1410
    %1412 = vdwg.mxu0
    %v1413 = vsel %vm688, %v1379, -inf
    %1414 = vmax.xlane.f32.xlu0 %v1413
    %v1415 = vpop.xlane.xlu0 %1414
    %v1416 = vsel %vm688, %v1411, -inf
    %1417 = vmax.xlane.f32.xlu0 %v1416
    %v1418 = vpop.xlane.xlu0 %1417
    %v1419 = vsub.f32 %v1379, %v1415
    %v1420 = vsub.f32 %v1411, %v1418
    %v1421 = vmul.f32 %v1419, 1.442695
    %v1422 = vpow.pop %v1421
    %v1423 = vmul.f32 %v1420, 1.442695
    %v1424 = vpow.pop %v1423
    %v1425 = vsel %vm688, %v1422, 0.0
    %1426 = vadd.xlane.f32.xlu0 %v1425
    %v1427 = vpop.xlane.xlu0 %1426
    %v1428 = vsel %vm688, %v1424, 0.0
    %1429 = vadd.xlane.f32.xlu0 %v1428
    %v1430 = vpop.xlane.xlu0 %1429
    %v1431 = vrcp.pop %v1427
    %v1432 = vrcp.pop %v1430
    %v1433 = vmul.f32 %v1422, %v1431
    %v1434 = vmul.f32 %v1424, %v1432
    %1435 = vrot.lane.b32.xlu0 %v918, 104
    %v1436 = vpop.permute.xlu0 %1435
    %1437 = vrot.lane.b32.xlu0 %v921, 104
    %v1438 = vpop.permute.xlu0 %1437
    %v1442 = vsel %vm688, %v1433, 0
    %1444 = vmatpush.msra.mxu0 0.0
    %1445 = vmatpush.msra.mxu0 0.0
    %1446 = vmatpush.msra.mxu0 0.0
    %1447 = vmatpush.msra.mxu0 0.0
    %1448 = vmatpush.msra.mxu0 0.0
    %1449 = vmatpush.msra.mxu0 0.0
    %1450 = vmatpush.msra.mxu0 0.0
    %1451 = vmatpush.msra.mxu0 0.0
    %1452 = vmatpush.msra.mxu0 0.0
    %1453 = vmatpush.msra.mxu0 0.0
    %1454 = vmatpush.msra.mxu0 0.0
    %1455 = vmatpush.msra.mxu0 0.0
    %1456 = vmatpush.msra.mxu0 0.0
    %1457 = vmatpush.msra.mxu0 0.0
    %1458 = vmatpush.msra.mxu0 %v1438
    %1459 = vmatpush.msra.mxu0 %v1436
    %1460 = vmatmul.f32.gmra.mxu0 %v1442
    %v1461 = vpop.f32.mrf.mxu0
    %v1462 = vadd.f32 0.0, %v1461
    %1463 = vdwg.mxu0
    %1464 = vrot.lane.b32.xlu0 %v924, 104
    %v1465 = vpop.permute.xlu0 %1464
    %1466 = vrot.lane.b32.xlu0 %v927, 104
    %v1467 = vpop.permute.xlu0 %1466
    %v1471 = vsel %vm688, %v1434, 0
    %1473 = vmatpush.msra.mxu0 0.0
    %1474 = vmatpush.msra.mxu0 0.0
    %1475 = vmatpush.msra.mxu0 0.0
    %1476 = vmatpush.msra.mxu0 0.0
    %1477 = vmatpush.msra.mxu0 0.0
    %1478 = vmatpush.msra.mxu0 0.0
    %1479 = vmatpush.msra.mxu0 0.0
    %1480 = vmatpush.msra.mxu0 0.0
    %1481 = vmatpush.msra.mxu0 0.0
    %1482 = vmatpush.msra.mxu0 0.0
    %1483 = vmatpush.msra.mxu0 0.0
    %1484 = vmatpush.msra.mxu0 0.0
    %1485 = vmatpush.msra.mxu0 0.0
    %1486 = vmatpush.msra.mxu0 0.0
    %1487 = vmatpush.msra.mxu0 %v1467
    %1488 = vmatpush.msra.mxu0 %v1465
    %1489 = vmatmul.f32.gmra.mxu0 %v1471
    %v1490 = vpop.f32.mrf.mxu0
    %v1491 = vadd.f32 0.0, %v1490
    %1492 = vdwg.mxu0
    %1495 = vrot.lane.b32.xlu0 %v1172, 8
    %v1496 = vpop.permute.xlu0 %1495
    %1497 = vrot.lane.b32.xlu0 %v1203, 8
    %v1498 = vpop.permute.xlu0 %1497
    %1503 = vrot.lane.b32.xlu0 %v1318, 16
    %v1504 = vpop.permute.xlu0 %1503
    %1505 = vrot.lane.b32.xlu0 %v1347, 16
    %v1506 = vpop.permute.xlu0 %1505
    %1511 = vrot.lane.b32.xlu0 %v1462, 24
    %v1512 = vpop.permute.xlu0 %1511
    %1513 = vrot.lane.b32.xlu0 %v1491, 24
    %v1514 = vpop.permute.xlu0 %1513
    %v1517 = vsel %vm148, %v1032, %v1496
    %v1518 = vsel %vm148, %v1055, %v1498
    %v1519 = vsel %vm688, %v1517, %v1504
    %v1520 = vsel %vm688, %v1518, %v1506
    %v1521 = vsel %vm691, %v1519, %v1512
    %v1522 = vsel %vm691, %v1520, %v1514
    %s1523 = scalar_lea.vmem [#allocation2], 160
    %v1524 = vld [vmem:[%s1523] sm:$0xff]
    %v1525 = vld [vmem:[%s1523 + $0x8] sm:$0xff]
    %v1526 = vld [vmem:[%s1523 + $0x10] sm:$0xff]
    %v1527 = vld [vmem:[%s1523 + $0x18] sm:$0xff]
    %v1528 = vld [vmem:[%s7 + $0x5] sm:$0x1]
    %v1529 = vperm.slane %v1528, 0
    %v1531 = vsel %vm78, %v1521, 0
    %v1534 = vsel %vm78, %v1522, 0
    %1536 = vmatpush.msra.mxu0 0.0
    %1537 = vmatpush.msra.mxu0 0.0
    %1538 = vmatpush.msra.mxu0 0.0
    %1539 = vmatpush.msra.mxu0 0.0
    %1540 = vmatpush.msra.mxu0 0.0
    %1541 = vmatpush.msra.mxu0 0.0
    %1542 = vmatpush.msra.mxu0 0.0
    %1543 = vmatpush.msra.mxu0 0.0
    %1544 = vmatpush.msra.mxu0 0.0
    %1545 = vmatpush.msra.mxu0 0.0
    %1546 = vmatpush.msra.mxu0 0.0
    %1547 = vmatpush.msra.mxu0 0.0
    %1548 = vmatpush.msra.mxu0 %v1527
    %1549 = vmatpush.msra.mxu0 %v1526
    %1550 = vmatpush.msra.mxu0 %v1525
    %1551 = vmatpush.msra.mxu0 %v1524
    %1552 = vmatmul.f32.gmra.mxu0 %v1531
    %v1553 = vpop.f32.mrf.mxu0
    %v1554 = vadd.f32 %v1529, %v1553
    %1555 = vmatmul.f32.gmra.mxu0 %v1534
    %v1556 = vpop.f32.mrf.mxu0
    %v1557 = vadd.f32 %v1529, %v1556
    %1558 = vdwg.mxu0
    %v1559 = vadd.f32 %v793, %v1554
    %v1560 = vadd.f32 %v794, %v1557
    %v1561 = vld [vmem:[%s7 + $0x9] sm:$0x1]
    %v1562 = vld [vmem:[%s7 + $0xa] sm:$0x1]
    %v1563 = vsel %vm78, %v1559, 0.0
    %1564 = vadd.xlane.f32.xlu0 %v1563
    %v1565 = vpop.xlane.xlu0 %1564
    %v1566 = vsel %vm78, %v1560, 0.0
    %1567 = vadd.xlane.f32.xlu0 %v1566
    %v1568 = vpop.xlane.xlu0 %1567
    %v1569 = vmul.f32 %v1565, %v746
    %v1570 = vmul.f32 %v1568, %v746
    %v1571 = vmul.f32 %v1559, %v1559
    %v1572 = vmul.f32 %v1560, %v1560
    %v1573 = vsel %vm78, %v1571, 0.0
    %1574 = vadd.xlane.f32.xlu0 %v1573
    %v1575 = vpop.xlane.xlu0 %1574
    %v1576 = vsel %vm78, %v1572, 0.0
    %1577 = vadd.xlane.f32.xlu0 %v1576
    %v1578 = vpop.xlane.xlu0 %1577
    %v1579 = vmul.f32 %v1575, %v746
    %v1580 = vmul.f32 %v1578, %v746
    %v1581 = vsub.f32 %v1559, %v1569
    %v1582 = vsub.f32 %v1560, %v1570
    %v1583 = vmul.f32 %v1569, %v1569
    %v1584 = vmul.f32 %v1570, %v1570
    %v1585 = vsub.f32 %v1579, %v1583
    %v1586 = vsub.f32 %v1580, %v1584
    %v1587 = vadd.f32 %v1585, 1e-05
    %v1588 = vadd.f32 %v1586, 1e-05
    %v1589 = vrsqrt.pop %v1587
    %v1590 = vmul.f32 %v1589, %v1587
    %v1591 = vmul.f32 %v1590, %v1589
    %v1592 = vmul.f32 0.5, %v1591
    %v1593 = vsub.f32 1.5, %v1592
    %v1594 = vmul.f32 %v1589, %v1593
    %vm1595 = vweird.f32 %v1587
    %vm1596 = vweird.f32 %v1589
    %vm1597 = vmor %vm1595, %vm1596
    %v1598 = vsel %vm1597, %v1589, %v1594
    %v1599 = vrsqrt.pop %v1588
    %v1600 = vmul.f32 %v1599, %v1588
    %v1601 = vmul.f32 %v1600, %v1599
    %v1602 = vmul.f32 0.5, %v1601
    %v1603 = vsub.f32 1.5, %v1602
    %v1604 = vmul.f32 %v1599, %v1603
    %vm1605 = vweird.f32 %v1588
    %vm1606 = vweird.f32 %v1599
    %vm1607 = vmor %vm1605, %vm1606
    %v1608 = vsel %vm1607, %v1599, %v1604
    %v1609 = vmul.f32 %v1581, %v1598
    %v1610 = vmul.f32 %v1582, %v1608
    %v1611 = vperm.slane %v1561, 0
    %v1612 = vmul.f32 %v1609, %v1611
    %v1613 = vmul.f32 %v1610, %v1611
    %v1614 = vperm.slane %v1562, 0
    %v1615 = vadd.f32 %v1612, %v1614
    %v1616 = vadd.f32 %v1613, %v1614
    %v1617 = vld [vmem:[%s8] sm:$0xff]
    %v1618 = vld [vmem:[%s8 + $0x8] sm:$0xff]
    %v1619 = vld [vmem:[%s8 + $0x10] sm:$0xff]
    %v1620 = vld [vmem:[%s8 + $0x18] sm:$0xff]
    %v1621 = vld [vmem:[%s9] sm:$0x1]
    %v1622 = vperm.slane %v1621, 0
    %v1624 = vsel %vm78, %v1615, 0
    %v1627 = vsel %vm78, %v1616, 0
    %1629 = vmatpush.msra.mxu0 0.0
    %1630 = vmatpush.msra.mxu0 0.0
    %1631 = vmatpush.msra.mxu0 0.0
    %1632 = vmatpush.msra.mxu0 0.0
    %1633 = vmatpush.msra.mxu0 0.0
    %1634 = vmatpush.msra.mxu0 0.0
    %1635 = vmatpush.msra.mxu0 0.0
    %1636 = vmatpush.msra.mxu0 0.0
    %1637 = vmatpush.msra.mxu0 0.0
    %1638 = vmatpush.msra.mxu0 0.0
    %1639 = vmatpush.msra.mxu0 0.0
    %1640 = vmatpush.msra.mxu0 0.0
    %1641 = vmatpush.msra.mxu0 %v1620
    %1642 = vmatpush.msra.mxu0 %v1619
    %1643 = vmatpush.msra.mxu0 %v1618
    %1644 = vmatpush.msra.mxu0 %v1617
    %1645 = vmatmul.f32.gmra.mxu0 %v1624
    %v1646 = vpop.f32.mrf.mxu0
    %v1647 = vadd.f32 %v1622, %v1646
    %1648 = vmatmul.f32.gmra.mxu0 %v1627
    %v1649 = vpop.f32.mrf.mxu0
    %v1650 = vadd.f32 %v1622, %v1649
    %1651 = vdwg.mxu0
    %v1652 = vmax.f32 %v1647, 0.0
    %v1653 = vmax.f32 %v1650, 0.0
    %v1654 = vld [vmem:[%s10] sm:$0xff]
    %v1655 = vld [vmem:[%s10 + $0x8] sm:$0xff]
    %v1656 = vld [vmem:[%s10 + $0x10] sm:$0xff]
    %v1657 = vld [vmem:[%s10 + $0x18] sm:$0xff]
    %v1658 = vld [vmem:[%s10 + $0x20] sm:$0xff]
    %v1659 = vld [vmem:[%s10 + $0x28] sm:$0xff]
    %v1660 = vld [vmem:[%s10 + $0x30] sm:$0xff]
    %v1661 = vld [vmem:[%s10 + $0x38] sm:$0xff]
    %v1662 = vld [vmem:[%s7 + $0x6] sm:$0x1]
    %v1663 = vperm.slane %v1662, 0
    %vm1664 = vcmask 523264
    %v1666 = vsel %vm1664, %v1652, 0
    %v1669 = vsel %vm1664, %v1653, 0
    %1671 = vmatpush.msra.mxu0 0.0
    %1672 = vmatpush.msra.mxu0 0.0
    %1673 = vmatpush.msra.mxu0 0.0
    %1674 = vmatpush.msra.mxu0 0.0
    %1675 = vmatpush.msra.mxu0 0.0
    %1676 = vmatpush.msra.mxu0 0.0
    %1677 = vmatpush.msra.mxu0 0.0
    %1678 = vmatpush.msra.mxu0 0.0
    %1679 = vmatpush.msra.mxu0 %v1661
    %1680 = vmatpush.msra.mxu0 %v1660
    %1681 = vmatpush.msra.mxu0 %v1659
    %1682 = vmatpush.msra.mxu0 %v1658
    %1683 = vmatpush.msra.mxu0 %v1657
    %1684 = vmatpush.msra.mxu0 %v1656
    %1685 = vmatpush.msra.mxu0 %v1655
    %1686 = vmatpush.msra.mxu0 %v1654
    %1687 = vmatmul.f32.gmra.mxu0 %v1666
    %v1688 = vpop.f32.mrf.mxu0
    %v1689 = vadd.f32 %v1663, %v1688
    %1690 = vmatmul.f32.gmra.mxu0 %v1669
    %v1691 = vpop.f32.mrf.mxu0
    %v1692 = vadd.f32 %v1663, %v1691
    %1693 = vdwg.mxu0
    %v1694 = vadd.f32 %v1615, %v1689
    %v1695 = vadd.f32 %v1616, %v1692
    %v1696 = vld [vmem:[%s7 + $0xb] sm:$0x1]
    %v1697 = vld [vmem:[%s7 + $0xc] sm:$0x1]
    %v1698 = vsel %vm78, %v1694, 0.0
    %1699 = vadd.xlane.f32.xlu0 %v1698
    %v1700 = vpop.xlane.xlu0 %1699
    %v1701 = vsel %vm78, %v1695, 0.0
    %1702 = vadd.xlane.f32.xlu0 %v1701
    %v1703 = vpop.xlane.xlu0 %1702
    %v1704 = vmul.f32 %v1700, %v746
    %v1705 = vmul.f32 %v1703, %v746
    %v1706 = vmul.f32 %v1694, %v1694
    %v1707 = vmul.f32 %v1695, %v1695
    %v1708 = vsel %vm78, %v1706, 0.0
    %1709 = vadd.xlane.f32.xlu0 %v1708
    %v1710 = vpop.xlane.xlu0 %1709
    %v1711 = vsel %vm78, %v1707, 0.0
    %1712 = vadd.xlane.f32.xlu0 %v1711
    %v1713 = vpop.xlane.xlu0 %1712
    %v1714 = vmul.f32 %v1710, %v746
    %v1715 = vmul.f32 %v1713, %v746
    %v1716 = vsub.f32 %v1694, %v1704
    %v1717 = vsub.f32 %v1695, %v1705
    %v1718 = vmul.f32 %v1704, %v1704
    %v1719 = vmul.f32 %v1705, %v1705
    %v1720 = vsub.f32 %v1714, %v1718
    %v1721 = vsub.f32 %v1715, %v1719
    %v1722 = vadd.f32 %v1720, 1e-05
    %v1723 = vadd.f32 %v1721, 1e-05
    %v1724 = vrsqrt.pop %v1722
    %v1725 = vmul.f32 %v1724, %v1722
    %v1726 = vmul.f32 %v1725, %v1724
    %v1727 = vmul.f32 0.5, %v1726
    %v1728 = vsub.f32 1.5, %v1727
    %v1729 = vmul.f32 %v1724, %v1728
    %vm1730 = vweird.f32 %v1722
    %vm1731 = vweird.f32 %v1724
    %vm1732 = vmor %vm1730, %vm1731
    %v1733 = vsel %vm1732, %v1724, %v1729
    %v1734 = vrsqrt.pop %v1723
    %v1735 = vmul.f32 %v1734, %v1723
    %v1736 = vmul.f32 %v1735, %v1734
    %v1737 = vmul.f32 0.5, %v1736
    %v1738 = vsub.f32 1.5, %v1737
    %v1739 = vmul.f32 %v1734, %v1738
    %vm1740 = vweird.f32 %v1723
    %vm1741 = vweird.f32 %v1734
    %vm1742 = vmor %vm1740, %vm1741
    %v1743 = vsel %vm1742, %v1734, %v1739
    %v1744 = vmul.f32 %v1716, %v1733
    %v1745 = vmul.f32 %v1717, %v1743
    %v1746 = vperm.slane %v1696, 0
    %v1747 = vmul.f32 %v1744, %v1746
    %v1748 = vmul.f32 %v1745, %v1746
    %v1749 = vperm.slane %v1697, 0
    %v1750 = vadd.f32 %v1747, %v1749
    %v1751 = vadd.f32 %v1748, %v1749
    %v1752 = vadd.f32 %v1750, %v60
    %v1753 = vadd.f32 %v1751, %v61
    %s1754 = scalar_lea.vmem %s4, 32
    %v1755 = vld [vmem:[%s1754] sm:$0xff]
    %v1756 = vld [vmem:[%s1754 + $0x8] sm:$0xff]
    %v1757 = vld [vmem:[%s1754 + $0x10] sm:$0xff]
    %v1758 = vld [vmem:[%s1754 + $0x18] sm:$0xff]
    %v1759 = vld [vmem:[%s5 + $0x1] sm:$0x1]
    %v1760 = vperm.slane %v1759, 0
    %v1762 = vsel %vm78, %v1752, 0
    %v1765 = vsel %vm78, %v1753, 0
    %1767 = vmatpush.msra.mxu0 0.0
    %1768 = vmatpush.msra.mxu0 0.0
    %1769 = vmatpush.msra.mxu0 0.0
    %1770 = vmatpush.msra.mxu0 0.0
    %1771 = vmatpush.msra.mxu0 0.0
    %1772 = vmatpush.msra.mxu0 0.0
    %1773 = vmatpush.msra.mxu0 0.0
    %1774 = vmatpush.msra.mxu0 0.0
    %1775 = vmatpush.msra.mxu0 0.0
    %1776 = vmatpush.msra.mxu0 0.0
    %1777 = vmatpush.msra.mxu0 0.0
    %1778 = vmatpush.msra.mxu0 0.0
    %1779 = vmatpush.msra.mxu0 %v1758
    %1780 = vmatpush.msra.mxu0 %v1757
    %1781 = vmatpush.msra.mxu0 %v1756
    %1782 = vmatpush.msra.mxu0 %v1755
    %1783 = vmatmul.f32.gmra.mxu0 %v1762
    %v1784 = vpop.f32.mrf.mxu0
    %v1785 = vadd.f32 %v1760, %v1784
    %1786 = vmatmul.f32.gmra.mxu0 %v1765
    %v1787 = vpop.f32.mrf.mxu0
    %v1788 = vadd.f32 %v1760, %v1787
    %1789 = vdwg.mxu0
    %s1790 = scalar_lea.vmem [#allocation2], 192
    %v1791 = vld [vmem:[%s1790] sm:$0xff]
    %v1792 = vld [vmem:[%s1790 + $0x8] sm:$0xff]
    %v1793 = vld [vmem:[%s1790 + $0x10] sm:$0xff]
    %v1794 = vld [vmem:[%s1790 + $0x18] sm:$0xff]
    %v1795 = vld [vmem:[%s7 + $0xd] sm:$0x1]
    %v1796 = vperm.slane %v1795, 0
    %v1798 = vsel %vm78, %v1750, 0
    %v1801 = vsel %vm78, %v1751, 0
    %1803 = vmatpush.msra.mxu0 0.0
    %1804 = vmatpush.msra.mxu0 0.0
    %1805 = vmatpush.msra.mxu0 0.0
    %1806 = vmatpush.msra.mxu0 0.0
    %1807 = vmatpush.msra.mxu0 0.0
    %1808 = vmatpush.msra.mxu0 0.0
    %1809 = vmatpush.msra.mxu0 0.0
    %1810 = vmatpush.msra.mxu0 0.0
    %1811 = vmatpush.msra.mxu0 0.0
    %1812 = vmatpush.msra.mxu0 0.0
    %1813 = vmatpush.msra.mxu0 0.0
    %1814 = vmatpush.msra.mxu0 0.0
    %1815 = vmatpush.msra.mxu0 %v1794
    %1816 = vmatpush.msra.mxu0 %v1793
    %1817 = vmatpush.msra.mxu0 %v1792
    %1818 = vmatpush.msra.mxu0 %v1791
    %1819 = vmatmul.f32.gmra.mxu0 %v1798
    %v1820 = vpop.f32.mrf.mxu0
    %v1821 = vadd.f32 %v1796, %v1820
    %1822 = vmatmul.f32.gmra.mxu0 %v1801
    %v1823 = vpop.f32.mrf.mxu0
    %v1824 = vadd.f32 %v1796, %v1823
    %1825 = vdwg.mxu0
    %v1826 = vmul.f32 %v1785, 0.35355338
    %v1827 = vmul.f32 %v1788, 0.35355338
    %1829 = vrot.lane.b32.xlu0 %v1785, 96
    %v1830 = vpop.permute.xlu0 %1829
    %v1832 = vsel %vm148, %v1826, 0
    %v1834 = vsel %vm148, %v1830, 0
    %1836 = vmatpush.xpose.msra.mxu0 0.0
    %1837 = vmatpush.xpose.msra.mxu0 0.0
    %1838 = vmatpush.xpose.msra.mxu0 0.0
    %1839 = vmatpush.xpose.msra.mxu0 0.0
    %1840 = vmatpush.xpose.msra.mxu0 0.0
    %1841 = vmatpush.xpose.msra.mxu0 0.0
    %1842 = vmatpush.xpose.msra.mxu0 0.0
    %1843 = vmatpush.xpose.msra.mxu0 0.0
    %1844 = vmatpush.xpose.msra.mxu0 0.0
    %1845 = vmatpush.xpose.msra.mxu0 0.0
    %1846 = vmatpush.xpose.msra.mxu0 0.0
    %1847 = vmatpush.xpose.msra.mxu0 0.0
    %1848 = vmatpush.xpose.msra.mxu0 0.0
    %1849 = vmatpush.xpose.msra.mxu0 0.0
    %1850 = vmatpush.xpose.msra.mxu0 0.0
    %1851 = vmatpush.xpose.msra.mxu0 %v1834
    %1852 = vmatmul.f32.gmra.mxu0 %v1832
    %v1853 = vpop.f32.mrf.mxu0
    %v1854 = vadd.f32 0.0, %v1853
    %1855 = vdwg.mxu0
    %1857 = vrot.lane.b32.xlu0 %v1788, 96
    %v1858 = vpop.permute.xlu0 %1857
    %v1860 = vsel %vm148, %v1827, 0
    %v1862 = vsel %vm148, %v1858, 0
    %1864 = vmatpush.xpose.msra.mxu0 0.0
    %1865 = vmatpush.xpose.msra.mxu0 0.0
    %1866 = vmatpush.xpose.msra.mxu0 0.0
    %1867 = vmatpush.xpose.msra.mxu0 0.0
    %1868 = vmatpush.xpose.msra.mxu0 0.0
    %1869 = vmatpush.xpose.msra.mxu0 0.0
    %1870 = vmatpush.xpose.msra.mxu0 0.0
    %1871 = vmatpush.xpose.msra.mxu0 0.0
    %1872 = vmatpush.xpose.msra.mxu0 0.0
    %1873 = vmatpush.xpose.msra.mxu0 0.0
    %1874 = vmatpush.xpose.msra.mxu0 0.0
    %1875 = vmatpush.xpose.msra.mxu0 0.0
    %1876 = vmatpush.xpose.msra.mxu0 0.0
    %1877 = vmatpush.xpose.msra.mxu0 0.0
    %1878 = vmatpush.xpose.msra.mxu0 0.0
    %1879 = vmatpush.xpose.msra.mxu0 %v1862
    %1880 = vmatmul.f32.gmra.mxu0 %v1860
    %v1881 = vpop.f32.mrf.mxu0
    %v1882 = vadd.f32 0.0, %v1881
    %1883 = vdwg.mxu0
    %v1884 = vsel %vm148, %v1854, -inf
    %1885 = vmax.xlane.f32.xlu0 %v1884
    %v1886 = vpop.xlane.xlu0 %1885
    %v1887 = vsel %vm148, %v1882, -inf
    %1888 = vmax.xlane.f32.xlu0 %v1887
    %v1889 = vpop.xlane.xlu0 %1888
    %v1890 = vsub.f32 %v1854, %v1886
    %v1891 = vsub.f32 %v1882, %v1889
    %v1892 = vmul.f32 %v1890, 1.442695
    %v1893 = vpow.pop %v1892
    %v1894 = vmul.f32 %v1891, 1.442695
    %v1895 = vpow.pop %v1894
    %v1896 = vsel %vm148, %v1893, 0.0
    %1897 = vadd.xlane.f32.xlu0 %v1896
    %v1898 = vpop.xlane.xlu0 %1897
    %v1899 = vsel %vm148, %v1895, 0.0
    %1900 = vadd.xlane.f32.xlu0 %v1899
    %v1901 = vpop.xlane.xlu0 %1900
    %v1902 = vrcp.pop %v1898
    %v1903 = vrcp.pop %v1901
    %v1904 = vmul.f32 %v1893, %v1902
    %v1905 = vmul.f32 %v1895, %v1903
    %v1907 = vsel %vm148, %v1904, 0
    %1909 = vmatpush.msra.mxu0 0.0
    %1910 = vmatpush.msra.mxu0 0.0
    %1911 = vmatpush.msra.mxu0 0.0
    %1912 = vmatpush.msra.mxu0 0.0
    %1913 = vmatpush.msra.mxu0 0.0
    %1914 = vmatpush.msra.mxu0 0.0
    %1915 = vmatpush.msra.mxu0 0.0
    %1916 = vmatpush.msra.mxu0 0.0
    %1917 = vmatpush.msra.mxu0 0.0
    %1918 = vmatpush.msra.mxu0 0.0
    %1919 = vmatpush.msra.mxu0 0.0
    %1920 = vmatpush.msra.mxu0 0.0
    %1921 = vmatpush.msra.mxu0 0.0
    %1922 = vmatpush.msra.mxu0 0.0
    %1923 = vmatpush.msra.mxu0 0.0
    %1924 = vmatpush.msra.mxu0 %v1821
    %1925 = vmatmul.f32.gmra.mxu0 %v1907
    %v1926 = vpop.f32.mrf.mxu0
    %v1927 = vadd.f32 0.0, %v1926
    %1928 = vdwg.mxu0
    %v1930 = vsel %vm148, %v1905, 0
    %1932 = vmatpush.msra.mxu0 0.0
    %1933 = vmatpush.msra.mxu0 0.0
    %1934 = vmatpush.msra.mxu0 0.0
    %1935 = vmatpush.msra.mxu0 0.0
    %1936 = vmatpush.msra.mxu0 0.0
    %1937 = vmatpush.msra.mxu0 0.0
    %1938 = vmatpush.msra.mxu0 0.0
    %1939 = vmatpush.msra.mxu0 0.0
    %1940 = vmatpush.msra.mxu0 0.0
    %1941 = vmatpush.msra.mxu0 0.0
    %1942 = vmatpush.msra.mxu0 0.0
    %1943 = vmatpush.msra.mxu0 0.0
    %1944 = vmatpush.msra.mxu0 0.0
    %1945 = vmatpush.msra.mxu0 0.0
    %1946 = vmatpush.msra.mxu0 0.0
    %1947 = vmatpush.msra.mxu0 %v1824
    %1948 = vmatmul.f32.gmra.mxu0 %v1930
    %v1949 = vpop.f32.mrf.mxu0
    %v1950 = vadd.f32 0.0, %v1949
    %1951 = vdwg.mxu0
    %1952 = vrot.lane.b32.xlu0 %v1826, 120
    %v1953 = vpop.permute.xlu0 %1952
    %1954 = vrot.lane.b32.xlu0 %v1785, 88
    %v1955 = vpop.permute.xlu0 %1954
    %v1956 = vsel %vm148, %v1953, 0
    %v1958 = vsel %vm148, %v1955, 0
    %1960 = vmatpush.xpose.msra.mxu0 0.0
    %1961 = vmatpush.xpose.msra.mxu0 0.0
    %1962 = vmatpush.xpose.msra.mxu0 0.0
    %1963 = vmatpush.xpose.msra.mxu0 0.0
    %1964 = vmatpush.xpose.msra.mxu0 0.0
    %1965 = vmatpush.xpose.msra.mxu0 0.0
    %1966 = vmatpush.xpose.msra.mxu0 0.0
    %1967 = vmatpush.xpose.msra.mxu0 0.0
    %1968 = vmatpush.xpose.msra.mxu0 0.0
    %1969 = vmatpush.xpose.msra.mxu0 0.0
    %1970 = vmatpush.xpose.msra.mxu0 0.0
    %1971 = vmatpush.xpose.msra.mxu0 0.0
    %1972 = vmatpush.xpose.msra.mxu0 0.0
    %1973 = vmatpush.xpose.msra.mxu0 0.0
    %1974 = vmatpush.xpose.msra.mxu0 0.0
    %1975 = vmatpush.xpose.msra.mxu0 %v1958
    %1976 = vmatmul.f32.gmra.mxu0 %v1956
    %v1977 = vpop.f32.mrf.mxu0
    %v1978 = vadd.f32 0.0, %v1977
    %1979 = vdwg.mxu0
    %1980 = vrot.lane.b32.xlu0 %v1827, 120
    %v1981 = vpop.permute.xlu0 %1980
    %1982 = vrot.lane.b32.xlu0 %v1788, 88
    %v1983 = vpop.permute.xlu0 %1982
    %v1984 = vsel %vm148, %v1981, 0
    %v1986 = vsel %vm148, %v1983, 0
    %1988 = vmatpush.xpose.msra.mxu0 0.0
    %1989 = vmatpush.xpose.msra.mxu0 0.0
    %1990 = vmatpush.xpose.msra.mxu0 0.0
    %1991 = vmatpush.xpose.msra.mxu0 0.0
    %1992 = vmatpush.xpose.msra.mxu0 0.0
    %1993 = vmatpush.xpose.msra.mxu0 0.0
    %1994 = vmatpush.xpose.msra.mxu0 0.0
    %1995 = vmatpush.xpose.msra.mxu0 0.0
    %1996 = vmatpush.xpose.msra.mxu0 0.0
    %1997 = vmatpush.xpose.msra.mxu0 0.0
    %1998 = vmatpush.xpose.msra.mxu0 0.0
    %1999 = vmatpush.xpose.msra.mxu0 0.0
    %2000 = vmatpush.xpose.msra.mxu0 0.0
    %2001 = vmatpush.xpose.msra.mxu0 0.0
    %2002 = vmatpush.xpose.msra.mxu0 0.0
    %2003 = vmatpush.xpose.msra.mxu0 %v1986
    %2004 = vmatmul.f32.gmra.mxu0 %v1984
    %v2005 = vpop.f32.mrf.mxu0
    %v2006 = vadd.f32 0.0, %v2005
    %2007 = vdwg.mxu0
    %v2008 = vsel %vm148, %v1978, -inf
    %2009 = vmax.xlane.f32.xlu0 %v2008
    %v2010 = vpop.xlane.xlu0 %2009
    %v2011 = vsel %vm148, %v2006, -inf
    %2012 = vmax.xlane.f32.xlu0 %v2011
    %v2013 = vpop.xlane.xlu0 %2012
    %v2014 = vsub.f32 %v1978, %v2010
    %v2015 = vsub.f32 %v2006, %v2013
    %v2016 = vmul.f32 %v2014, 1.442695
    %v2017 = vpow.pop %v2016
    %v2018 = vmul.f32 %v2015, 1.442695
    %v2019 = vpow.pop %v2018
    %v2020 = vsel %vm148, %v2017, 0.0
    %2021 = vadd.xlane.f32.xlu0 %v2020
    %v2022 = vpop.xlane.xlu0 %2021
    %v2023 = vsel %vm148, %v2019, 0.0
    %2024 = vadd.xlane.f32.xlu0 %v2023
    %v2025 = vpop.xlane.xlu0 %2024
    %v2026 = vrcp.pop %v2022
    %v2027 = vrcp.pop %v2025
    %v2028 = vmul.f32 %v2017, %v2026
    %v2029 = vmul.f32 %v2019, %v2027
    %2031 = vrot.lane.b32.xlu0 %v1821, 120
    %v2032 = vpop.permute.xlu0 %2031
    %v2035 = vsel %vm148, %v2028, 0
    %2037 = vmatpush.msra.mxu0 0.0
    %2038 = vmatpush.msra.mxu0 0.0
    %2039 = vmatpush.msra.mxu0 0.0
    %2040 = vmatpush.msra.mxu0 0.0
    %2041 = vmatpush.msra.mxu0 0.0
    %2042 = vmatpush.msra.mxu0 0.0
    %2043 = vmatpush.msra.mxu0 0.0
    %2044 = vmatpush.msra.mxu0 0.0
    %2045 = vmatpush.msra.mxu0 0.0
    %2046 = vmatpush.msra.mxu0 0.0
    %2047 = vmatpush.msra.mxu0 0.0
    %2048 = vmatpush.msra.mxu0 0.0
    %2049 = vmatpush.msra.mxu0 0.0
    %2050 = vmatpush.msra.mxu0 0.0
    %2051 = vmatpush.msra.mxu0 0.0
    %2052 = vmatpush.msra.mxu0 %v2032
    %2053 = vmatmul.f32.gmra.mxu0 %v2035
    %v2054 = vpop.f32.mrf.mxu0
    %v2055 = vadd.f32 0.0, %v2054
    %2056 = vdwg.mxu0
    %2058 = vrot.lane.b32.xlu0 %v1824, 120
    %v2059 = vpop.permute.xlu0 %2058
    %v2062 = vsel %vm148, %v2029, 0
    %2064 = vmatpush.msra.mxu0 0.0
    %2065 = vmatpush.msra.mxu0 0.0
    %2066 = vmatpush.msra.mxu0 0.0
    %2067 = vmatpush.msra.mxu0 0.0
    %2068 = vmatpush.msra.mxu0 0.0
    %2069 = vmatpush.msra.mxu0 0.0
    %2070 = vmatpush.msra.mxu0 0.0
    %2071 = vmatpush.msra.mxu0 0.0
    %2072 = vmatpush.msra.mxu0 0.0
    %2073 = vmatpush.msra.mxu0 0.0
    %2074 = vmatpush.msra.mxu0 0.0
    %2075 = vmatpush.msra.mxu0 0.0
    %2076 = vmatpush.msra.mxu0 0.0
    %2077 = vmatpush.msra.mxu0 0.0
    %2078 = vmatpush.msra.mxu0 0.0
    %2079 = vmatpush.msra.mxu0 %v2059
    %2080 = vmatmul.f32.gmra.mxu0 %v2062
    %v2081 = vpop.f32.mrf.mxu0
    %v2082 = vadd.f32 0.0, %v2081
    %2083 = vdwg.mxu0
    %2084 = vrot.lane.b32.xlu0 %v1826, 112
    %v2085 = vpop.permute.xlu0 %2084
    %2086 = vrot.lane.b32.xlu0 %v1785, 80
    %v2087 = vpop.permute.xlu0 %2086
    %v2088 = vsel %vm148, %v2085, 0
    %v2090 = vsel %vm148, %v2087, 0
    %2092 = vmatpush.xpose.msra.mxu0 0.0
    %2093 = vmatpush.xpose.msra.mxu0 0.0
    %2094 = vmatpush.xpose.msra.mxu0 0.0
    %2095 = vmatpush.xpose.msra.mxu0 0.0
    %2096 = vmatpush.xpose.msra.mxu0 0.0
    %2097 = vmatpush.xpose.msra.mxu0 0.0
    %2098 = vmatpush.xpose.msra.mxu0 0.0
    %2099 = vmatpush.xpose.msra.mxu0 0.0
    %2100 = vmatpush.xpose.msra.mxu0 0.0
    %2101 = vmatpush.xpose.msra.mxu0 0.0
    %2102 = vmatpush.xpose.msra.mxu0 0.0
    %2103 = vmatpush.xpose.msra.mxu0 0.0
    %2104 = vmatpush.xpose.msra.mxu0 0.0
    %2105 = vmatpush.xpose.msra.mxu0 0.0
    %2106 = vmatpush.xpose.msra.mxu0 0.0
    %2107 = vmatpush.xpose.msra.mxu0 %v2090
    %2108 = vmatmul.f32.gmra.mxu0 %v2088
    %v2109 = vpop.f32.mrf.mxu0
    %v2110 = vadd.f32 0.0, %v2109
    %2111 = vdwg.mxu0
    %2112 = vrot.lane.b32.xlu0 %v1827, 112
    %v2113 = vpop.permute.xlu0 %2112
    %2114 = vrot.lane.b32.xlu0 %v1788, 80
    %v2115 = vpop.permute.xlu0 %2114
    %v2116 = vsel %vm148, %v2113, 0
    %v2118 = vsel %vm148, %v2115, 0
    %2120 = vmatpush.xpose.msra.mxu0 0.0
    %2121 = vmatpush.xpose.msra.mxu0 0.0
    %2122 = vmatpush.xpose.msra.mxu0 0.0
    %2123 = vmatpush.xpose.msra.mxu0 0.0
    %2124 = vmatpush.xpose.msra.mxu0 0.0
    %2125 = vmatpush.xpose.msra.mxu0 0.0
    %2126 = vmatpush.xpose.msra.mxu0 0.0
    %2127 = vmatpush.xpose.msra.mxu0 0.0
    %2128 = vmatpush.xpose.msra.mxu0 0.0
    %2129 = vmatpush.xpose.msra.mxu0 0.0
    %2130 = vmatpush.xpose.msra.mxu0 0.0
    %2131 = vmatpush.xpose.msra.mxu0 0.0
    %2132 = vmatpush.xpose.msra.mxu0 0.0
    %2133 = vmatpush.xpose.msra.mxu0 0.0
    %2134 = vmatpush.xpose.msra.mxu0 0.0
    %2135 = vmatpush.xpose.msra.mxu0 %v2118
    %2136 = vmatmul.f32.gmra.mxu0 %v2116
    %v2137 = vpop.f32.mrf.mxu0
    %v2138 = vadd.f32 0.0, %v2137
    %2139 = vdwg.mxu0
    %v2140 = vsel %vm148, %v2110, -inf
    %2141 = vmax.xlane.f32.xlu0 %v2140
    %v2142 = vpop.xlane.xlu0 %2141
    %v2143 = vsel %vm148, %v2138, -inf
    %2144 = vmax.xlane.f32.xlu0 %v2143
    %v2145 = vpop.xlane.xlu0 %2144
    %v2146 = vsub.f32 %v2110, %v2142
    %v2147 = vsub.f32 %v2138, %v2145
    %v2148 = vmul.f32 %v2146, 1.442695
    %v2149 = vpow.pop %v2148
    %v2150 = vmul.f32 %v2147, 1.442695
    %v2151 = vpow.pop %v2150
    %v2152 = vsel %vm148, %v2149, 0.0
    %2153 = vadd.xlane.f32.xlu0 %v2152
    %v2154 = vpop.xlane.xlu0 %2153
    %v2155 = vsel %vm148, %v2151, 0.0
    %2156 = vadd.xlane.f32.xlu0 %v2155
    %v2157 = vpop.xlane.xlu0 %2156
    %v2158 = vrcp.pop %v2154
    %v2159 = vrcp.pop %v2157
    %v2160 = vmul.f32 %v2149, %v2158
    %v2161 = vmul.f32 %v2151, %v2159
    %2162 = vrot.lane.b32.xlu0 %v1821, 112
    %v2163 = vpop.permute.xlu0 %2162
    %v2166 = vsel %vm148, %v2160, 0
    %2168 = vmatpush.msra.mxu0 0.0
    %2169 = vmatpush.msra.mxu0 0.0
    %2170 = vmatpush.msra.mxu0 0.0
    %2171 = vmatpush.msra.mxu0 0.0
    %2172 = vmatpush.msra.mxu0 0.0
    %2173 = vmatpush.msra.mxu0 0.0
    %2174 = vmatpush.msra.mxu0 0.0
    %2175 = vmatpush.msra.mxu0 0.0
    %2176 = vmatpush.msra.mxu0 0.0
    %2177 = vmatpush.msra.mxu0 0.0
    %2178 = vmatpush.msra.mxu0 0.0
    %2179 = vmatpush.msra.mxu0 0.0
    %2180 = vmatpush.msra.mxu0 0.0
    %2181 = vmatpush.msra.mxu0 0.0
    %2182 = vmatpush.msra.mxu0 0.0
    %2183 = vmatpush.msra.mxu0 %v2163
    %2184 = vmatmul.f32.gmra.mxu0 %v2166
    %v2185 = vpop.f32.mrf.mxu0
    %v2186 = vadd.f32 0.0, %v2185
    %2187 = vdwg.mxu0
    %2188 = vrot.lane.b32.xlu0 %v1824, 112
    %v2189 = vpop.permute.xlu0 %2188
    %v2192 = vsel %vm148, %v2161, 0
    %2194 = vmatpush.msra.mxu0 0.0
    %2195 = vmatpush.msra.mxu0 0.0
    %2196 = vmatpush.msra.mxu0 0.0
    %2197 = vmatpush.msra.mxu0 0.0
    %2198 = vmatpush.msra.mxu0 0.0
    %2199 = vmatpush.msra.mxu0 0.0
    %2200 = vmatpush.msra.mxu0 0.0
    %2201 = vmatpush.msra.mxu0 0.0
    %2202 = vmatpush.msra.mxu0 0.0
    %2203 = vmatpush.msra.mxu0 0.0
    %2204 = vmatpush.msra.mxu0 0.0
    %2205 = vmatpush.msra.mxu0 0.0
    %2206 = vmatpush.msra.mxu0 0.0
    %2207 = vmatpush.msra.mxu0 0.0
    %2208 = vmatpush.msra.mxu0 0.0
    %2209 = vmatpush.msra.mxu0 %v2189
    %2210 = vmatmul.f32.gmra.mxu0 %v2192
    %v2211 = vpop.f32.mrf.mxu0
    %v2212 = vadd.f32 0.0, %v2211
    %2213 = vdwg.mxu0
    %2214 = vrot.lane.b32.xlu0 %v1826, 104
    %v2215 = vpop.permute.xlu0 %2214
    %2216 = vrot.lane.b32.xlu0 %v1785, 72
    %v2217 = vpop.permute.xlu0 %2216
    %v2218 = vsel %vm148, %v2215, 0
    %v2220 = vsel %vm148, %v2217, 0
    %2222 = vmatpush.xpose.msra.mxu0 0.0
    %2223 = vmatpush.xpose.msra.mxu0 0.0
    %2224 = vmatpush.xpose.msra.mxu0 0.0
    %2225 = vmatpush.xpose.msra.mxu0 0.0
    %2226 = vmatpush.xpose.msra.mxu0 0.0
    %2227 = vmatpush.xpose.msra.mxu0 0.0
    %2228 = vmatpush.xpose.msra.mxu0 0.0
    %2229 = vmatpush.xpose.msra.mxu0 0.0
    %2230 = vmatpush.xpose.msra.mxu0 0.0
    %2231 = vmatpush.xpose.msra.mxu0 0.0
    %2232 = vmatpush.xpose.msra.mxu0 0.0
    %2233 = vmatpush.xpose.msra.mxu0 0.0
    %2234 = vmatpush.xpose.msra.mxu0 0.0
    %2235 = vmatpush.xpose.msra.mxu0 0.0
    %2236 = vmatpush.xpose.msra.mxu0 0.0
    %2237 = vmatpush.xpose.msra.mxu0 %v2220
    %2238 = vmatmul.f32.gmra.mxu0 %v2218
    %v2239 = vpop.f32.mrf.mxu0
    %v2240 = vadd.f32 0.0, %v2239
    %2241 = vdwg.mxu0
    %2242 = vrot.lane.b32.xlu0 %v1827, 104
    %v2243 = vpop.permute.xlu0 %2242
    %2244 = vrot.lane.b32.xlu0 %v1788, 72
    %v2245 = vpop.permute.xlu0 %2244
    %v2246 = vsel %vm148, %v2243, 0
    %v2248 = vsel %vm148, %v2245, 0
    %2250 = vmatpush.xpose.msra.mxu0 0.0
    %2251 = vmatpush.xpose.msra.mxu0 0.0
    %2252 = vmatpush.xpose.msra.mxu0 0.0
    %2253 = vmatpush.xpose.msra.mxu0 0.0
    %2254 = vmatpush.xpose.msra.mxu0 0.0
    %2255 = vmatpush.xpose.msra.mxu0 0.0
    %2256 = vmatpush.xpose.msra.mxu0 0.0
    %2257 = vmatpush.xpose.msra.mxu0 0.0
    %2258 = vmatpush.xpose.msra.mxu0 0.0
    %2259 = vmatpush.xpose.msra.mxu0 0.0
    %2260 = vmatpush.xpose.msra.mxu0 0.0
    %2261 = vmatpush.xpose.msra.mxu0 0.0
    %2262 = vmatpush.xpose.msra.mxu0 0.0
    %2263 = vmatpush.xpose.msra.mxu0 0.0
    %2264 = vmatpush.xpose.msra.mxu0 0.0
    %2265 = vmatpush.xpose.msra.mxu0 %v2248
    %2266 = vmatmul.f32.gmra.mxu0 %v2246
    %v2267 = vpop.f32.mrf.mxu0
    %v2268 = vadd.f32 0.0, %v2267
    %2269 = vdwg.mxu0
    %v2270 = vsel %vm148, %v2240, -inf
    %2271 = vmax.xlane.f32.xlu0 %v2270
    %v2272 = vpop.xlane.xlu0 %2271
    %v2273 = vsel %vm148, %v2268, -inf
    %2274 = vmax.xlane.f32.xlu0 %v2273
    %v2275 = vpop.xlane.xlu0 %2274
    %v2276 = vsub.f32 %v2240, %v2272
    %v2277 = vsub.f32 %v2268, %v2275
    %v2278 = vmul.f32 %v2276, 1.442695
    %v2279 = vpow.pop %v2278
    %v2280 = vmul.f32 %v2277, 1.442695
    %v2281 = vpow.pop %v2280
    %v2282 = vsel %vm148, %v2279, 0.0
    %2283 = vadd.xlane.f32.xlu0 %v2282
    %v2284 = vpop.xlane.xlu0 %2283
    %v2285 = vsel %vm148, %v2281, 0.0
    %2286 = vadd.xlane.f32.xlu0 %v2285
    %v2287 = vpop.xlane.xlu0 %2286
    %v2288 = vrcp.pop %v2284
    %v2289 = vrcp.pop %v2287
    %v2290 = vmul.f32 %v2279, %v2288
    %v2291 = vmul.f32 %v2281, %v2289
    %2292 = vrot.lane.b32.xlu0 %v1821, 104
    %v2293 = vpop.permute.xlu0 %2292
    %v2296 = vsel %vm148, %v2290, 0
    %2298 = vmatpush.msra.mxu0 0.0
    %2299 = vmatpush.msra.mxu0 0.0
    %2300 = vmatpush.msra.mxu0 0.0
    %2301 = vmatpush.msra.mxu0 0.0
    %2302 = vmatpush.msra.mxu0 0.0
    %2303 = vmatpush.msra.mxu0 0.0
    %2304 = vmatpush.msra.mxu0 0.0
    %2305 = vmatpush.msra.mxu0 0.0
    %2306 = vmatpush.msra.mxu0 0.0
    %2307 = vmatpush.msra.mxu0 0.0
    %2308 = vmatpush.msra.mxu0 0.0
    %2309 = vmatpush.msra.mxu0 0.0
    %2310 = vmatpush.msra.mxu0 0.0
    %2311 = vmatpush.msra.mxu0 0.0
    %2312 = vmatpush.msra.mxu0 0.0
    %2313 = vmatpush.msra.mxu0 %v2293
    %2314 = vmatmul.f32.gmra.mxu0 %v2296
    %v2315 = vpop.f32.mrf.mxu0
    %v2316 = vadd.f32 0.0, %v2315
    %2317 = vdwg.mxu0
    %2318 = vrot.lane.b32.xlu0 %v1824, 104
    %v2319 = vpop.permute.xlu0 %2318
    %v2322 = vsel %vm148, %v2291, 0
    %2324 = vmatpush.msra.mxu0 0.0
    %2325 = vmatpush.msra.mxu0 0.0
    %2326 = vmatpush.msra.mxu0 0.0
    %2327 = vmatpush.msra.mxu0 0.0
    %2328 = vmatpush.msra.mxu0 0.0
    %2329 = vmatpush.msra.mxu0 0.0
    %2330 = vmatpush.msra.mxu0 0.0
    %2331 = vmatpush.msra.mxu0 0.0
    %2332 = vmatpush.msra.mxu0 0.0
    %2333 = vmatpush.msra.mxu0 0.0
    %2334 = vmatpush.msra.mxu0 0.0
    %2335 = vmatpush.msra.mxu0 0.0
    %2336 = vmatpush.msra.mxu0 0.0
    %2337 = vmatpush.msra.mxu0 0.0
    %2338 = vmatpush.msra.mxu0 0.0
    %2339 = vmatpush.msra.mxu0 %v2319
    %2340 = vmatmul.f32.gmra.mxu0 %v2322
    %v2341 = vpop.f32.mrf.mxu0
    %v2342 = vadd.f32 0.0, %v2341
    %2343 = vdwg.mxu0
    %2346 = vrot.lane.b32.xlu0 %v2055, 8
    %v2347 = vpop.permute.xlu0 %2346
    %2348 = vrot.lane.b32.xlu0 %v2082, 8
    %v2349 = vpop.permute.xlu0 %2348
    %2354 = vrot.lane.b32.xlu0 %v2186, 16
    %v2355 = vpop.permute.xlu0 %2354
    %2356 = vrot.lane.b32.xlu0 %v2212, 16
    %v2357 = vpop.permute.xlu0 %2356
    %2362 = vrot.lane.b32.xlu0 %v2316, 24
    %v2363 = vpop.permute.xlu0 %2362
    %2364 = vrot.lane.b32.xlu0 %v2342, 24
    %v2365 = vpop.permute.xlu0 %2364
    %v2368 = vsel %vm148, %v1927, %v2347
    %v2369 = vsel %vm148, %v1950, %v2349
    %v2370 = vsel %vm688, %v2368, %v2355
    %v2371 = vsel %vm688, %v2369, %v2357
    %v2372 = vsel %vm691, %v2370, %v2363
    %v2373 = vsel %vm691, %v2371, %v2365
    %s2374 = scalar_lea.vmem [#allocation2], 224
    %v2375 = vld [vmem:[%s2374] sm:$0xff]
    %v2376 = vld [vmem:[%s2374 + $0x8] sm:$0xff]
    %v2377 = vld [vmem:[%s2374 + $0x10] sm:$0xff]
    %v2378 = vld [vmem:[%s2374 + $0x18] sm:$0xff]
    %v2379 = vld [vmem:[%s7 + $0xe] sm:$0x1]
    %v2380 = vperm.slane %v2379, 0
    %v2382 = vsel %vm78, %v2372, 0
    %v2385 = vsel %vm78, %v2373, 0
    %2387 = vmatpush.msra.mxu0 0.0
    %2388 = vmatpush.msra.mxu0 0.0
    %2389 = vmatpush.msra.mxu0 0.0
    %2390 = vmatpush.msra.mxu0 0.0
    %2391 = vmatpush.msra.mxu0 0.0
    %2392 = vmatpush.msra.mxu0 0.0
    %2393 = vmatpush.msra.mxu0 0.0
    %2394 = vmatpush.msra.mxu0 0.0
    %2395 = vmatpush.msra.mxu0 0.0
    %2396 = vmatpush.msra.mxu0 0.0
    %2397 = vmatpush.msra.mxu0 0.0
    %2398 = vmatpush.msra.mxu0 0.0
    %2399 = vmatpush.msra.mxu0 %v2378
    %2400 = vmatpush.msra.mxu0 %v2377
    %2401 = vmatpush.msra.mxu0 %v2376
    %2402 = vmatpush.msra.mxu0 %v2375
    %2403 = vmatmul.f32.gmra.mxu0 %v2382
    %v2404 = vpop.f32.mrf.mxu0
    %v2405 = vadd.f32 %v2380, %v2404
    %2406 = vmatmul.f32.gmra.mxu0 %v2385
    %v2407 = vpop.f32.mrf.mxu0
    %v2408 = vadd.f32 %v2380, %v2407
    %2409 = vdwg.mxu0
    %v2410 = vadd.f32 %v1750, %v2405
    %v2411 = vadd.f32 %v1751, %v2408
    %v2412 = vld [vmem:[%s7 + $0x14] sm:$0x1]
    %v2413 = vld [vmem:[%s7 + $0x15] sm:$0x1]
    %v2414 = vsel %vm78, %v2410, 0.0
    %2415 = vadd.xlane.f32.xlu0 %v2414
    %v2416 = vpop.xlane.xlu0 %2415
    %v2417 = vsel %vm78, %v2411, 0.0
    %2418 = vadd.xlane.f32.xlu0 %v2417
    %v2419 = vpop.xlane.xlu0 %2418
    %v2420 = vmul.f32 %v2416, %v746
    %v2421 = vmul.f32 %v2419, %v746
    %v2422 = vmul.f32 %v2410, %v2410
    %v2423 = vmul.f32 %v2411, %v2411
    %v2424 = vsel %vm78, %v2422, 0.0
    %2425 = vadd.xlane.f32.xlu0 %v2424
    %v2426 = vpop.xlane.xlu0 %2425
    %v2427 = vsel %vm78, %v2423, 0.0
    %2428 = vadd.xlane.f32.xlu0 %v2427
    %v2429 = vpop.xlane.xlu0 %2428
    %v2430 = vmul.f32 %v2426, %v746
    %v2431 = vmul.f32 %v2429, %v746
    %v2432 = vsub.f32 %v2410, %v2420
    %v2433 = vsub.f32 %v2411, %v2421
    %v2434 = vmul.f32 %v2420, %v2420
    %v2435 = vmul.f32 %v2421, %v2421
    %v2436 = vsub.f32 %v2430, %v2434
    %v2437 = vsub.f32 %v2431, %v2435
    %v2438 = vadd.f32 %v2436, 1e-05
    %v2439 = vadd.f32 %v2437, 1e-05
    %v2440 = vrsqrt.pop %v2438
    %v2441 = vmul.f32 %v2440, %v2438
    %v2442 = vmul.f32 %v2441, %v2440
    %v2443 = vmul.f32 0.5, %v2442
    %v2444 = vsub.f32 1.5, %v2443
    %v2445 = vmul.f32 %v2440, %v2444
    %vm2446 = vweird.f32 %v2438
    %vm2447 = vweird.f32 %v2440
    %vm2448 = vmor %vm2446, %vm2447
    %v2449 = vsel %vm2448, %v2440, %v2445
    %v2450 = vrsqrt.pop %v2439
    %v2451 = vmul.f32 %v2450, %v2439
    %v2452 = vmul.f32 %v2451, %v2450
    %v2453 = vmul.f32 0.5, %v2452
    %v2454 = vsub.f32 1.5, %v2453
    %v2455 = vmul.f32 %v2450, %v2454
    %vm2456 = vweird.f32 %v2439
    %vm2457 = vweird.f32 %v2450
    %vm2458 = vmor %vm2456, %vm2457
    %v2459 = vsel %vm2458, %v2450, %v2455
    %v2460 = vmul.f32 %v2432, %v2449
    %v2461 = vmul.f32 %v2433, %v2459
    %v2462 = vperm.slane %v2412, 0
    %v2463 = vmul.f32 %v2460, %v2462
    %v2464 = vmul.f32 %v2461, %v2462
    %v2465 = vperm.slane %v2413, 0
    %v2466 = vadd.f32 %v2463, %v2465
    %v2467 = vadd.f32 %v2464, %v2465
    %v2468 = vadd.f32 %v2466, %v60
    %v2469 = vadd.f32 %v2467, %v61
    %s2470 = scalar_lea.vmem [#allocation2], 256
    %v2471 = vld [vmem:[%s2470] sm:$0xff]
    %v2472 = vld [vmem:[%s2470 + $0x8] sm:$0xff]
    %v2473 = vld [vmem:[%s2470 + $0x10] sm:$0xff]
    %v2474 = vld [vmem:[%s2470 + $0x18] sm:$0xff]
    %v2475 = vld [vmem:[%s7 + $0xf] sm:$0x1]
    %v2476 = vperm.slane %v2475, 0
    %v2478 = vsel %vm78, %v2468, 0
    %v2481 = vsel %vm78, %v2469, 0
    %2483 = vmatpush.msra.mxu0 0.0
    %2484 = vmatpush.msra.mxu0 0.0
    %2485 = vmatpush.msra.mxu0 0.0
    %2486 = vmatpush.msra.mxu0 0.0
    %2487 = vmatpush.msra.mxu0 0.0
    %2488 = vmatpush.msra.mxu0 0.0
    %2489 = vmatpush.msra.mxu0 0.0
    %2490 = vmatpush.msra.mxu0 0.0
    %2491 = vmatpush.msra.mxu0 0.0
    %2492 = vmatpush.msra.mxu0 0.0
    %2493 = vmatpush.msra.mxu0 0.0
    %2494 = vmatpush.msra.mxu0 0.0
    %2495 = vmatpush.msra.mxu0 %v2474
    %2496 = vmatpush.msra.mxu0 %v2473
    %2497 = vmatpush.msra.mxu0 %v2472
    %2498 = vmatpush.msra.mxu0 %v2471
    %2499 = vmatmul.f32.gmra.mxu0 %v2478
    %v2500 = vpop.f32.mrf.mxu0
    %v2501 = vadd.f32 %v2476, %v2500
    %2502 = vmatmul.f32.gmra.mxu0 %v2481
    %v2503 = vpop.f32.mrf.mxu0
    %v2504 = vadd.f32 %v2476, %v2503
    %2505 = vdwg.mxu0
    %s2506 = scalar_lea.vmem [#allocation2], 288
    %v2507 = vld [vmem:[%s2506] sm:$0xff]
    %v2508 = vld [vmem:[%s2506 + $0x8] sm:$0xff]
    %v2509 = vld [vmem:[%s2506 + $0x10] sm:$0xff]
    %v2510 = vld [vmem:[%s2506 + $0x18] sm:$0xff]
    %v2511 = vld [vmem:[%s7 + $0x10] sm:$0x1]
    %v2512 = vperm.slane %v2511, 0
    %2513 = vmatpush.msra.mxu0 0.0
    %2514 = vmatpush.msra.mxu0 0.0
    %2515 = vmatpush.msra.mxu0 0.0
    %2516 = vmatpush.msra.mxu0 0.0
    %2517 = vmatpush.msra.mxu0 0.0
    %2518 = vmatpush.msra.mxu0 0.0
    %2519 = vmatpush.msra.mxu0 0.0
    %2520 = vmatpush.msra.mxu0 0.0
    %2521 = vmatpush.msra.mxu0 0.0
    %2522 = vmatpush.msra.mxu0 0.0
    %2523 = vmatpush.msra.mxu0 0.0
    %2524 = vmatpush.msra.mxu0 0.0
    %2525 = vmatpush.msra.mxu0 %v2510
    %2526 = vmatpush.msra.mxu0 %v2509
    %2527 = vmatpush.msra.mxu0 %v2508
    %2528 = vmatpush.msra.mxu0 %v2507
    %2529 = vmatmul.f32.gmra.mxu0 %v841
    %v2530 = vpop.f32.mrf.mxu0
    %v2531 = vadd.f32 %v2512, %v2530
    %2532 = vmatmul.f32.gmra.mxu0 %v844
    %v2533 = vpop.f32.mrf.mxu0
    %v2534 = vadd.f32 %v2512, %v2533
    %2535 = vmatmul.f32.gmra.mxu0 %v847
    %v2536 = vpop.f32.mrf.mxu0
    %v2537 = vadd.f32 %v2512, %v2536
    %2538 = vmatmul.f32.gmra.mxu0 %v850
    %v2539 = vpop.f32.mrf.mxu0
    %v2540 = vadd.f32 %v2512, %v2539
    %2541 = vdwg.mxu0
    %s2542 = scalar_lea.vmem [#allocation2], 320
    %v2543 = vld [vmem:[%s2542] sm:$0xff]
    %v2544 = vld [vmem:[%s2542 + $0x8] sm:$0xff]
    %v2545 = vld [vmem:[%s2542 + $0x10] sm:$0xff]
    %v2546 = vld [vmem:[%s2542 + $0x18] sm:$0xff]
    %v2547 = vld [vmem:[%s7 + $0x11] sm:$0x1]
    %v2548 = vperm.slane %v2547, 0
    %2549 = vmatpush.msra.mxu0 0.0
    %2550 = vmatpush.msra.mxu0 0.0
    %2551 = vmatpush.msra.mxu0 0.0
    %2552 = vmatpush.msra.mxu0 0.0
    %2553 = vmatpush.msra.mxu0 0.0
    %2554 = vmatpush.msra.mxu0 0.0
    %2555 = vmatpush.msra.mxu0 0.0
    %2556 = vmatpush.msra.mxu0 0.0
    %2557 = vmatpush.msra.mxu0 0.0
    %2558 = vmatpush.msra.mxu0 0.0
    %2559 = vmatpush.msra.mxu0 0.0
    %2560 = vmatpush.msra.mxu0 0.0
    %2561 = vmatpush.msra.mxu0 %v2546
    %2562 = vmatpush.msra.mxu0 %v2545
    %2563 = vmatpush.msra.mxu0 %v2544
    %2564 = vmatpush.msra.mxu0 %v2543
    %2565 = vmatmul.f32.gmra.mxu0 %v889
    %v2566 = vpop.f32.mrf.mxu0
    %v2567 = vadd.f32 %v2548, %v2566
    %2568 = vmatmul.f32.gmra.mxu0 %v892
    %v2569 = vpop.f32.mrf.mxu0
    %v2570 = vadd.f32 %v2548, %v2569
    %2571 = vmatmul.f32.gmra.mxu0 %v895
    %v2572 = vpop.f32.mrf.mxu0
    %v2573 = vadd.f32 %v2548, %v2572
    %2574 = vmatmul.f32.gmra.mxu0 %v898
    %v2575 = vpop.f32.mrf.mxu0
    %v2576 = vadd.f32 %v2548, %v2575
    %2577 = vdwg.mxu0
    %v2578 = vmul.f32 %v2501, 0.35355338
    %v2579 = vmul.f32 %v2504, 0.35355338
    %v2581 = vsel %vm148, %v2578, 0
    %v2584 = vsel %vm148, %v2531, 0
    %v2587 = vsel %vm148, %v2534, 0
    %2589 = vmatpush.xpose.msra.mxu0 0.0
    %2590 = vmatpush.xpose.msra.mxu0 0.0
    %2591 = vmatpush.xpose.msra.mxu0 0.0
    %2592 = vmatpush.xpose.msra.mxu0 0.0
    %2593 = vmatpush.xpose.msra.mxu0 0.0
    %2594 = vmatpush.xpose.msra.mxu0 0.0
    %2595 = vmatpush.xpose.msra.mxu0 0.0
    %2596 = vmatpush.xpose.msra.mxu0 0.0
    %2597 = vmatpush.xpose.msra.mxu0 0.0
    %2598 = vmatpush.xpose.msra.mxu0 0.0
    %2599 = vmatpush.xpose.msra.mxu0 0.0
    %2600 = vmatpush.xpose.msra.mxu0 0.0
    %2601 = vmatpush.xpose.msra.mxu0 0.0
    %2602 = vmatpush.xpose.msra.mxu0 0.0
    %2603 = vmatpush.xpose.msra.mxu0 %v2587
    %2604 = vmatpush.xpose.msra.mxu0 %v2584
    %2605 = vmatmul.f32.gmra.mxu0 %v2581
    %v2606 = vpop.f32.mrf.mxu0
    %v2607 = vadd.f32 0.0, %v2606
    %2608 = vdwg.mxu0
    %v2610 = vsel %vm148, %v2579, 0
    %v2613 = vsel %vm148, %v2537, 0
    %v2616 = vsel %vm148, %v2540, 0
    %2618 = vmatpush.xpose.msra.mxu0 0.0
    %2619 = vmatpush.xpose.msra.mxu0 0.0
    %2620 = vmatpush.xpose.msra.mxu0 0.0
    %2621 = vmatpush.xpose.msra.mxu0 0.0
    %2622 = vmatpush.xpose.msra.mxu0 0.0
    %2623 = vmatpush.xpose.msra.mxu0 0.0
    %2624 = vmatpush.xpose.msra.mxu0 0.0
    %2625 = vmatpush.xpose.msra.mxu0 0.0
    %2626 = vmatpush.xpose.msra.mxu0 0.0
    %2627 = vmatpush.xpose.msra.mxu0 0.0
    %2628 = vmatpush.xpose.msra.mxu0 0.0
    %2629 = vmatpush.xpose.msra.mxu0 0.0
    %2630 = vmatpush.xpose.msra.mxu0 0.0
    %2631 = vmatpush.xpose.msra.mxu0 0.0
    %2632 = vmatpush.xpose.msra.mxu0 %v2616
    %2633 = vmatpush.xpose.msra.mxu0 %v2613
    %2634 = vmatmul.f32.gmra.mxu0 %v2610
    %v2635 = vpop.f32.mrf.mxu0
    %v2636 = vadd.f32 0.0, %v2635
    %2637 = vdwg.mxu0
    %v2638 = vsel %vm688, %v2607, -inf
    %2639 = vmax.xlane.f32.xlu0 %v2638
    %v2640 = vpop.xlane.xlu0 %2639
    %v2641 = vsel %vm688, %v2636, -inf
    %2642 = vmax.xlane.f32.xlu0 %v2641
    %v2643 = vpop.xlane.xlu0 %2642
    %v2644 = vsub.f32 %v2607, %v2640
    %v2645 = vsub.f32 %v2636, %v2643
    %v2646 = vmul.f32 %v2644, 1.442695
    %v2647 = vpow.pop %v2646
    %v2648 = vmul.f32 %v2645, 1.442695
    %v2649 = vpow.pop %v2648
    %v2650 = vsel %vm688, %v2647, 0.0
    %2651 = vadd.xlane.f32.xlu0 %v2650
    %v2652 = vpop.xlane.xlu0 %2651
    %v2653 = vsel %vm688, %v2649, 0.0
    %2654 = vadd.xlane.f32.xlu0 %v2653
    %v2655 = vpop.xlane.xlu0 %2654
    %v2656 = vrcp.pop %v2652
    %v2657 = vrcp.pop %v2655
    %v2658 = vmul.f32 %v2647, %v2656
    %v2659 = vmul.f32 %v2649, %v2657
    %v2661 = vsel %vm688, %v2658, 0
    %2663 = vmatpush.msra.mxu0 0.0
    %2664 = vmatpush.msra.mxu0 0.0
    %2665 = vmatpush.msra.mxu0 0.0
    %2666 = vmatpush.msra.mxu0 0.0
    %2667 = vmatpush.msra.mxu0 0.0
    %2668 = vmatpush.msra.mxu0 0.0
    %2669 = vmatpush.msra.mxu0 0.0
    %2670 = vmatpush.msra.mxu0 0.0
    %2671 = vmatpush.msra.mxu0 0.0
    %2672 = vmatpush.msra.mxu0 0.0
    %2673 = vmatpush.msra.mxu0 0.0
    %2674 = vmatpush.msra.mxu0 0.0
    %2675 = vmatpush.msra.mxu0 0.0
    %2676 = vmatpush.msra.mxu0 0.0
    %2677 = vmatpush.msra.mxu0 %v2570
    %2678 = vmatpush.msra.mxu0 %v2567
    %2679 = vmatmul.f32.gmra.mxu0 %v2661
    %v2680 = vpop.f32.mrf.mxu0
    %v2681 = vadd.f32 0.0, %v2680
    %2682 = vdwg.mxu0
    %v2684 = vsel %vm688, %v2659, 0
    %2686 = vmatpush.msra.mxu0 0.0
    %2687 = vmatpush.msra.mxu0 0.0
    %2688 = vmatpush.msra.mxu0 0.0
    %2689 = vmatpush.msra.mxu0 0.0
    %2690 = vmatpush.msra.mxu0 0.0
    %2691 = vmatpush.msra.mxu0 0.0
    %2692 = vmatpush.msra.mxu0 0.0
    %2693 = vmatpush.msra.mxu0 0.0
    %2694 = vmatpush.msra.mxu0 0.0
    %2695 = vmatpush.msra.mxu0 0.0
    %2696 = vmatpush.msra.mxu0 0.0
    %2697 = vmatpush.msra.mxu0 0.0
    %2698 = vmatpush.msra.mxu0 0.0
    %2699 = vmatpush.msra.mxu0 0.0
    %2700 = vmatpush.msra.mxu0 %v2576
    %2701 = vmatpush.msra.mxu0 %v2573
    %2702 = vmatmul.f32.gmra.mxu0 %v2684
    %v2703 = vpop.f32.mrf.mxu0
    %v2704 = vadd.f32 0.0, %v2703
    %2705 = vdwg.mxu0
    %2706 = vrot.lane.b32.xlu0 %v2578, 120
    %v2707 = vpop.permute.xlu0 %2706
    %2708 = vrot.lane.b32.xlu0 %v2531, 120
    %v2709 = vpop.permute.xlu0 %2708
    %2710 = vrot.lane.b32.xlu0 %v2534, 120
    %v2711 = vpop.permute.xlu0 %2710
    %v2712 = vsel %vm148, %v2707, 0
    %v2714 = vsel %vm148, %v2709, 0
    %v2716 = vsel %vm148, %v2711, 0
    %2718 = vmatpush.xpose.msra.mxu0 0.0
    %2719 = vmatpush.xpose.msra.mxu0 0.0
    %2720 = vmatpush.xpose.msra.mxu0 0.0
    %2721 = vmatpush.xpose.msra.mxu0 0.0
    %2722 = vmatpush.xpose.msra.mxu0 0.0
    %2723 = vmatpush.xpose.msra.mxu0 0.0
    %2724 = vmatpush.xpose.msra.mxu0 0.0
    %2725 = vmatpush.xpose.msra.mxu0 0.0
    %2726 = vmatpush.xpose.msra.mxu0 0.0
    %2727 = vmatpush.xpose.msra.mxu0 0.0
    %2728 = vmatpush.xpose.msra.mxu0 0.0
    %2729 = vmatpush.xpose.msra.mxu0 0.0
    %2730 = vmatpush.xpose.msra.mxu0 0.0
    %2731 = vmatpush.xpose.msra.mxu0 0.0
    %2732 = vmatpush.xpose.msra.mxu0 %v2716
    %2733 = vmatpush.xpose.msra.mxu0 %v2714
    %2734 = vmatmul.f32.gmra.mxu0 %v2712
    %v2735 = vpop.f32.mrf.mxu0
    %v2736 = vadd.f32 0.0, %v2735
    %2737 = vdwg.mxu0
    %2738 = vrot.lane.b32.xlu0 %v2579, 120
    %v2739 = vpop.permute.xlu0 %2738
    %2740 = vrot.lane.b32.xlu0 %v2537, 120
    %v2741 = vpop.permute.xlu0 %2740
    %2742 = vrot.lane.b32.xlu0 %v2540, 120
    %v2743 = vpop.permute.xlu0 %2742
    %v2744 = vsel %vm148, %v2739, 0
    %v2746 = vsel %vm148, %v2741, 0
    %v2748 = vsel %vm148, %v2743, 0
    %2750 = vmatpush.xpose.msra.mxu0 0.0
    %2751 = vmatpush.xpose.msra.mxu0 0.0
    %2752 = vmatpush.xpose.msra.mxu0 0.0
    %2753 = vmatpush.xpose.msra.mxu0 0.0
    %2754 = vmatpush.xpose.msra.mxu0 0.0
    %2755 = vmatpush.xpose.msra.mxu0 0.0
    %2756 = vmatpush.xpose.msra.mxu0 0.0
    %2757 = vmatpush.xpose.msra.mxu0 0.0
    %2758 = vmatpush.xpose.msra.mxu0 0.0
    %2759 = vmatpush.xpose.msra.mxu0 0.0
    %2760 = vmatpush.xpose.msra.mxu0 0.0
    %2761 = vmatpush.xpose.msra.mxu0 0.0
    %2762 = vmatpush.xpose.msra.mxu0 0.0
    %2763 = vmatpush.xpose.msra.mxu0 0.0
    %2764 = vmatpush.xpose.msra.mxu0 %v2748
    %2765 = vmatpush.xpose.msra.mxu0 %v2746
    %2766 = vmatmul.f32.gmra.mxu0 %v2744
    %v2767 = vpop.f32.mrf.mxu0
    %v2768 = vadd.f32 0.0, %v2767
    %2769 = vdwg.mxu0
    %v2770 = vsel %vm688, %v2736, -inf
    %2771 = vmax.xlane.f32.xlu0 %v2770
    %v2772 = vpop.xlane.xlu0 %2771
    %v2773 = vsel %vm688, %v2768, -inf
    %2774 = vmax.xlane.f32.xlu0 %v2773
    %v2775 = vpop.xlane.xlu0 %2774
    %v2776 = vsub.f32 %v2736, %v2772
    %v2777 = vsub.f32 %v2768, %v2775
    %v2778 = vmul.f32 %v2776, 1.442695
    %v2779 = vpow.pop %v2778
    %v2780 = vmul.f32 %v2777, 1.442695
    %v2781 = vpow.pop %v2780
    %v2782 = vsel %vm688, %v2779, 0.0
    %2783 = vadd.xlane.f32.xlu0 %v2782
    %v2784 = vpop.xlane.xlu0 %2783
    %v2785 = vsel %vm688, %v2781, 0.0
    %2786 = vadd.xlane.f32.xlu0 %v2785
    %v2787 = vpop.xlane.xlu0 %2786
    %v2788 = vrcp.pop %v2784
    %v2789 = vrcp.pop %v2787
    %v2790 = vmul.f32 %v2779, %v2788
    %v2791 = vmul.f32 %v2781, %v2789
    %2794 = vrot.lane.b32.xlu0 %v2567, 120
    %v2795 = vpop.permute.xlu0 %2794
    %2796 = vrot.lane.b32.xlu0 %v2570, 120
    %v2797 = vpop.permute.xlu0 %2796
    %v2801 = vsel %vm688, %v2790, 0
    %2803 = vmatpush.msra.mxu0 0.0
    %2804 = vmatpush.msra.mxu0 0.0
    %2805 = vmatpush.msra.mxu0 0.0
    %2806 = vmatpush.msra.mxu0 0.0
    %2807 = vmatpush.msra.mxu0 0.0
    %2808 = vmatpush.msra.mxu0 0.0
    %2809 = vmatpush.msra.mxu0 0.0
    %2810 = vmatpush.msra.mxu0 0.0
    %2811 = vmatpush.msra.mxu0 0.0
    %2812 = vmatpush.msra.mxu0 0.0
    %2813 = vmatpush.msra.mxu0 0.0
    %2814 = vmatpush.msra.mxu0 0.0
    %2815 = vmatpush.msra.mxu0 0.0
    %2816 = vmatpush.msra.mxu0 0.0
    %2817 = vmatpush.msra.mxu0 %v2797
    %2818 = vmatpush.msra.mxu0 %v2795
    %2819 = vmatmul.f32.gmra.mxu0 %v2801
    %v2820 = vpop.f32.mrf.mxu0
    %v2821 = vadd.f32 0.0, %v2820
    %2822 = vdwg.mxu0
    %2825 = vrot.lane.b32.xlu0 %v2573, 120
    %v2826 = vpop.permute.xlu0 %2825
    %2827 = vrot.lane.b32.xlu0 %v2576, 120
    %v2828 = vpop.permute.xlu0 %2827
    %v2832 = vsel %vm688, %v2791, 0
    %2834 = vmatpush.msra.mxu0 0.0
    %2835 = vmatpush.msra.mxu0 0.0
    %2836 = vmatpush.msra.mxu0 0.0
    %2837 = vmatpush.msra.mxu0 0.0
    %2838 = vmatpush.msra.mxu0 0.0
    %2839 = vmatpush.msra.mxu0 0.0
    %2840 = vmatpush.msra.mxu0 0.0
    %2841 = vmatpush.msra.mxu0 0.0
    %2842 = vmatpush.msra.mxu0 0.0
    %2843 = vmatpush.msra.mxu0 0.0
    %2844 = vmatpush.msra.mxu0 0.0
    %2845 = vmatpush.msra.mxu0 0.0
    %2846 = vmatpush.msra.mxu0 0.0
    %2847 = vmatpush.msra.mxu0 0.0
    %2848 = vmatpush.msra.mxu0 %v2828
    %2849 = vmatpush.msra.mxu0 %v2826
    %2850 = vmatmul.f32.gmra.mxu0 %v2832
    %v2851 = vpop.f32.mrf.mxu0
    %v2852 = vadd.f32 0.0, %v2851
    %2853 = vdwg.mxu0
    %2854 = vrot.lane.b32.xlu0 %v2578, 112
    %v2855 = vpop.permute.xlu0 %2854
    %2856 = vrot.lane.b32.xlu0 %v2531, 112
    %v2857 = vpop.permute.xlu0 %2856
    %2858 = vrot.lane.b32.xlu0 %v2534, 112
    %v2859 = vpop.permute.xlu0 %2858
    %v2860 = vsel %vm148, %v2855, 0
    %v2862 = vsel %vm148, %v2857, 0
    %v2864 = vsel %vm148, %v2859, 0
    %2866 = vmatpush.xpose.msra.mxu0 0.0
    %2867 = vmatpush.xpose.msra.mxu0 0.0
    %2868 = vmatpush.xpose.msra.mxu0 0.0
    %2869 = vmatpush.xpose.msra.mxu0 0.0
    %2870 = vmatpush.xpose.msra.mxu0 0.0
    %2871 = vmatpush.xpose.msra.mxu0 0.0
    %2872 = vmatpush.xpose.msra.mxu0 0.0
    %2873 = vmatpush.xpose.msra.mxu0 0.0
    %2874 = vmatpush.xpose.msra.mxu0 0.0
    %2875 = vmatpush.xpose.msra.mxu0 0.0
    %2876 = vmatpush.xpose.msra.mxu0 0.0
    %2877 = vmatpush.xpose.msra.mxu0 0.0
    %2878 = vmatpush.xpose.msra.mxu0 0.0
    %2879 = vmatpush.xpose.msra.mxu0 0.0
    %2880 = vmatpush.xpose.msra.mxu0 %v2864
    %2881 = vmatpush.xpose.msra.mxu0 %v2862
    %2882 = vmatmul.f32.gmra.mxu0 %v2860
    %v2883 = vpop.f32.mrf.mxu0
    %v2884 = vadd.f32 0.0, %v2883
    %2885 = vdwg.mxu0
    %2886 = vrot.lane.b32.xlu0 %v2579, 112
    %v2887 = vpop.permute.xlu0 %2886
    %2888 = vrot.lane.b32.xlu0 %v2537, 112
    %v2889 = vpop.permute.xlu0 %2888
    %2890 = vrot.lane.b32.xlu0 %v2540, 112
    %v2891 = vpop.permute.xlu0 %2890
    %v2892 = vsel %vm148, %v2887, 0
    %v2894 = vsel %vm148, %v2889, 0
    %v2896 = vsel %vm148, %v2891, 0
    %2898 = vmatpush.xpose.msra.mxu0 0.0
    %2899 = vmatpush.xpose.msra.mxu0 0.0
    %2900 = vmatpush.xpose.msra.mxu0 0.0
    %2901 = vmatpush.xpose.msra.mxu0 0.0
    %2902 = vmatpush.xpose.msra.mxu0 0.0
    %2903 = vmatpush.xpose.msra.mxu0 0.0
    %2904 = vmatpush.xpose.msra.mxu0 0.0
    %2905 = vmatpush.xpose.msra.mxu0 0.0
    %2906 = vmatpush.xpose.msra.mxu0 0.0
    %2907 = vmatpush.xpose.msra.mxu0 0.0
    %2908 = vmatpush.xpose.msra.mxu0 0.0
    %2909 = vmatpush.xpose.msra.mxu0 0.0
    %2910 = vmatpush.xpose.msra.mxu0 0.0
    %2911 = vmatpush.xpose.msra.mxu0 0.0
    %2912 = vmatpush.xpose.msra.mxu0 %v2896
    %2913 = vmatpush.xpose.msra.mxu0 %v2894
    %2914 = vmatmul.f32.gmra.mxu0 %v2892
    %v2915 = vpop.f32.mrf.mxu0
    %v2916 = vadd.f32 0.0, %v2915
    %2917 = vdwg.mxu0
    %v2918 = vsel %vm688, %v2884, -inf
    %2919 = vmax.xlane.f32.xlu0 %v2918
    %v2920 = vpop.xlane.xlu0 %2919
    %v2921 = vsel %vm688, %v2916, -inf
    %2922 = vmax.xlane.f32.xlu0 %v2921
    %v2923 = vpop.xlane.xlu0 %2922
    %v2924 = vsub.f32 %v2884, %v2920
    %v2925 = vsub.f32 %v2916, %v2923
    %v2926 = vmul.f32 %v2924, 1.442695
    %v2927 = vpow.pop %v2926
    %v2928 = vmul.f32 %v2925, 1.442695
    %v2929 = vpow.pop %v2928
    %v2930 = vsel %vm688, %v2927, 0.0
    %2931 = vadd.xlane.f32.xlu0 %v2930
    %v2932 = vpop.xlane.xlu0 %2931
    %v2933 = vsel %vm688, %v2929, 0.0
    %2934 = vadd.xlane.f32.xlu0 %v2933
    %v2935 = vpop.xlane.xlu0 %2934
    %v2936 = vrcp.pop %v2932
    %v2937 = vrcp.pop %v2935
    %v2938 = vmul.f32 %v2927, %v2936
    %v2939 = vmul.f32 %v2929, %v2937
    %2940 = vrot.lane.b32.xlu0 %v2567, 112
    %v2941 = vpop.permute.xlu0 %2940
    %2942 = vrot.lane.b32.xlu0 %v2570, 112
    %v2943 = vpop.permute.xlu0 %2942
    %v2947 = vsel %vm688, %v2938, 0
    %2949 = vmatpush.msra.mxu0 0.0
    %2950 = vmatpush.msra.mxu0 0.0
    %2951 = vmatpush.msra.mxu0 0.0
    %2952 = vmatpush.msra.mxu0 0.0
    %2953 = vmatpush.msra.mxu0 0.0
    %2954 = vmatpush.msra.mxu0 0.0
    %2955 = vmatpush.msra.mxu0 0.0
    %2956 = vmatpush.msra.mxu0 0.0
    %2957 = vmatpush.msra.mxu0 0.0
    %2958 = vmatpush.msra.mxu0 0.0
    %2959 = vmatpush.msra.mxu0 0.0
    %2960 = vmatpush.msra.mxu0 0.0
    %2961 = vmatpush.msra.mxu0 0.0
    %2962 = vmatpush.msra.mxu0 0.0
    %2963 = vmatpush.msra.mxu0 %v2943
    %2964 = vmatpush.msra.mxu0 %v2941
    %2965 = vmatmul.f32.gmra.mxu0 %v2947
    %v2966 = vpop.f32.mrf.mxu0
    %v2967 = vadd.f32 0.0, %v2966
    %2968 = vdwg.mxu0
    %2969 = vrot.lane.b32.xlu0 %v2573, 112
    %v2970 = vpop.permute.xlu0 %2969
    %2971 = vrot.lane.b32.xlu0 %v2576, 112
    %v2972 = vpop.permute.xlu0 %2971
    %v2976 = vsel %vm688, %v2939, 0
    %2978 = vmatpush.msra.mxu0 0.0
    %2979 = vmatpush.msra.mxu0 0.0
    %2980 = vmatpush.msra.mxu0 0.0
    %2981 = vmatpush.msra.mxu0 0.0
    %2982 = vmatpush.msra.mxu0 0.0
    %2983 = vmatpush.msra.mxu0 0.0
    %2984 = vmatpush.msra.mxu0 0.0
    %2985 = vmatpush.msra.mxu0 0.0
    %2986 = vmatpush.msra.mxu0 0.0
    %2987 = vmatpush.msra.mxu0 0.0
    %2988 = vmatpush.msra.mxu0 0.0
    %2989 = vmatpush.msra.mxu0 0.0
    %2990 = vmatpush.msra.mxu0 0.0
    %2991 = vmatpush.msra.mxu0 0.0
    %2992 = vmatpush.msra.mxu0 %v2972
    %2993 = vmatpush.msra.mxu0 %v2970
    %2994 = vmatmul.f32.gmra.mxu0 %v2976
    %v2995 = vpop.f32.mrf.mxu0
    %v2996 = vadd.f32 0.0, %v2995
    %2997 = vdwg.mxu0
    %2998 = vrot.lane.b32.xlu0 %v2578, 104
    %v2999 = vpop.permute.xlu0 %2998
    %3000 = vrot.lane.b32.xlu0 %v2531, 104
    %v3001 = vpop.permute.xlu0 %3000
    %3002 = vrot.lane.b32.xlu0 %v2534, 104
    %v3003 = vpop.permute.xlu0 %3002
    %v3004 = vsel %vm148, %v2999, 0
    %v3006 = vsel %vm148, %v3001, 0
    %v3008 = vsel %vm148, %v3003, 0
    %3010 = vmatpush.xpose.msra.mxu0 0.0
    %3011 = vmatpush.xpose.msra.mxu0 0.0
    %3012 = vmatpush.xpose.msra.mxu0 0.0
    %3013 = vmatpush.xpose.msra.mxu0 0.0
    %3014 = vmatpush.xpose.msra.mxu0 0.0
    %3015 = vmatpush.xpose.msra.mxu0 0.0
    %3016 = vmatpush.xpose.msra.mxu0 0.0
    %3017 = vmatpush.xpose.msra.mxu0 0.0
    %3018 = vmatpush.xpose.msra.mxu0 0.0
    %3019 = vmatpush.xpose.msra.mxu0 0.0
    %3020 = vmatpush.xpose.msra.mxu0 0.0
    %3021 = vmatpush.xpose.msra.mxu0 0.0
    %3022 = vmatpush.xpose.msra.mxu0 0.0
    %3023 = vmatpush.xpose.msra.mxu0 0.0
    %3024 = vmatpush.xpose.msra.mxu0 %v3008
    %3025 = vmatpush.xpose.msra.mxu0 %v3006
    %3026 = vmatmul.f32.gmra.mxu0 %v3004
    %v3027 = vpop.f32.mrf.mxu0
    %v3028 = vadd.f32 0.0, %v3027
    %3029 = vdwg.mxu0
    %3030 = vrot.lane.b32.xlu0 %v2579, 104
    %v3031 = vpop.permute.xlu0 %3030
    %3032 = vrot.lane.b32.xlu0 %v2537, 104
    %v3033 = vpop.permute.xlu0 %3032
    %3034 = vrot.lane.b32.xlu0 %v2540, 104
    %v3035 = vpop.permute.xlu0 %3034
    %v3036 = vsel %vm148, %v3031, 0
    %v3038 = vsel %vm148, %v3033, 0
    %v3040 = vsel %vm148, %v3035, 0
    %3042 = vmatpush.xpose.msra.mxu0 0.0
    %3043 = vmatpush.xpose.msra.mxu0 0.0
    %3044 = vmatpush.xpose.msra.mxu0 0.0
    %3045 = vmatpush.xpose.msra.mxu0 0.0
    %3046 = vmatpush.xpose.msra.mxu0 0.0
    %3047 = vmatpush.xpose.msra.mxu0 0.0
    %3048 = vmatpush.xpose.msra.mxu0 0.0
    %3049 = vmatpush.xpose.msra.mxu0 0.0
    %3050 = vmatpush.xpose.msra.mxu0 0.0
    %3051 = vmatpush.xpose.msra.mxu0 0.0
    %3052 = vmatpush.xpose.msra.mxu0 0.0
    %3053 = vmatpush.xpose.msra.mxu0 0.0
    %3054 = vmatpush.xpose.msra.mxu0 0.0
    %3055 = vmatpush.xpose.msra.mxu0 0.0
    %3056 = vmatpush.xpose.msra.mxu0 %v3040
    %3057 = vmatpush.xpose.msra.mxu0 %v3038
    %3058 = vmatmul.f32.gmra.mxu0 %v3036
    %v3059 = vpop.f32.mrf.mxu0
    %v3060 = vadd.f32 0.0, %v3059
    %3061 = vdwg.mxu0
    %v3062 = vsel %vm688, %v3028, -inf
    %3063 = vmax.xlane.f32.xlu0 %v3062
    %v3064 = vpop.xlane.xlu0 %3063
    %v3065 = vsel %vm688, %v3060, -inf
    %3066 = vmax.xlane.f32.xlu0 %v3065
    %v3067 = vpop.xlane.xlu0 %3066
    %v3068 = vsub.f32 %v3028, %v3064
    %v3069 = vsub.f32 %v3060, %v3067
    %v3070 = vmul.f32 %v3068, 1.442695
    %v3071 = vpow.pop %v3070
    %v3072 = vmul.f32 %v3069, 1.442695
    %v3073 = vpow.pop %v3072
    %v3074 = vsel %vm688, %v3071, 0.0
    %3075 = vadd.xlane.f32.xlu0 %v3074
    %v3076 = vpop.xlane.xlu0 %3075
    %v3077 = vsel %vm688, %v3073, 0.0
    %3078 = vadd.xlane.f32.xlu0 %v3077
    %v3079 = vpop.xlane.xlu0 %3078
    %v3080 = vrcp.pop %v3076
    %v3081 = vrcp.pop %v3079
    %v3082 = vmul.f32 %v3071, %v3080
    %v3083 = vmul.f32 %v3073, %v3081
    %3084 = vrot.lane.b32.xlu0 %v2567, 104
    %v3085 = vpop.permute.xlu0 %3084
    %3086 = vrot.lane.b32.xlu0 %v2570, 104
    %v3087 = vpop.permute.xlu0 %3086
    %v3091 = vsel %vm688, %v3082, 0
    %3093 = vmatpush.msra.mxu0 0.0
    %3094 = vmatpush.msra.mxu0 0.0
    %3095 = vmatpush.msra.mxu0 0.0
    %3096 = vmatpush.msra.mxu0 0.0
    %3097 = vmatpush.msra.mxu0 0.0
    %3098 = vmatpush.msra.mxu0 0.0
    %3099 = vmatpush.msra.mxu0 0.0
    %3100 = vmatpush.msra.mxu0 0.0
    %3101 = vmatpush.msra.mxu0 0.0
    %3102 = vmatpush.msra.mxu0 0.0
    %3103 = vmatpush.msra.mxu0 0.0
    %3104 = vmatpush.msra.mxu0 0.0
    %3105 = vmatpush.msra.mxu0 0.0
    %3106 = vmatpush.msra.mxu0 0.0
    %3107 = vmatpush.msra.mxu0 %v3087
    %3108 = vmatpush.msra.mxu0 %v3085
    %3109 = vmatmul.f32.gmra.mxu0 %v3091
    %v3110 = vpop.f32.mrf.mxu0
    %v3111 = vadd.f32 0.0, %v3110
    %3112 = vdwg.mxu0
    %3113 = vrot.lane.b32.xlu0 %v2573, 104
    %v3114 = vpop.permute.xlu0 %3113
    %3115 = vrot.lane.b32.xlu0 %v2576, 104
    %v3116 = vpop.permute.xlu0 %3115
    %v3120 = vsel %vm688, %v3083, 0
    %3122 = vmatpush.msra.mxu0 0.0
    %3123 = vmatpush.msra.mxu0 0.0
    %3124 = vmatpush.msra.mxu0 0.0
    %3125 = vmatpush.msra.mxu0 0.0
    %3126 = vmatpush.msra.mxu0 0.0
    %3127 = vmatpush.msra.mxu0 0.0
    %3128 = vmatpush.msra.mxu0 0.0
    %3129 = vmatpush.msra.mxu0 0.0
    %3130 = vmatpush.msra.mxu0 0.0
    %3131 = vmatpush.msra.mxu0 0.0
    %3132 = vmatpush.msra.mxu0 0.0
    %3133 = vmatpush.msra.mxu0 0.0
    %3134 = vmatpush.msra.mxu0 0.0
    %3135 = vmatpush.msra.mxu0 0.0
    %3136 = vmatpush.msra.mxu0 %v3116
    %3137 = vmatpush.msra.mxu0 %v3114
    %3138 = vmatmul.f32.gmra.mxu0 %v3120
    %v3139 = vpop.f32.mrf.mxu0
    %v3140 = vadd.f32 0.0, %v3139
    %3141 = vdwg.mxu0
    %3144 = vrot.lane.b32.xlu0 %v2821, 8
    %v3145 = vpop.permute.xlu0 %3144
    %3146 = vrot.lane.b32.xlu0 %v2852, 8
    %v3147 = vpop.permute.xlu0 %3146
    %3152 = vrot.lane.b32.xlu0 %v2967, 16
    %v3153 = vpop.permute.xlu0 %3152
    %3154 = vrot.lane.b32.xlu0 %v2996, 16
    %v3155 = vpop.permute.xlu0 %3154
    %3160 = vrot.lane.b32.xlu0 %v3111, 24
    %v3161 = vpop.permute.xlu0 %3160
    %3162 = vrot.lane.b32.xlu0 %v3140, 24
    %v3163 = vpop.permute.xlu0 %3162
    %v3166 = vsel %vm148, %v2681, %v3145
    %v3167 = vsel %vm148, %v2704, %v3147
    %v3168 = vsel %vm688, %v3166, %v3153
    %v3169 = vsel %vm688, %v3167, %v3155
    %v3170 = vsel %vm691, %v3168, %v3161
    %v3171 = vsel %vm691, %v3169, %v3163
    %s3172 = scalar_lea.vmem [#allocation2], 352
    %v3173 = vld [vmem:[%s3172] sm:$0xff]
    %v3174 = vld [vmem:[%s3172 + $0x8] sm:$0xff]
    %v3175 = vld [vmem:[%s3172 + $0x10] sm:$0xff]
    %v3176 = vld [vmem:[%s3172 + $0x18] sm:$0xff]
    %v3177 = vld [vmem:[%s7 + $0x12] sm:$0x1]
    %v3178 = vperm.slane %v3177, 0
    %v3180 = vsel %vm78, %v3170, 0
    %v3183 = vsel %vm78, %v3171, 0
    %3185 = vmatpush.msra.mxu0 0.0
    %3186 = vmatpush.msra.mxu0 0.0
    %3187 = vmatpush.msra.mxu0 0.0
    %3188 = vmatpush.msra.mxu0 0.0
    %3189 = vmatpush.msra.mxu0 0.0
    %3190 = vmatpush.msra.mxu0 0.0
    %3191 = vmatpush.msra.mxu0 0.0
    %3192 = vmatpush.msra.mxu0 0.0
    %3193 = vmatpush.msra.mxu0 0.0
    %3194 = vmatpush.msra.mxu0 0.0
    %3195 = vmatpush.msra.mxu0 0.0
    %3196 = vmatpush.msra.mxu0 0.0
    %3197 = vmatpush.msra.mxu0 %v3176
    %3198 = vmatpush.msra.mxu0 %v3175
    %3199 = vmatpush.msra.mxu0 %v3174
    %3200 = vmatpush.msra.mxu0 %v3173
    %3201 = vmatmul.f32.gmra.mxu0 %v3180
    %v3202 = vpop.f32.mrf.mxu0
    %v3203 = vadd.f32 %v3178, %v3202
    %3204 = vmatmul.f32.gmra.mxu0 %v3183
    %v3205 = vpop.f32.mrf.mxu0
    %v3206 = vadd.f32 %v3178, %v3205
    %3207 = vdwg.mxu0
    %v3208 = vadd.f32 %v2466, %v3203
    %v3209 = vadd.f32 %v2467, %v3206
    %v3210 = vld [vmem:[%s7 + $0x16] sm:$0x1]
    %v3211 = vld [vmem:[%s7 + $0x17] sm:$0x1]
    %v3212 = vsel %vm78, %v3208, 0.0
    %3213 = vadd.xlane.f32.xlu0 %v3212
    %v3214 = vpop.xlane.xlu0 %3213
    %v3215 = vsel %vm78, %v3209, 0.0
    %3216 = vadd.xlane.f32.xlu0 %v3215
    %v3217 = vpop.xlane.xlu0 %3216
    %v3218 = vmul.f32 %v3214, %v746
    %v3219 = vmul.f32 %v3217, %v746
    %v3220 = vmul.f32 %v3208, %v3208
    %v3221 = vmul.f32 %v3209, %v3209
    %v3222 = vsel %vm78, %v3220, 0.0
    %3223 = vadd.xlane.f32.xlu0 %v3222
    %v3224 = vpop.xlane.xlu0 %3223
    %v3225 = vsel %vm78, %v3221, 0.0
    %3226 = vadd.xlane.f32.xlu0 %v3225
    %v3227 = vpop.xlane.xlu0 %3226
    %v3228 = vmul.f32 %v3224, %v746
    %v3229 = vmul.f32 %v3227, %v746
    %v3230 = vsub.f32 %v3208, %v3218
    %v3231 = vsub.f32 %v3209, %v3219
    %v3232 = vmul.f32 %v3218, %v3218
    %v3233 = vmul.f32 %v3219, %v3219
    %v3234 = vsub.f32 %v3228, %v3232
    %v3235 = vsub.f32 %v3229, %v3233
    %v3236 = vadd.f32 %v3234, 1e-05
    %v3237 = vadd.f32 %v3235, 1e-05
    %v3238 = vrsqrt.pop %v3236
    %v3239 = vmul.f32 %v3238, %v3236
    %v3240 = vmul.f32 %v3239, %v3238
    %v3241 = vmul.f32 0.5, %v3240
    %v3242 = vsub.f32 1.5, %v3241
    %v3243 = vmul.f32 %v3238, %v3242
    %vm3244 = vweird.f32 %v3236
    %vm3245 = vweird.f32 %v3238
    %vm3246 = vmor %vm3244, %vm3245
    %v3247 = vsel %vm3246, %v3238, %v3243
    %v3248 = vrsqrt.pop %v3237
    %v3249 = vmul.f32 %v3248, %v3237
    %v3250 = vmul.f32 %v3249, %v3248
    %v3251 = vmul.f32 0.5, %v3250
    %v3252 = vsub.f32 1.5, %v3251
    %v3253 = vmul.f32 %v3248, %v3252
    %vm3254 = vweird.f32 %v3237
    %vm3255 = vweird.f32 %v3248
    %vm3256 = vmor %vm3254, %vm3255
    %v3257 = vsel %vm3256, %v3248, %v3253
    %v3258 = vmul.f32 %v3230, %v3247
    %v3259 = vmul.f32 %v3231, %v3257
    %v3260 = vperm.slane %v3210, 0
    %v3261 = vmul.f32 %v3258, %v3260
    %v3262 = vmul.f32 %v3259, %v3260
    %v3263 = vperm.slane %v3211, 0
    %v3264 = vadd.f32 %v3261, %v3263
    %v3265 = vadd.f32 %v3262, %v3263
    %s3266 = scalar_lea.vmem %s8, 32
    %v3267 = vld [vmem:[%s3266] sm:$0xff]
    %v3268 = vld [vmem:[%s3266 + $0x8] sm:$0xff]
    %v3269 = vld [vmem:[%s3266 + $0x10] sm:$0xff]
    %v3270 = vld [vmem:[%s3266 + $0x18] sm:$0xff]
    %v3271 = vld [vmem:[%s9 + $0x1] sm:$0x1]
    %v3272 = vperm.slane %v3271, 0
    %v3274 = vsel %vm78, %v3264, 0
    %v3277 = vsel %vm78, %v3265, 0
    %3279 = vmatpush.msra.mxu0 0.0
    %3280 = vmatpush.msra.mxu0 0.0
    %3281 = vmatpush.msra.mxu0 0.0
    %3282 = vmatpush.msra.mxu0 0.0
    %3283 = vmatpush.msra.mxu0 0.0
    %3284 = vmatpush.msra.mxu0 0.0
    %3285 = vmatpush.msra.mxu0 0.0
    %3286 = vmatpush.msra.mxu0 0.0
    %3287 = vmatpush.msra.mxu0 0.0
    %3288 = vmatpush.msra.mxu0 0.0
    %3289 = vmatpush.msra.mxu0 0.0
    %3290 = vmatpush.msra.mxu0 0.0
    %3291 = vmatpush.msra.mxu0 %v3270
    %3292 = vmatpush.msra.mxu0 %v3269
    %3293 = vmatpush.msra.mxu0 %v3268
    %3294 = vmatpush.msra.mxu0 %v3267
    %3295 = vmatmul.f32.gmra.mxu0 %v3274
    %v3296 = vpop.f32.mrf.mxu0
    %v3297 = vadd.f32 %v3272, %v3296
    %3298 = vmatmul.f32.gmra.mxu0 %v3277
    %v3299 = vpop.f32.mrf.mxu0
    %v3300 = vadd.f32 %v3272, %v3299
    %3301 = vdwg.mxu0
    %v3302 = vmax.f32 %v3297, 0.0
    %v3303 = vmax.f32 %v3300, 0.0
    %s3304 = scalar_lea.vmem %s10, 64
    %v3305 = vld [vmem:[%s3304] sm:$0xff]
    %v3306 = vld [vmem:[%s3304 + $0x8] sm:$0xff]
    %v3307 = vld [vmem:[%s3304 + $0x10] sm:$0xff]
    %v3308 = vld [vmem:[%s3304 + $0x18] sm:$0xff]
    %v3309 = vld [vmem:[%s3304 + $0x20] sm:$0xff]
    %v3310 = vld [vmem:[%s3304 + $0x28] sm:$0xff]
    %v3311 = vld [vmem:[%s3304 + $0x30] sm:$0xff]
    %v3312 = vld [vmem:[%s3304 + $0x38] sm:$0xff]
    %v3313 = vld [vmem:[%s7 + $0x13] sm:$0x1]
    %v3314 = vperm.slane %v3313, 0
    %v3316 = vsel %vm1664, %v3302, 0
    %v3319 = vsel %vm1664, %v3303, 0
    %3321 = vmatpush.msra.mxu0 0.0
    %3322 = vmatpush.msra.mxu0 0.0
    %3323 = vmatpush.msra.mxu0 0.0
    %3324 = vmatpush.msra.mxu0 0.0
    %3325 = vmatpush.msra.mxu0 0.0
    %3326 = vmatpush.msra.mxu0 0.0
    %3327 = vmatpush.msra.mxu0 0.0
    %3328 = vmatpush.msra.mxu0 0.0
    %3329 = vmatpush.msra.mxu0 %v3312
    %3330 = vmatpush.msra.mxu0 %v3311
    %3331 = vmatpush.msra.mxu0 %v3310
    %3332 = vmatpush.msra.mxu0 %v3309
    %3333 = vmatpush.msra.mxu0 %v3308
    %3334 = vmatpush.msra.mxu0 %v3307
    %3335 = vmatpush.msra.mxu0 %v3306
    %3336 = vmatpush.msra.mxu0 %v3305
    %3337 = vmatmul.f32.gmra.mxu0 %v3316
    %v3338 = vpop.f32.mrf.mxu0
    %v3339 = vadd.f32 %v3314, %v3338
    %3340 = vmatmul.f32.gmra.mxu0 %v3319
    %v3341 = vpop.f32.mrf.mxu0
    %v3342 = vadd.f32 %v3314, %v3341
    %3343 = vdwg.mxu0
    %v3344 = vadd.f32 %v3264, %v3339
    %v3345 = vadd.f32 %v3265, %v3342
    %v3346 = vld [vmem:[%s7 + $0x18] sm:$0x1]
    %v3347 = vld [vmem:[%s7 + $0x19] sm:$0x1]
    %v3348 = vsel %vm78, %v3344, 0.0
    %3349 = vadd.xlane.f32.xlu0 %v3348
    %v3350 = vpop.xlane.xlu0 %3349
    %v3351 = vsel %vm78, %v3345, 0.0
    %3352 = vadd.xlane.f32.xlu0 %v3351
    %v3353 = vpop.xlane.xlu0 %3352
    %v3354 = vmul.f32 %v3350, %v746
    %v3355 = vmul.f32 %v3353, %v746
    %v3356 = vmul.f32 %v3344, %v3344
    %v3357 = vmul.f32 %v3345, %v3345
    %v3358 = vsel %vm78, %v3356, 0.0
    %3359 = vadd.xlane.f32.xlu0 %v3358
    %v3360 = vpop.xlane.xlu0 %3359
    %v3361 = vsel %vm78, %v3357, 0.0
    %3362 = vadd.xlane.f32.xlu0 %v3361
    %v3363 = vpop.xlane.xlu0 %3362
    %v3364 = vmul.f32 %v3360, %v746
    %v3365 = vmul.f32 %v3363, %v746
    %v3366 = vsub.f32 %v3344, %v3354
    %v3367 = vsub.f32 %v3345, %v3355
    %v3368 = vmul.f32 %v3354, %v3354
    %v3369 = vmul.f32 %v3355, %v3355
    %v3370 = vsub.f32 %v3364, %v3368
    %v3371 = vsub.f32 %v3365, %v3369
    %v3372 = vadd.f32 %v3370, 1e-05
    %v3373 = vadd.f32 %v3371, 1e-05
    %v3374 = vrsqrt.pop %v3372
    %v3375 = vmul.f32 %v3374, %v3372
    %v3376 = vmul.f32 %v3375, %v3374
    %v3377 = vmul.f32 0.5, %v3376
    %v3378 = vsub.f32 1.5, %v3377
    %v3379 = vmul.f32 %v3374, %v3378
    %vm3380 = vweird.f32 %v3372
    %vm3381 = vweird.f32 %v3374
    %vm3382 = vmor %vm3380, %vm3381
    %v3383 = vsel %vm3382, %v3374, %v3379
    %v3384 = vrsqrt.pop %v3373
    %v3385 = vmul.f32 %v3384, %v3373
    %v3386 = vmul.f32 %v3385, %v3384
    %v3387 = vmul.f32 0.5, %v3386
    %v3388 = vsub.f32 1.5, %v3387
    %v3389 = vmul.f32 %v3384, %v3388
    %vm3390 = vweird.f32 %v3373
    %vm3391 = vweird.f32 %v3384
    %vm3392 = vmor %vm3390, %vm3391
    %v3393 = vsel %vm3392, %v3384, %v3389
    %v3394 = vmul.f32 %v3366, %v3383
    %v3395 = vmul.f32 %v3367, %v3393
    %v3396 = vperm.slane %v3346, 0
    %v3397 = vmul.f32 %v3394, %v3396
    %v3398 = vmul.f32 %v3395, %v3396
    %v3399 = vperm.slane %v3347, 0
    %v3400 = vadd.f32 %v3397, %v3399
    %v3401 = vadd.f32 %v3398, %v3399
    %v3402 = vld [vmem:[%s7 + $0x1a] sm:$0x1]
    %v3403 = vld [vmem:[%s7 + $0x1b] sm:$0x1]
    %v3404 = vsel %vm78, %v3400, 0.0
    %3405 = vadd.xlane.f32.xlu0 %v3404
    %v3406 = vpop.xlane.xlu0 %3405
    %v3407 = vsel %vm78, %v3401, 0.0
    %3408 = vadd.xlane.f32.xlu0 %v3407
    %v3409 = vpop.xlane.xlu0 %3408
    %v3410 = vmul.f32 %v3406, %v746
    %v3411 = vmul.f32 %v3409, %v746
    %v3412 = vmul.f32 %v3400, %v3400
    %v3413 = vmul.f32 %v3401, %v3401
    %v3414 = vsel %vm78, %v3412, 0.0
    %3415 = vadd.xlane.f32.xlu0 %v3414
    %v3416 = vpop.xlane.xlu0 %3415
    %v3417 = vsel %vm78, %v3413, 0.0
    %3418 = vadd.xlane.f32.xlu0 %v3417
    %v3419 = vpop.xlane.xlu0 %3418
    %v3420 = vmul.f32 %v3416, %v746
    %v3421 = vmul.f32 %v3419, %v746
    %v3422 = vsub.f32 %v3400, %v3410
    %v3423 = vsub.f32 %v3401, %v3411
    %v3424 = vmul.f32 %v3410, %v3410
    %v3425 = vmul.f32 %v3411, %v3411
    %v3426 = vsub.f32 %v3420, %v3424
    %v3427 = vsub.f32 %v3421, %v3425
    %v3428 = vadd.f32 %v3426, 1e-05
    %v3429 = vadd.f32 %v3427, 1e-05
    %v3430 = vrsqrt.pop %v3428
    %v3431 = vmul.f32 %v3430, %v3428
    %v3432 = vmul.f32 %v3431, %v3430
    %v3433 = vmul.f32 0.5, %v3432
    %v3434 = vsub.f32 1.5, %v3433
    %v3435 = vmul.f32 %v3430, %v3434
    %vm3436 = vweird.f32 %v3428
    %vm3437 = vweird.f32 %v3430
    %vm3438 = vmor %vm3436, %vm3437
    %v3439 = vsel %vm3438, %v3430, %v3435
    %v3440 = vrsqrt.pop %v3429
    %v3441 = vmul.f32 %v3440, %v3429
    %v3442 = vmul.f32 %v3441, %v3440
    %v3443 = vmul.f32 0.5, %v3442
    %v3444 = vsub.f32 1.5, %v3443
    %v3445 = vmul.f32 %v3440, %v3444
    %vm3446 = vweird.f32 %v3429
    %vm3447 = vweird.f32 %v3440
    %vm3448 = vmor %vm3446, %vm3447
    %v3449 = vsel %vm3448, %v3440, %v3445
    %v3450 = vmul.f32 %v3422, %v3439
    %v3451 = vmul.f32 %v3423, %v3449
    %v3452 = vperm.slane %v3402, 0
    %v3453 = vmul.f32 %v3450, %v3452
    %v3454 = vmul.f32 %v3451, %v3452
    %v3455 = vperm.slane %v3403, 0
    %v3456 = vadd.f32 %v3453, %v3455
    %v3457 = vadd.f32 %v3454, %v3455
    %3458 = vst.msk [vmem:[%s11] sm:$0xff] %vm78, %v3456
    %3459 = vst.msk [vmem:[%s11 + $0x8] sm:$0xff] %vm78, %v3457
    // Predicated region
    $region50: #{_lambda_.1} parent=1 // pred_check
      _
    $region51: #{_lambda_.1} parent=1 // pred_check_branch
      %3461 = sbr.rel (0) target = $region53
    $region52: #{_lambda_.1} parent=1 // pred_region
      _
    $region53: #{_lambda_.1} parent=1 // pred_fallthru
      _
    // Predicated region
    $region54: #{_lambda_.1} parent=1 // pred_check
      _
    $region55: #{_lambda_.1} parent=1 // pred_check_branch
      %3463 = sbr.rel (0) target = $region57
    $region56: #{_lambda_.1} parent=1 // pred_region
      _
    $region57: #{_lambda_.1} parent=1 // pred_fallthru
      _
    %3464 = vsyncpa [#allocation3], 1

</llo_original>
